<compile_context>
chip_gen: v7x
topology: tpu7x:2x2x1
jax: 0.10.0
libtpu: 0.0.40
codegen_flags: <defaults>
</compile_context>

<pallas_src>
from functools import partial

import jax
import jax.numpy as jnp
import numpy as np
from jax.experimental import pallas as pl
from jax.experimental.pallas import tpu as pltpu

ZDIM, XDIM, HIDDEN = 8, 16, 32

# ---- fused, pad-free output slab layout (64 lanes) --------------------------
#   [ mu_theta(16) | x(16) | dU(16) | mu_phi(8) | logvar_phi(8) ]
O_MU = 0
O_X = XDIM
O_DU = 2 * XDIM
O_HEADS = 3 * XDIM                          # mu_phi then logvar_phi
OUT_LANES = 3 * XDIM + 2 * ZDIM             # 64

# ---- single packed parameter slab (rows x 48 lanes), all offsets 8-aligned --
# lanes [0:HIDDEN)                : "A" pieces (lane width = HIDDEN = 32)
# lanes [HIDDEN:HIDDEN+XDIM)      : "B" pieces (lane width = XDIM = 16)
P_LANES = HIDDEN + XDIM                     # 48
A_DW1 = 0                                   # (ZDIM, HIDDEN)
A_EW1 = ZDIM                                # (XDIM, HIDDEN)
A_DB1 = ZDIM + XDIM                         # (1, HIDDEN)      row 24
A_EB1 = A_DB1 + 8                           # (1, HIDDEN)      row 32
B_DW2 = 0                                   # (HIDDEN, XDIM)
B_EWH = HIDDEN                              # (HIDDEN, 2*ZDIM) fused mu/lv heads
B_DB2 = 2 * HIDDEN                          # (1, XDIM)        row 64
B_LVTH = B_DB2 + 8                          # (1, XDIM)        row 72 (logvar_theta)
B_EBH = B_LVTH + 8                          # (1, 2*ZDIM)      row 80
P_ROWS = B_EBH + 8                          # 88


def physics_vae_kernel(z_ref, eps_ref, p_ref, out_ref):
    z = z_ref[...]                                        # (TB, ZDIM)
    eps = eps_ref[...]                                    # (TB, XDIM)

    # Static views into the single packed parameter slab.
    dw1 = p_ref[A_DW1:A_DW1 + ZDIM, 0:HIDDEN]             # (ZDIM, HIDDEN)
    ew1 = p_ref[A_EW1:A_EW1 + XDIM, 0:HIDDEN]             # (XDIM, HIDDEN)
    db1 = p_ref[A_DB1:A_DB1 + 1, 0:HIDDEN]                # (1, HIDDEN)
    eb1 = p_ref[A_EB1:A_EB1 + 1, 0:HIDDEN]                # (1, HIDDEN)
    dw2 = p_ref[B_DW2:B_DW2 + HIDDEN, HIDDEN:P_LANES]     # (HIDDEN, XDIM)
    ewh = p_ref[B_EWH:B_EWH + HIDDEN, HIDDEN:P_LANES]     # (HIDDEN, 2*ZDIM)
    db2 = p_ref[B_DB2:B_DB2 + 1, HIDDEN:P_LANES]          # (1, XDIM)
    lvth = p_ref[B_LVTH:B_LVTH + 1, HIDDEN:P_LANES]       # (1, XDIM)
    ebh = p_ref[B_EBH:B_EBH + 1, HIDDEN:P_LANES]          # (1, 2*ZDIM)

    # ---- decoder: mu_theta = tanh(z @ W1 + b1) @ W2 + b2 --------------------
    h = jnp.tanh(jnp.dot(z, dw1, preferred_element_type=jnp.float32) + db1)
    mu_theta = jnp.dot(h, dw2, preferred_element_type=jnp.float32) + db2
    out_ref[:, O_MU:O_MU + XDIM] = mu_theta               # store-as-you-go

    # ---- reparameterize: sigma broadcast over batch (repeat(batch, 1)) ------
    sigma = jnp.exp(0.5 * lvth)                           # (1, XDIM)
    x = mu_theta + sigma * eps
    out_ref[:, O_X:O_X + XDIM] = x

    # ---- potential gradient: U(x) = sum(0.25x^4 - 0.5x^2) -> dU = x^3 - x ---
    out_ref[:, O_DU:O_DU + XDIM] = x * x * x - x

    # ---- encoder: shared tanh hidden layer, fused mu/logvar heads -----------
    he = jnp.tanh(jnp.dot(x, ew1, preferred_element_type=jnp.float32) + eb1)
    heads = jnp.dot(he, ewh, preferred_element_type=jnp.float32) + ebh
    out_ref[:, O_HEADS:O_HEADS + 2 * ZDIM] = heads


def init_params(key):
    ks = jax.random.split(key, 6)

    def w(k, fan_in, shape):
        return jax.random.normal(k, shape, jnp.float32) / np.sqrt(fan_in)

    return dict(
        # decoder
        dw1=w(ks[0], ZDIM, (ZDIM, HIDDEN)),
        db1=jnp.zeros((1, HIDDEN), jnp.float32),
        dw2=w(ks[1], HIDDEN, (HIDDEN, XDIM)),
        db2=jnp.zeros((1, XDIM), jnp.float32),
        logvar_theta=0.1 * jax.random.normal(ks[2], (1, XDIM), jnp.float32),
        # encoder
        ew1=w(ks[3], XDIM, (XDIM, HIDDEN)),
        eb1=jnp.zeros((1, HIDDEN), jnp.float32),
        ewmu=w(ks[4], HIDDEN, (HIDDEN, ZDIM)),
        ebmu=jnp.zeros((1, ZDIM), jnp.float32),
        ewlv=w(ks[5], HIDDEN, (HIDDEN, ZDIM)),
        eblv=jnp.zeros((1, ZDIM), jnp.float32),
    )


def pack_params(p):
    """Pack all weights/biases into one (P_ROWS, 48) slab.

    NOTE: called ONCE (outside the jitted forward). If params are updated,
    the slab must be regenerated or the kernel will use stale weights.
    """
    assert 2 * ZDIM == XDIM, "head packing assumes 2*ZDIM == XDIM"
    w_heads = jnp.concatenate([p['ewmu'], p['ewlv']], axis=1)   # (HIDDEN, 2*ZDIM)
    b_heads = jnp.concatenate([p['ebmu'], p['eblv']], axis=1)   # (1, 2*ZDIM)

    pk = jnp.zeros((P_ROWS, P_LANES), jnp.float32)
    # "A" lanes (width HIDDEN)
    pk = pk.at[A_DW1:A_DW1 + ZDIM, 0:HIDDEN].set(p['dw1'])
    pk = pk.at[A_EW1:A_EW1 + XDIM, 0:HIDDEN].set(p['ew1'])
    pk = pk.at[A_DB1, 0:HIDDEN].set(p['db1'][0])
    pk = pk.at[A_EB1, 0:HIDDEN].set(p['eb1'][0])
    # "B" lanes (width XDIM)
    pk = pk.at[B_DW2:B_DW2 + HIDDEN, HIDDEN:P_LANES].set(p['dw2'])
    pk = pk.at[B_EWH:B_EWH + HIDDEN, HIDDEN:P_LANES].set(w_heads)
    pk = pk.at[B_DB2, HIDDEN:P_LANES].set(p['db2'][0])
    pk = pk.at[B_LVTH, HIDDEN:P_LANES].set(p['logvar_theta'][0])
    pk = pk.at[B_EBH, HIDDEN:P_LANES].set(b_heads[0])
    return pk


@partial(jax.jit, static_argnames=("num_tiles",))
def physics_vae_forward(z, eps, packed, logvar_theta, num_tiles=1):
    """num_tiles=1 -> single grid step (best on 1-TC v5e/v6e);
    num_tiles=2 -> one batch tile per TensorCore on v7x."""
    batch = z.shape[0]
    assert batch % (8 * num_tiles) == 0
    tb = batch // num_tiles

    flops = batch * 2 * (ZDIM * HIDDEN + HIDDEN * XDIM + XDIM * HIDDEN
                         + HIDDEN * 2 * ZDIM)
    bytes_accessed = (batch * (ZDIM + XDIM + OUT_LANES) + P_ROWS * P_LANES) * 4

    out = pl.pallas_call(
        physics_vae_kernel,
        out_shape=jax.ShapeDtypeStruct((batch, OUT_LANES), jnp.float32),
        grid=(num_tiles,),
        in_specs=[
            pl.BlockSpec((tb, ZDIM), lambda i: (i, 0)),          # z: tiled over batch
            pl.BlockSpec((tb, XDIM), lambda i: (i, 0)),          # eps: tiled over batch
            pl.BlockSpec((P_ROWS, P_LANES), lambda i: (0, 0)),   # weights: VMEM-resident
        ],
        out_specs=pl.BlockSpec((tb, OUT_LANES), lambda i: (i, 0)),
        compiler_params=pltpu.CompilerParams(
            dimension_semantics=("parallel",)),                  # dual-TC on v7x
        cost_estimate=pl.CostEstimate(
            flops=flops,
            transcendentals=batch * 2 * HIDDEN,
            bytes_accessed=bytes_accessed),
    )(z, eps, packed)

    mu_theta = out[:, O_MU:O_MU + XDIM]
    x = out[:, O_X:O_X + XDIM]
    dU = out[:, O_DU:O_DU + XDIM]
    mu_phi = out[:, O_HEADS:O_HEADS + ZDIM]
    logvar_phi = out[:, O_HEADS + ZDIM:O_HEADS + 2 * ZDIM]
    return z, mu_theta, logvar_theta, x, dU, mu_phi, logvar_phi


def reference_forward(z, eps, p):
    h = jnp.tanh(z @ p['dw1'] + p['db1'])
    mu_theta = h @ p['dw2'] + p['db2']
    sigma = jnp.exp(0.5 * p['logvar_theta'])
    x = mu_theta + sigma * eps
    dU = x ** 3 - x
    he = jnp.tanh(x @ p['ew1'] + p['eb1'])
    mu_phi = he @ p['ewmu'] + p['ebmu']
    logvar_phi = he @ p['ewlv'] + p['eblv']
    return z, mu_theta, p['logvar_theta'], x, dU, mu_phi, logvar_phi


if __name__ == "__main__":
    key = jax.random.PRNGKey(0)
    k_params, k_z, k_eps = jax.random.split(key, 3)
    params = init_params(k_params)
    packed = pack_params(params)        # packed once; re-pack only on param update

    BATCH = 512
    z = jax.random.normal(k_z, (BATCH, ZDIM), jnp.float32)
    # torch.randn((batch, xdim)) in reparameterize -> deterministic JAX normal here
    eps = jax.random.normal(k_eps, (BATCH, XDIM), jnp.float32)

    out = physics_vae_forward(z, eps, packed, params['logvar_theta'])
    out = jax.block_until_ready(out)

    ref = reference_forward(z, eps, params)
    for o, r in zip(out, ref):
        np.testing.assert_allclose(np.asarray(o), np.asarray(r),
                                   rtol=1e-5, atol=1e-5)
    print("KERNEL_OK")
</pallas_src>

<mosaic_0001>
module attributes {stable_mosaic.version = 11 : i64} {
  func.func @physics_vae_kernel(%arg0: i32, %arg1: memref<512x8xf32, #tpu.memory_space<vmem>>, %arg2: memref<512x16xf32, #tpu.memory_space<vmem>>, %arg3: memref<88x48xf32, #tpu.memory_space<vmem>>, %arg4: memref<512x64xf32, #tpu.memory_space<vmem>>) attributes {dimension_semantics = [#tpu.dimension_semantics<parallel>], iteration_bounds = array<i64: 1>, scalar_prefetch = 0 : i64, scratch_operands = 0 : i64, tpu.core_type = #tpu.core_type<tc>, window_params = [{transform_indices = @transform_0, window_bounds = array<i64: 512, 8>}, {transform_indices = @transform_1, window_bounds = array<i64: 512, 16>}, {pipeline_mode = #tpu.pipeline_mode<synchronous>, transform_indices = @transform_2, window_bounds = array<i64: 88, 48>}, {transform_indices = @transform_3, window_bounds = array<i64: 512, 64>}]} {
    %c0 = arith.constant 0 : index
    %c0_0 = arith.constant 0 : index
    %0 = vector.load %arg1[%c0, %c0_0] : memref<512x8xf32, #tpu.memory_space<vmem>>, vector<512x8xf32>
    %c0_1 = arith.constant 0 : index
    %c0_2 = arith.constant 0 : index
    %1 = vector.load %arg2[%c0_1, %c0_2] : memref<512x16xf32, #tpu.memory_space<vmem>>, vector<512x16xf32>
    %c0_3 = arith.constant 0 : index
    %c0_4 = arith.constant 0 : index
    %2 = vector.load %arg3[%c0_3, %c0_4] : memref<88x48xf32, #tpu.memory_space<vmem>>, vector<8x32xf32>
    %c8 = arith.constant 8 : index
    %c0_5 = arith.constant 0 : index
    %3 = vector.load %arg3[%c8, %c0_5] : memref<88x48xf32, #tpu.memory_space<vmem>>, vector<16x32xf32>
    %c24 = arith.constant 24 : index
    %c0_6 = arith.constant 0 : index
    %4 = vector.load %arg3[%c24, %c0_6] : memref<88x48xf32, #tpu.memory_space<vmem>>, vector<1x32xf32>
    %c32 = arith.constant 32 : index
    %c0_7 = arith.constant 0 : index
    %5 = vector.load %arg3[%c32, %c0_7] : memref<88x48xf32, #tpu.memory_space<vmem>>, vector<1x32xf32>
    %c0_8 = arith.constant 0 : index
    %c32_9 = arith.constant 32 : index
    %6 = vector.load %arg3[%c0_8, %c32_9] : memref<88x48xf32, #tpu.memory_space<vmem>>, vector<32x16xf32>
    %c32_10 = arith.constant 32 : index
    %c32_11 = arith.constant 32 : index
    %7 = vector.load %arg3[%c32_10, %c32_11] : memref<88x48xf32, #tpu.memory_space<vmem>>, vector<32x16xf32>
    %c64 = arith.constant 64 : index
    %c32_12 = arith.constant 32 : index
    %8 = vector.load %arg3[%c64, %c32_12] : memref<88x48xf32, #tpu.memory_space<vmem>>, vector<1x16xf32>
    %c72 = arith.constant 72 : index
    %c32_13 = arith.constant 32 : index
    %9 = vector.load %arg3[%c72, %c32_13] : memref<88x48xf32, #tpu.memory_space<vmem>>, vector<1x16xf32>
    %c80 = arith.constant 80 : index
    %c32_14 = arith.constant 32 : index
    %10 = vector.load %arg3[%c80, %c32_14] : memref<88x48xf32, #tpu.memory_space<vmem>>, vector<1x16xf32>
    %cst = arith.constant dense<0.000000e+00> : vector<512x32xf32>
    %11 = tpu.matmul %0, %2, %cst {dimension_numbers = #tpu.dot_dimension_numbers<[1], [0], [0], [1], [0, 0, 1, 1], [], []>} : vector<512x8xf32>, vector<8x32xf32>, vector<512x32xf32> -> vector<512x32xf32>
    %12 = vector.broadcast %4 : vector<1x32xf32> to vector<512x32xf32>
    %13 = arith.addf %11, %12 : vector<512x32xf32>
    %14 = math.tanh %13 : vector<512x32xf32>
    %cst_15 = arith.constant dense<0.000000e+00> : vector<512x16xf32>
    %15 = tpu.matmul %14, %6, %cst_15 {dimension_numbers = #tpu.dot_dimension_numbers<[1], [0], [0], [1], [0, 0, 1, 1], [], []>} : vector<512x32xf32>, vector<32x16xf32>, vector<512x16xf32> -> vector<512x16xf32>
    %16 = vector.broadcast %8 : vector<1x16xf32> to vector<512x16xf32>
    %17 = arith.addf %15, %16 : vector<512x16xf32>
    %c0_16 = arith.constant 0 : index
    %c0_17 = arith.constant 0 : index
    %18 = vector.load %arg4[%c0_16, %c0_17] : memref<512x64xf32, #tpu.memory_space<vmem>>, vector<512x16xf32>
    tpu.vector_store %arg4[%c0_16, %c0_17], %17 {strides = array<i32>} : memref<512x64xf32, #tpu.memory_space<vmem>>, vector<512x16xf32>,
    %cst_18 = arith.constant 5.000000e-01 : f32
    %19 = vector.broadcast %cst_18 : f32 to vector<1x16xf32>
    %20 = arith.mulf %19, %9 : vector<1x16xf32>
    %21 = math.exp %20 : vector<1x16xf32>
    %22 = vector.broadcast %21 : vector<1x16xf32> to vector<512x16xf32>
    %23 = arith.mulf %22, %1 : vector<512x16xf32>
    %24 = arith.addf %17, %23 : vector<512x16xf32>
    %c0_19 = arith.constant 0 : index
    %c16 = arith.constant 16 : index
    %25 = vector.load %arg4[%c0_19, %c16] : memref<512x64xf32, #tpu.memory_space<vmem>>, vector<512x16xf32>
    tpu.vector_store %arg4[%c0_19, %c16], %24 {strides = array<i32>} : memref<512x64xf32, #tpu.memory_space<vmem>>, vector<512x16xf32>,
    %26 = arith.mulf %24, %24 : vector<512x16xf32>
    %27 = arith.mulf %26, %24 : vector<512x16xf32>
    %28 = arith.subf %27, %24 : vector<512x16xf32>
    %c0_20 = arith.constant 0 : index
    %c32_21 = arith.constant 32 : index
    %29 = vector.load %arg4[%c0_20, %c32_21] : memref<512x64xf32, #tpu.memory_space<vmem>>, vector<512x16xf32>
    tpu.vector_store %arg4[%c0_20, %c32_21], %28 {strides = array<i32>} : memref<512x64xf32, #tpu.memory_space<vmem>>, vector<512x16xf32>,
    %cst_22 = arith.constant dense<0.000000e+00> : vector<512x32xf32>
    %30 = tpu.matmul %24, %3, %cst_22 {dimension_numbers = #tpu.dot_dimension_numbers<[1], [0], [0], [1], [0, 0, 1, 1], [], []>} : vector<512x16xf32>, vector<16x32xf32>, vector<512x32xf32> -> vector<512x32xf32>
    %31 = vector.broadcast %5 : vector<1x32xf32> to vector<512x32xf32>
    %32 = arith.addf %30, %31 : vector<512x32xf32>
    %33 = math.tanh %32 : vector<512x32xf32>
    %cst_23 = arith.constant dense<0.000000e+00> : vector<512x16xf32>
    %34 = tpu.matmul %33, %7, %cst_23 {dimension_numbers = #tpu.dot_dimension_numbers<[1], [0], [0], [1], [0, 0, 1, 1], [], []>} : vector<512x32xf32>, vector<32x16xf32>, vector<512x16xf32> -> vector<512x16xf32>
    %35 = vector.broadcast %10 : vector<1x16xf32> to vector<512x16xf32>
    %36 = arith.addf %34, %35 : vector<512x16xf32>
    %c0_24 = arith.constant 0 : index
    %c48 = arith.constant 48 : index
    %37 = vector.load %arg4[%c0_24, %c48] : memref<512x64xf32, #tpu.memory_space<vmem>>, vector<512x16xf32>
    tpu.vector_store %arg4[%c0_24, %c48], %36 {strides = array<i32>} : memref<512x64xf32, #tpu.memory_space<vmem>>, vector<512x16xf32>,
    return
  }
  func.func @transform_0(%arg0: i32) -> (i32, i32) {
    %c0_i32 = arith.constant 0 : i32
    %c0_i32_0 = arith.constant 0 : i32
    return %arg0, %c0_i32 : i32, i32
  }
  func.func @transform_1(%arg0: i32) -> (i32, i32) {
    %c0_i32 = arith.constant 0 : i32
    %c0_i32_0 = arith.constant 0 : i32
    return %arg0, %c0_i32 : i32, i32
  }
  func.func @transform_2(%arg0: i32) -> (i32, i32) {
    %c0_i32 = arith.constant 0 : i32
    %c0_i32_0 = arith.constant 0 : i32
    %c0_i32_1 = arith.constant 0 : i32
    return %c0_i32, %c0_i32_0 : i32, i32
  }
  func.func @transform_3(%arg0: i32) -> (i32, i32) {
    %c0_i32 = arith.constant 0 : i32
    %c0_i32_0 = arith.constant 0 : i32
    return %arg0, %c0_i32 : i32, i32
  }
}

</mosaic_0001>

<llo_original>
// kernel: physics_vae_forward.1
$region0: #{physics_vae_forward.1}
  #allocation0 [shape = 'u32[]', space=smem, size = 0x4, offset = 0x4, fixed_abs, tag = 'smem constant byte address 0x4 - core index']
  #allocation1 [shape = 'u32[144,128]{1,0:T(1,128)}', space=vmem, size = 0x12000, scoped, tag = 'internal scratch']
  %s0 = inlined_call_operand.vmem [shape: f32[512,8], index: 0, kind: input, shape index: {}]
  %s1 = inlined_call_operand.vmem [shape: f32[512,16], index: 1, kind: input, shape index: {}]
  %s2 = inlined_call_operand.vmem [shape: f32[88,48], index: 2, kind: input, shape index: {}]
  %s3 = inlined_call_operand.vmem [shape: f32[512,64], index: 3, kind: output, shape index: {}]
  %s4 = sld [smem:[#allocation0]]
  $region22: #{physics_vae_forward.1} parent=0
    _
  %s6 = ssub.s32 1, %s4
  %s7 = scalar_select 0, %s6, %s4
  // Predicated region
  $region2: #{physics_vae_forward.1} parent=0 // pred_check
    _
  $region3: #{physics_vae_forward.1} parent=0 // pred_check_branch
    %9 = sbr.rel (0) target = $region5
  $region4: #{physics_vae_forward.1} parent=0 // pred_region
    _
  $region5: #{physics_vae_forward.1} parent=0 // pred_fallthru
    _
  // Predicated region
  $region6: #{physics_vae_forward.1} parent=0 // pred_check
    _
  $region7: #{physics_vae_forward.1} parent=0 // pred_check_branch
    %11 = sbr.rel (0) target = $region9
  $region8: #{physics_vae_forward.1} parent=0 // pred_region
    _
  $region9: #{physics_vae_forward.1} parent=0 // pred_fallthru
    _
  // Predicated region
  $region10: #{physics_vae_forward.1} parent=0 // pred_check
    _
  $region11: #{physics_vae_forward.1} parent=0 // pred_check_branch
    %13 = sbr.rel (0) target = $region13
  $region12: #{physics_vae_forward.1} parent=0 // pred_region
    _
  $region13: #{physics_vae_forward.1} parent=0 // pred_fallthru
    _
  %v14 = vld [vmem:[%s0] sm:$0xff]
  %v15 = vld [vmem:[%s0 + $0x8] sm:$0xff]
  %v16 = vld [vmem:[%s0 + $0x10] sm:$0xff]
  %v17 = vld [vmem:[%s0 + $0x18] sm:$0xff]
  %v18 = vld [vmem:[%s0 + $0x20] sm:$0xff]
  %v19 = vld [vmem:[%s0 + $0x28] sm:$0xff]
  %v20 = vld [vmem:[%s0 + $0x30] sm:$0xff]
  %v21 = vld [vmem:[%s0 + $0x38] sm:$0xff]
  %v22 = vld [vmem:[%s0 + $0x40] sm:$0xff]
  %v23 = vld [vmem:[%s0 + $0x48] sm:$0xff]
  %v24 = vld [vmem:[%s0 + $0x50] sm:$0xff]
  %v25 = vld [vmem:[%s0 + $0x58] sm:$0xff]
  %v26 = vld [vmem:[%s0 + $0x60] sm:$0xff]
  %v27 = vld [vmem:[%s0 + $0x68] sm:$0xff]
  %v28 = vld [vmem:[%s0 + $0x70] sm:$0xff]
  %v29 = vld [vmem:[%s0 + $0x78] sm:$0xff]
  %v30 = vld [vmem:[%s0 + $0x80] sm:$0xff]
  %v31 = vld [vmem:[%s0 + $0x88] sm:$0xff]
  %v32 = vld [vmem:[%s0 + $0x90] sm:$0xff]
  %v33 = vld [vmem:[%s0 + $0x98] sm:$0xff]
  %v34 = vld [vmem:[%s0 + $0xa0] sm:$0xff]
  %v35 = vld [vmem:[%s0 + $0xa8] sm:$0xff]
  %v36 = vld [vmem:[%s0 + $0xb0] sm:$0xff]
  %v37 = vld [vmem:[%s0 + $0xb8] sm:$0xff]
  %v38 = vld [vmem:[%s0 + $0xc0] sm:$0xff]
  %v39 = vld [vmem:[%s0 + $0xc8] sm:$0xff]
  %v40 = vld [vmem:[%s0 + $0xd0] sm:$0xff]
  %v41 = vld [vmem:[%s0 + $0xd8] sm:$0xff]
  %v42 = vld [vmem:[%s0 + $0xe0] sm:$0xff]
  %v43 = vld [vmem:[%s0 + $0xe8] sm:$0xff]
  %v44 = vld [vmem:[%s0 + $0xf0] sm:$0xff]
  %v45 = vld [vmem:[%s0 + $0xf8] sm:$0xff]
  %v46 = vld [vmem:[%s0 + $0x100] sm:$0xff]
  %v47 = vld [vmem:[%s0 + $0x108] sm:$0xff]
  %v48 = vld [vmem:[%s0 + $0x110] sm:$0xff]
  %v49 = vld [vmem:[%s0 + $0x118] sm:$0xff]
  %v50 = vld [vmem:[%s0 + $0x120] sm:$0xff]
  %v51 = vld [vmem:[%s0 + $0x128] sm:$0xff]
  %v52 = vld [vmem:[%s0 + $0x130] sm:$0xff]
  %v53 = vld [vmem:[%s0 + $0x138] sm:$0xff]
  %v54 = vld [vmem:[%s0 + $0x140] sm:$0xff]
  %v55 = vld [vmem:[%s0 + $0x148] sm:$0xff]
  %v56 = vld [vmem:[%s0 + $0x150] sm:$0xff]
  %v57 = vld [vmem:[%s0 + $0x158] sm:$0xff]
  %v58 = vld [vmem:[%s0 + $0x160] sm:$0xff]
  %v59 = vld [vmem:[%s0 + $0x168] sm:$0xff]
  %v60 = vld [vmem:[%s0 + $0x170] sm:$0xff]
  %v61 = vld [vmem:[%s0 + $0x178] sm:$0xff]
  %v62 = vld [vmem:[%s0 + $0x180] sm:$0xff]
  %v63 = vld [vmem:[%s0 + $0x188] sm:$0xff]
  %v64 = vld [vmem:[%s0 + $0x190] sm:$0xff]
  %v65 = vld [vmem:[%s0 + $0x198] sm:$0xff]
  %v66 = vld [vmem:[%s0 + $0x1a0] sm:$0xff]
  %v67 = vld [vmem:[%s0 + $0x1a8] sm:$0xff]
  %v68 = vld [vmem:[%s0 + $0x1b0] sm:$0xff]
  %v69 = vld [vmem:[%s0 + $0x1b8] sm:$0xff]
  %v70 = vld [vmem:[%s0 + $0x1c0] sm:$0xff]
  %v71 = vld [vmem:[%s0 + $0x1c8] sm:$0xff]
  %v72 = vld [vmem:[%s0 + $0x1d0] sm:$0xff]
  %v73 = vld [vmem:[%s0 + $0x1d8] sm:$0xff]
  %v74 = vld [vmem:[%s0 + $0x1e0] sm:$0xff]
  %v75 = vld [vmem:[%s0 + $0x1e8] sm:$0xff]
  %v76 = vld [vmem:[%s0 + $0x1f0] sm:$0xff]
  %v77 = vld [vmem:[%s0 + $0x1f8] sm:$0xff]
  %v78 = vld [vmem:[%s1] sm:$0xff]
  %v79 = vld [vmem:[%s1 + $0x8] sm:$0xff]
  %v80 = vld [vmem:[%s1 + $0x10] sm:$0xff]
  %v81 = vld [vmem:[%s1 + $0x18] sm:$0xff]
  %v82 = vld [vmem:[%s1 + $0x20] sm:$0xff]
  %v83 = vld [vmem:[%s1 + $0x28] sm:$0xff]
  %v84 = vld [vmem:[%s1 + $0x30] sm:$0xff]
  %v85 = vld [vmem:[%s1 + $0x38] sm:$0xff]
  %v86 = vld [vmem:[%s1 + $0x40] sm:$0xff]
  %v87 = vld [vmem:[%s1 + $0x48] sm:$0xff]
  %v88 = vld [vmem:[%s1 + $0x50] sm:$0xff]
  %v89 = vld [vmem:[%s1 + $0x58] sm:$0xff]
  %v90 = vld [vmem:[%s1 + $0x60] sm:$0xff]
  %v91 = vld [vmem:[%s1 + $0x68] sm:$0xff]
  %v92 = vld [vmem:[%s1 + $0x70] sm:$0xff]
  %v93 = vld [vmem:[%s1 + $0x78] sm:$0xff]
  %v94 = vld [vmem:[%s1 + $0x80] sm:$0xff]
  %v95 = vld [vmem:[%s1 + $0x88] sm:$0xff]
  %v96 = vld [vmem:[%s1 + $0x90] sm:$0xff]
  %v97 = vld [vmem:[%s1 + $0x98] sm:$0xff]
  %v98 = vld [vmem:[%s1 + $0xa0] sm:$0xff]
  %v99 = vld [vmem:[%s1 + $0xa8] sm:$0xff]
  %v100 = vld [vmem:[%s1 + $0xb0] sm:$0xff]
  %v101 = vld [vmem:[%s1 + $0xb8] sm:$0xff]
  %v102 = vld [vmem:[%s1 + $0xc0] sm:$0xff]
  %v103 = vld [vmem:[%s1 + $0xc8] sm:$0xff]
  %v104 = vld [vmem:[%s1 + $0xd0] sm:$0xff]
  %v105 = vld [vmem:[%s1 + $0xd8] sm:$0xff]
  %v106 = vld [vmem:[%s1 + $0xe0] sm:$0xff]
  %v107 = vld [vmem:[%s1 + $0xe8] sm:$0xff]
  %v108 = vld [vmem:[%s1 + $0xf0] sm:$0xff]
  %v109 = vld [vmem:[%s1 + $0xf8] sm:$0xff]
  %v110 = vld [vmem:[%s1 + $0x100] sm:$0xff]
  %v111 = vld [vmem:[%s1 + $0x108] sm:$0xff]
  %v112 = vld [vmem:[%s1 + $0x110] sm:$0xff]
  %v113 = vld [vmem:[%s1 + $0x118] sm:$0xff]
  %v114 = vld [vmem:[%s1 + $0x120] sm:$0xff]
  %v115 = vld [vmem:[%s1 + $0x128] sm:$0xff]
  %v116 = vld [vmem:[%s1 + $0x130] sm:$0xff]
  %v117 = vld [vmem:[%s1 + $0x138] sm:$0xff]
  %v118 = vld [vmem:[%s1 + $0x140] sm:$0xff]
  %v119 = vld [vmem:[%s1 + $0x148] sm:$0xff]
  %v120 = vld [vmem:[%s1 + $0x150] sm:$0xff]
  %v121 = vld [vmem:[%s1 + $0x158] sm:$0xff]
  %v122 = vld [vmem:[%s1 + $0x160] sm:$0xff]
  %v123 = vld [vmem:[%s1 + $0x168] sm:$0xff]
  %v124 = vld [vmem:[%s1 + $0x170] sm:$0xff]
  %v125 = vld [vmem:[%s1 + $0x178] sm:$0xff]
  %v126 = vld [vmem:[%s1 + $0x180] sm:$0xff]
  %v127 = vld [vmem:[%s1 + $0x188] sm:$0xff]
  %v128 = vld [vmem:[%s1 + $0x190] sm:$0xff]
  %v129 = vld [vmem:[%s1 + $0x198] sm:$0xff]
  %v130 = vld [vmem:[%s1 + $0x1a0] sm:$0xff]
  %v131 = vld [vmem:[%s1 + $0x1a8] sm:$0xff]
  %v132 = vld [vmem:[%s1 + $0x1b0] sm:$0xff]
  %v133 = vld [vmem:[%s1 + $0x1b8] sm:$0xff]
  %v134 = vld [vmem:[%s1 + $0x1c0] sm:$0xff]
  %v135 = vld [vmem:[%s1 + $0x1c8] sm:$0xff]
  %v136 = vld [vmem:[%s1 + $0x1d0] sm:$0xff]
  %v137 = vld [vmem:[%s1 + $0x1d8] sm:$0xff]
  %v138 = vld [vmem:[%s1 + $0x1e0] sm:$0xff]
  %v139 = vld [vmem:[%s1 + $0x1e8] sm:$0xff]
  %v140 = vld [vmem:[%s1 + $0x1f0] sm:$0xff]
  %v141 = vld [vmem:[%s1 + $0x1f8] sm:$0xff]
  %v142 = vld [vmem:[%s2] sm:$0xff]
  %v143 = vld [vmem:[%s2 + $0x8] sm:$0xff]
  %v144 = vld [vmem:[%s2 + $0x10] sm:$0xff]
  %v145 = vld [vmem:[%s2 + $0x18] sm:$0x1]
  %v146 = vld [vmem:[%s2 + $0x20] sm:$0x1]
  %v147 = vld [vmem:[%s2 + $0x18] sm:$0xff]
  %v148 = vld [vmem:[%s2 + $0x20] sm:$0xff]
  %v149 = vld [vmem:[%s2 + $0x28] sm:$0xff]
  %v150 = vld [vmem:[%s2 + $0x30] sm:$0xff]
  %v151 = vld [vmem:[%s2 + $0x38] sm:$0xff]
  %v152 = vld [vmem:[%s2 + $0x40] sm:$0x1]
  %v153 = vld [vmem:[%s2 + $0x48] sm:$0x1]
  %v154 = vld [vmem:[%s2 + $0x50] sm:$0x1]
  %v155 = vlaneseq
  %v156 = vshrl.u32 %v155, 7
  %v157 = vsub.s32 0, %v156
  %v158 = vrot.slane %v145, %v157
  %vm159 = vcmask 64512
  %v161 = vsel %vm159, %v14, 0
  %v164 = vsel %vm159, %v15, 0
  %v167 = vsel %vm159, %v16, 0
  %v170 = vsel %vm159, %v17, 0
  %v173 = vsel %vm159, %v18, 0
  %v176 = vsel %vm159, %v19, 0
  %v179 = vsel %vm159, %v20, 0
  %v182 = vsel %vm159, %v21, 0
  %v185 = vsel %vm159, %v22, 0
  %v188 = vsel %vm159, %v23, 0
  %v191 = vsel %vm159, %v24, 0
  %v194 = vsel %vm159, %v25, 0
  %v197 = vsel %vm159, %v26, 0
  %v200 = vsel %vm159, %v27, 0
  %v203 = vsel %vm159, %v28, 0
  %v206 = vsel %vm159, %v29, 0
  %v209 = vsel %vm159, %v30, 0
  %v212 = vsel %vm159, %v31, 0
  %v215 = vsel %vm159, %v32, 0
  %v218 = vsel %vm159, %v33, 0
  %v221 = vsel %vm159, %v34, 0
  %v224 = vsel %vm159, %v35, 0
  %v227 = vsel %vm159, %v36, 0
  %v230 = vsel %vm159, %v37, 0
  %v233 = vsel %vm159, %v38, 0
  %v236 = vsel %vm159, %v39, 0
  %v239 = vsel %vm159, %v40, 0
  %v242 = vsel %vm159, %v41, 0
  %v245 = vsel %vm159, %v42, 0
  %v248 = vsel %vm159, %v43, 0
  %v251 = vsel %vm159, %v44, 0
  %v254 = vsel %vm159, %v45, 0
  %v257 = vsel %vm159, %v46, 0
  %v260 = vsel %vm159, %v47, 0
  %v263 = vsel %vm159, %v48, 0
  %v266 = vsel %vm159, %v49, 0
  %v269 = vsel %vm159, %v50, 0
  %v272 = vsel %vm159, %v51, 0
  %v275 = vsel %vm159, %v52, 0
  %v278 = vsel %vm159, %v53, 0
  %v281 = vsel %vm159, %v54, 0
  %v284 = vsel %vm159, %v55, 0
  %v287 = vsel %vm159, %v56, 0
  %v290 = vsel %vm159, %v57, 0
  %v293 = vsel %vm159, %v58, 0
  %v296 = vsel %vm159, %v59, 0
  %v299 = vsel %vm159, %v60, 0
  %v302 = vsel %vm159, %v61, 0
  %v305 = vsel %vm159, %v62, 0
  %v308 = vsel %vm159, %v63, 0
  %v311 = vsel %vm159, %v64, 0
  %v314 = vsel %vm159, %v65, 0
  %v317 = vsel %vm159, %v66, 0
  %v320 = vsel %vm159, %v67, 0
  %v323 = vsel %vm159, %v68, 0
  %v326 = vsel %vm159, %v69, 0
  %v329 = vsel %vm159, %v70, 0
  %v332 = vsel %vm159, %v71, 0
  %v335 = vsel %vm159, %v72, 0
  %v338 = vsel %vm159, %v73, 0
  %v341 = vsel %vm159, %v74, 0
  %v344 = vsel %vm159, %v75, 0
  %v347 = vsel %vm159, %v76, 0
  %v350 = vsel %vm159, %v77, 0
  %352 = vmatprep.subr.mxu0 0.0
  %353 = vmatpush1.msra.mxu0 %v142
  %354 = vmatprep.subr.mxu0 0.0
  %355 = vmatpush1.msra.mxu0 0.0
  %356 = vmatprep.subr.mxu0 0.0
  %357 = vmatpush1.msra.mxu0 0.0
  %358 = vmatprep.subr.mxu0 0.0
  %359 = vmatpush1.msra.mxu0 0.0
  %360 = vmatprep.subr.mxu0 0.0
  %361 = vmatpush1.msra.mxu0 0.0
  %362 = vmatprep.subr.mxu0 0.0
  %363 = vmatpush1.msra.mxu0 0.0
  %364 = vmatprep.subr.mxu0 0.0
  %365 = vmatpush1.msra.mxu0 0.0
  %366 = vmatprep.subr.mxu0 0.0
  %367 = vmatpush1.msra.mxu0 0.0
  %368 = vmatprep.subr.mxu0 0.0
  %369 = vmatpush1.msra.mxu0 0.0
  %370 = vmatprep.subr.mxu0 0.0
  %371 = vmatpush1.msra.mxu0 0.0
  %372 = vmatprep.subr.mxu0 0.0
  %373 = vmatpush1.msra.mxu0 0.0
  %374 = vmatprep.subr.mxu0 0.0
  %375 = vmatpush1.msra.mxu0 0.0
  %376 = vmatprep.subr.mxu0 0.0
  %377 = vmatpush1.msra.mxu0 0.0
  %378 = vmatprep.subr.mxu0 0.0
  %379 = vmatpush1.msra.mxu0 0.0
  %380 = vmatprep.subr.mxu0 0.0
  %381 = vmatpush1.msra.mxu0 0.0
  %382 = vmatprep.subr.mxu0 0.0
  %383 = vmatpush1.msra.mxu0 0.0
  %384 = vmatprep.subr.mxu0 0.0
  %385 = vmatpush1.msra.mxu0 0.0
  %386 = vmatprep.subr.mxu0 0.0
  %387 = vmatpush1.msra.mxu0 0.0
  %388 = vmatprep.subr.mxu0 0.0
  %389 = vmatpush1.msra.mxu0 0.0
  %390 = vmatprep.subr.mxu0 0.0
  %391 = vmatpush1.msra.mxu0 0.0
  %392 = vmatprep.subr.mxu0 0.0
  %393 = vmatpush1.msra.mxu0 0.0
  %394 = vmatprep.subr.mxu0 0.0
  %395 = vmatpush1.msra.mxu0 0.0
  %396 = vmatprep.subr.mxu0 0.0
  %397 = vmatpush1.msra.mxu0 0.0
  %398 = vmatprep.subr.mxu0 0.0
  %399 = vmatpush1.msra.mxu0 0.0
  %400 = vmatprep.subr.mxu0 0.0
  %401 = vmatpush1.msra.mxu0 0.0
  %402 = vmatprep.subr.mxu0 0.0
  %403 = vmatpush1.msra.mxu0 0.0
  %404 = vmatprep.subr.mxu0 0.0
  %405 = vmatpush1.msra.mxu0 0.0
  %406 = vmatprep.subr.mxu0 0.0
  %407 = vmatpush1.msra.mxu0 0.0
  %408 = vmatprep.subr.mxu0 0.0
  %409 = vmatpush1.msra.mxu0 0.0
  %410 = vmatprep.subr.mxu0 0.0
  %411 = vmatpush1.msra.mxu0 0.0
  %412 = vmatprep.subr.mxu0 0.0
  %413 = vmatpush1.msra.mxu0 0.0
  %414 = vmatprep.subr.mxu0 0.0
  %415 = vmatpush1.msra.mxu0 0.0
  %416 = vmatprep.mubr.f32.mxu0 0.0
  %417 = vmatmul.mubr.f32.gmra.mrb[0].mxu0 %v161
  %v418 = vpop.f32.mrb[0].mxu0
  %v419 = vadd.f32 %v158, %v418
  %v420 = vpop.f32.mrb[0].mxu0
  %421 = vmatprep.mubr.f32.mxu0 0.0
  %422 = vmatmul.mubr.f32.gmra.mrb[0].mxu0 %v164
  %v423 = vpop.f32.mrb[0].mxu0
  %v424 = vadd.f32 %v158, %v423
  %v425 = vpop.f32.mrb[0].mxu0
  %426 = vmatprep.mubr.f32.mxu0 0.0
  %427 = vmatmul.mubr.f32.gmra.mrb[0].mxu0 %v167
  %v428 = vpop.f32.mrb[0].mxu0
  %v429 = vadd.f32 %v158, %v428
  %v430 = vpop.f32.mrb[0].mxu0
  %431 = vmatprep.mubr.f32.mxu0 0.0
  %432 = vmatmul.mubr.f32.gmra.mrb[0].mxu0 %v170
  %v433 = vpop.f32.mrb[0].mxu0
  %v434 = vadd.f32 %v158, %v433
  %v435 = vpop.f32.mrb[0].mxu0
  %436 = vmatprep.mubr.f32.mxu0 0.0
  %437 = vmatmul.mubr.f32.gmra.mrb[0].mxu0 %v173
  %v438 = vpop.f32.mrb[0].mxu0
  %v439 = vadd.f32 %v158, %v438
  %v440 = vpop.f32.mrb[0].mxu0
  %441 = vmatprep.mubr.f32.mxu0 0.0
  %442 = vmatmul.mubr.f32.gmra.mrb[0].mxu0 %v176
  %v443 = vpop.f32.mrb[0].mxu0
  %v444 = vadd.f32 %v158, %v443
  %v445 = vpop.f32.mrb[0].mxu0
  %446 = vmatprep.mubr.f32.mxu0 0.0
  %447 = vmatmul.mubr.f32.gmra.mrb[0].mxu0 %v179
  %v448 = vpop.f32.mrb[0].mxu0
  %v449 = vadd.f32 %v158, %v448
  %v450 = vpop.f32.mrb[0].mxu0
  %451 = vmatprep.mubr.f32.mxu0 0.0
  %452 = vmatmul.mubr.f32.gmra.mrb[0].mxu0 %v182
  %v453 = vpop.f32.mrb[0].mxu0
  %v454 = vadd.f32 %v158, %v453
  %v455 = vpop.f32.mrb[0].mxu0
  %456 = vmatprep.mubr.f32.mxu0 0.0
  %457 = vmatmul.mubr.f32.gmra.mrb[0].mxu0 %v185
  %v458 = vpop.f32.mrb[0].mxu0
  %v459 = vadd.f32 %v158, %v458
  %v460 = vpop.f32.mrb[0].mxu0
  %461 = vmatprep.mubr.f32.mxu0 0.0
  %462 = vmatmul.mubr.f32.gmra.mrb[0].mxu0 %v188
  %v463 = vpop.f32.mrb[0].mxu0
  %v464 = vadd.f32 %v158, %v463
  %v465 = vpop.f32.mrb[0].mxu0
  %466 = vmatprep.mubr.f32.mxu0 0.0
  %467 = vmatmul.mubr.f32.gmra.mrb[0].mxu0 %v191
  %v468 = vpop.f32.mrb[0].mxu0
  %v469 = vadd.f32 %v158, %v468
  %v470 = vpop.f32.mrb[0].mxu0
  %471 = vmatprep.mubr.f32.mxu0 0.0
  %472 = vmatmul.mubr.f32.gmra.mrb[0].mxu0 %v194
  %v473 = vpop.f32.mrb[0].mxu0
  %v474 = vadd.f32 %v158, %v473
  %v475 = vpop.f32.mrb[0].mxu0
  %476 = vmatprep.mubr.f32.mxu0 0.0
  %477 = vmatmul.mubr.f32.gmra.mrb[0].mxu0 %v197
  %v478 = vpop.f32.mrb[0].mxu0
  %v479 = vadd.f32 %v158, %v478
  %v480 = vpop.f32.mrb[0].mxu0
  %481 = vmatprep.mubr.f32.mxu0 0.0
  %482 = vmatmul.mubr.f32.gmra.mrb[0].mxu0 %v200
  %v483 = vpop.f32.mrb[0].mxu0
  %v484 = vadd.f32 %v158, %v483
  %v485 = vpop.f32.mrb[0].mxu0
  %486 = vmatprep.mubr.f32.mxu0 0.0
  %487 = vmatmul.mubr.f32.gmra.mrb[0].mxu0 %v203
  %v488 = vpop.f32.mrb[0].mxu0
  %v489 = vadd.f32 %v158, %v488
  %v490 = vpop.f32.mrb[0].mxu0
  %491 = vmatprep.mubr.f32.mxu0 0.0
  %492 = vmatmul.mubr.f32.gmra.mrb[0].mxu0 %v206
  %v493 = vpop.f32.mrb[0].mxu0
  %v494 = vadd.f32 %v158, %v493
  %v495 = vpop.f32.mrb[0].mxu0
  %496 = vmatprep.mubr.f32.mxu0 0.0
  %497 = vmatmul.mubr.f32.gmra.mrb[0].mxu0 %v209
  %v498 = vpop.f32.mrb[0].mxu0
  %v499 = vadd.f32 %v158, %v498
  %v500 = vpop.f32.mrb[0].mxu0
  %501 = vmatprep.mubr.f32.mxu0 0.0
  %502 = vmatmul.mubr.f32.gmra.mrb[0].mxu0 %v212
  %v503 = vpop.f32.mrb[0].mxu0
  %v504 = vadd.f32 %v158, %v503
  %v505 = vpop.f32.mrb[0].mxu0
  %506 = vmatprep.mubr.f32.mxu0 0.0
  %507 = vmatmul.mubr.f32.gmra.mrb[0].mxu0 %v215
  %v508 = vpop.f32.mrb[0].mxu0
  %v509 = vadd.f32 %v158, %v508
  %v510 = vpop.f32.mrb[0].mxu0
  %511 = vmatprep.mubr.f32.mxu0 0.0
  %512 = vmatmul.mubr.f32.gmra.mrb[0].mxu0 %v218
  %v513 = vpop.f32.mrb[0].mxu0
  %v514 = vadd.f32 %v158, %v513
  %v515 = vpop.f32.mrb[0].mxu0
  %516 = vmatprep.mubr.f32.mxu0 0.0
  %517 = vmatmul.mubr.f32.gmra.mrb[0].mxu0 %v221
  %v518 = vpop.f32.mrb[0].mxu0
  %v519 = vadd.f32 %v158, %v518
  %v520 = vpop.f32.mrb[0].mxu0
  %521 = vmatprep.mubr.f32.mxu0 0.0
  %522 = vmatmul.mubr.f32.gmra.mrb[0].mxu0 %v224
  %v523 = vpop.f32.mrb[0].mxu0
  %v524 = vadd.f32 %v158, %v523
  %v525 = vpop.f32.mrb[0].mxu0
  %526 = vmatprep.mubr.f32.mxu0 0.0
  %527 = vmatmul.mubr.f32.gmra.mrb[0].mxu0 %v227
  %v528 = vpop.f32.mrb[0].mxu0
  %v529 = vadd.f32 %v158, %v528
  %v530 = vpop.f32.mrb[0].mxu0
  %531 = vmatprep.mubr.f32.mxu0 0.0
  %532 = vmatmul.mubr.f32.gmra.mrb[0].mxu0 %v230
  %v533 = vpop.f32.mrb[0].mxu0
  %v534 = vadd.f32 %v158, %v533
  %v535 = vpop.f32.mrb[0].mxu0
  %536 = vmatprep.mubr.f32.mxu0 0.0
  %537 = vmatmul.mubr.f32.gmra.mrb[0].mxu0 %v233
  %v538 = vpop.f32.mrb[0].mxu0
  %v539 = vadd.f32 %v158, %v538
  %v540 = vpop.f32.mrb[0].mxu0
  %541 = vmatprep.mubr.f32.mxu0 0.0
  %542 = vmatmul.mubr.f32.gmra.mrb[0].mxu0 %v236
  %v543 = vpop.f32.mrb[0].mxu0
  %v544 = vadd.f32 %v158, %v543
  %v545 = vpop.f32.mrb[0].mxu0
  %546 = vmatprep.mubr.f32.mxu0 0.0
  %547 = vmatmul.mubr.f32.gmra.mrb[0].mxu0 %v239
  %v548 = vpop.f32.mrb[0].mxu0
  %v549 = vadd.f32 %v158, %v548
  %v550 = vpop.f32.mrb[0].mxu0
  %551 = vmatprep.mubr.f32.mxu0 0.0
  %552 = vmatmul.mubr.f32.gmra.mrb[0].mxu0 %v242
  %v553 = vpop.f32.mrb[0].mxu0
  %v554 = vadd.f32 %v158, %v553
  %v555 = vpop.f32.mrb[0].mxu0
  %556 = vmatprep.mubr.f32.mxu0 0.0
  %557 = vmatmul.mubr.f32.gmra.mrb[0].mxu0 %v245
  %v558 = vpop.f32.mrb[0].mxu0
  %v559 = vadd.f32 %v158, %v558
  %v560 = vpop.f32.mrb[0].mxu0
  %561 = vmatprep.mubr.f32.mxu0 0.0
  %562 = vmatmul.mubr.f32.gmra.mrb[0].mxu0 %v248
  %v563 = vpop.f32.mrb[0].mxu0
  %v564 = vadd.f32 %v158, %v563
  %v565 = vpop.f32.mrb[0].mxu0
  %566 = vmatprep.mubr.f32.mxu0 0.0
  %567 = vmatmul.mubr.f32.gmra.mrb[0].mxu0 %v251
  %v568 = vpop.f32.mrb[0].mxu0
  %v569 = vadd.f32 %v158, %v568
  %v570 = vpop.f32.mrb[0].mxu0
  %571 = vmatprep.mubr.f32.mxu0 0.0
  %572 = vmatmul.mubr.f32.gmra.mrb[0].mxu0 %v254
  %v573 = vpop.f32.mrb[0].mxu0
  %v574 = vadd.f32 %v158, %v573
  %v575 = vpop.f32.mrb[0].mxu0
  %576 = vmatprep.mubr.f32.mxu0 0.0
  %577 = vmatmul.mubr.f32.gmra.mrb[0].mxu0 %v257
  %v578 = vpop.f32.mrb[0].mxu0
  %v579 = vadd.f32 %v158, %v578
  %v580 = vpop.f32.mrb[0].mxu0
  %581 = vmatprep.mubr.f32.mxu0 0.0
  %582 = vmatmul.mubr.f32.gmra.mrb[0].mxu0 %v260
  %v583 = vpop.f32.mrb[0].mxu0
  %v584 = vadd.f32 %v158, %v583
  %v585 = vpop.f32.mrb[0].mxu0
  %586 = vmatprep.mubr.f32.mxu0 0.0
  %587 = vmatmul.mubr.f32.gmra.mrb[0].mxu0 %v263
  %v588 = vpop.f32.mrb[0].mxu0
  %v589 = vadd.f32 %v158, %v588
  %v590 = vpop.f32.mrb[0].mxu0
  %591 = vmatprep.mubr.f32.mxu0 0.0
  %592 = vmatmul.mubr.f32.gmra.mrb[0].mxu0 %v266
  %v593 = vpop.f32.mrb[0].mxu0
  %v594 = vadd.f32 %v158, %v593
  %v595 = vpop.f32.mrb[0].mxu0
  %596 = vmatprep.mubr.f32.mxu0 0.0
  %597 = vmatmul.mubr.f32.gmra.mrb[0].mxu0 %v269
  %v598 = vpop.f32.mrb[0].mxu0
  %v599 = vadd.f32 %v158, %v598
  %v600 = vpop.f32.mrb[0].mxu0
  %601 = vmatprep.mubr.f32.mxu0 0.0
  %602 = vmatmul.mubr.f32.gmra.mrb[0].mxu0 %v272
  %v603 = vpop.f32.mrb[0].mxu0
  %v604 = vadd.f32 %v158, %v603
  %v605 = vpop.f32.mrb[0].mxu0
  %606 = vmatprep.mubr.f32.mxu0 0.0
  %607 = vmatmul.mubr.f32.gmra.mrb[0].mxu0 %v275
  %v608 = vpop.f32.mrb[0].mxu0
  %v609 = vadd.f32 %v158, %v608
  %v610 = vpop.f32.mrb[0].mxu0
  %611 = vmatprep.mubr.f32.mxu0 0.0
  %612 = vmatmul.mubr.f32.gmra.mrb[0].mxu0 %v278
  %v613 = vpop.f32.mrb[0].mxu0
  %v614 = vadd.f32 %v158, %v613
  %v615 = vpop.f32.mrb[0].mxu0
  %616 = vmatprep.mubr.f32.mxu0 0.0
  %617 = vmatmul.mubr.f32.gmra.mrb[0].mxu0 %v281
  %v618 = vpop.f32.mrb[0].mxu0
  %v619 = vadd.f32 %v158, %v618
  %v620 = vpop.f32.mrb[0].mxu0
  %621 = vmatprep.mubr.f32.mxu0 0.0
  %622 = vmatmul.mubr.f32.gmra.mrb[0].mxu0 %v284
  %v623 = vpop.f32.mrb[0].mxu0
  %v624 = vadd.f32 %v158, %v623
  %v625 = vpop.f32.mrb[0].mxu0
  %626 = vmatprep.mubr.f32.mxu0 0.0
  %627 = vmatmul.mubr.f32.gmra.mrb[0].mxu0 %v287
  %v628 = vpop.f32.mrb[0].mxu0
  %v629 = vadd.f32 %v158, %v628
  %v630 = vpop.f32.mrb[0].mxu0
  %631 = vmatprep.mubr.f32.mxu0 0.0
  %632 = vmatmul.mubr.f32.gmra.mrb[0].mxu0 %v290
  %v633 = vpop.f32.mrb[0].mxu0
  %v634 = vadd.f32 %v158, %v633
  %v635 = vpop.f32.mrb[0].mxu0
  %636 = vmatprep.mubr.f32.mxu0 0.0
  %637 = vmatmul.mubr.f32.gmra.mrb[0].mxu0 %v293
  %v638 = vpop.f32.mrb[0].mxu0
  %v639 = vadd.f32 %v158, %v638
  %v640 = vpop.f32.mrb[0].mxu0
  %641 = vmatprep.mubr.f32.mxu0 0.0
  %642 = vmatmul.mubr.f32.gmra.mrb[0].mxu0 %v296
  %v643 = vpop.f32.mrb[0].mxu0
  %v644 = vadd.f32 %v158, %v643
  %v645 = vpop.f32.mrb[0].mxu0
  %646 = vmatprep.mubr.f32.mxu0 0.0
  %647 = vmatmul.mubr.f32.gmra.mrb[0].mxu0 %v299
  %v648 = vpop.f32.mrb[0].mxu0
  %v649 = vadd.f32 %v158, %v648
  %v650 = vpop.f32.mrb[0].mxu0
  %651 = vmatprep.mubr.f32.mxu0 0.0
  %652 = vmatmul.mubr.f32.gmra.mrb[0].mxu0 %v302
  %v653 = vpop.f32.mrb[0].mxu0
  %v654 = vadd.f32 %v158, %v653
  %v655 = vpop.f32.mrb[0].mxu0
  %656 = vmatprep.mubr.f32.mxu0 0.0
  %657 = vmatmul.mubr.f32.gmra.mrb[0].mxu0 %v305
  %v658 = vpop.f32.mrb[0].mxu0
  %v659 = vadd.f32 %v158, %v658
  %v660 = vpop.f32.mrb[0].mxu0
  %661 = vmatprep.mubr.f32.mxu0 0.0
  %662 = vmatmul.mubr.f32.gmra.mrb[0].mxu0 %v308
  %v663 = vpop.f32.mrb[0].mxu0
  %v664 = vadd.f32 %v158, %v663
  %v665 = vpop.f32.mrb[0].mxu0
  %666 = vmatprep.mubr.f32.mxu0 0.0
  %667 = vmatmul.mubr.f32.gmra.mrb[0].mxu0 %v311
  %v668 = vpop.f32.mrb[0].mxu0
  %v669 = vadd.f32 %v158, %v668
  %v670 = vpop.f32.mrb[0].mxu0
  %671 = vmatprep.mubr.f32.mxu0 0.0
  %672 = vmatmul.mubr.f32.gmra.mrb[0].mxu0 %v314
  %v673 = vpop.f32.mrb[0].mxu0
  %v674 = vadd.f32 %v158, %v673
  %v675 = vpop.f32.mrb[0].mxu0
  %676 = vmatprep.mubr.f32.mxu0 0.0
  %677 = vmatmul.mubr.f32.gmra.mrb[0].mxu0 %v317
  %v678 = vpop.f32.mrb[0].mxu0
  %v679 = vadd.f32 %v158, %v678
  %v680 = vpop.f32.mrb[0].mxu0
  %681 = vmatprep.mubr.f32.mxu0 0.0
  %682 = vmatmul.mubr.f32.gmra.mrb[0].mxu0 %v320
  %v683 = vpop.f32.mrb[0].mxu0
  %v684 = vadd.f32 %v158, %v683
  %v685 = vpop.f32.mrb[0].mxu0
  %686 = vmatprep.mubr.f32.mxu0 0.0
  %687 = vmatmul.mubr.f32.gmra.mrb[0].mxu0 %v323
  %v688 = vpop.f32.mrb[0].mxu0
  %v689 = vadd.f32 %v158, %v688
  %v690 = vpop.f32.mrb[0].mxu0
  %691 = vmatprep.mubr.f32.mxu0 0.0
  %692 = vmatmul.mubr.f32.gmra.mrb[0].mxu0 %v326
  %v693 = vpop.f32.mrb[0].mxu0
  %v694 = vadd.f32 %v158, %v693
  %v695 = vpop.f32.mrb[0].mxu0
  %696 = vmatprep.mubr.f32.mxu0 0.0
  %697 = vmatmul.mubr.f32.gmra.mrb[0].mxu0 %v329
  %v698 = vpop.f32.mrb[0].mxu0
  %v699 = vadd.f32 %v158, %v698
  %v700 = vpop.f32.mrb[0].mxu0
  %701 = vmatprep.mubr.f32.mxu0 0.0
  %702 = vmatmul.mubr.f32.gmra.mrb[0].mxu0 %v332
  %v703 = vpop.f32.mrb[0].mxu0
  %v704 = vadd.f32 %v158, %v703
  %v705 = vpop.f32.mrb[0].mxu0
  %706 = vmatprep.mubr.f32.mxu0 0.0
  %707 = vmatmul.mubr.f32.gmra.mrb[0].mxu0 %v335
  %v708 = vpop.f32.mrb[0].mxu0
  %v709 = vadd.f32 %v158, %v708
  %v710 = vpop.f32.mrb[0].mxu0
  %711 = vmatprep.mubr.f32.mxu0 0.0
  %712 = vmatmul.mubr.f32.gmra.mrb[0].mxu0 %v338
  %v713 = vpop.f32.mrb[0].mxu0
  %v714 = vadd.f32 %v158, %v713
  %v715 = vpop.f32.mrb[0].mxu0
  %716 = vmatprep.mubr.f32.mxu0 0.0
  %717 = vmatmul.mubr.f32.gmra.mrb[0].mxu0 %v341
  %v718 = vpop.f32.mrb[0].mxu0
  %v719 = vadd.f32 %v158, %v718
  %v720 = vpop.f32.mrb[0].mxu0
  %721 = vmatprep.mubr.f32.mxu0 0.0
  %722 = vmatmul.mubr.f32.gmra.mrb[0].mxu0 %v344
  %v723 = vpop.f32.mrb[0].mxu0
  %v724 = vadd.f32 %v158, %v723
  %v725 = vpop.f32.mrb[0].mxu0
  %726 = vmatprep.mubr.f32.mxu0 0.0
  %727 = vmatmul.mubr.f32.gmra.mrb[0].mxu0 %v347
  %v728 = vpop.f32.mrb[0].mxu0
  %v729 = vadd.f32 %v158, %v728
  %v730 = vpop.f32.mrb[0].mxu0
  %731 = vmatprep.mubr.f32.mxu0 0.0
  %732 = vmatmul.mubr.f32.gmra.mrb[0].mxu0 %v350
  %v733 = vpop.f32.mrb[0].mxu0
  %v734 = vadd.f32 %v158, %v733
  %v735 = vpop.f32.mrb[0].mxu0
  %736 = vdwg.mxu0
  %v737 = vtanh.pop %v419
  %v738 = vtanh.pop %v424
  %v739 = vtanh.pop %v429
  %v740 = vtanh.pop %v434
  %v741 = vtanh.pop %v439
  %v742 = vtanh.pop %v444
  %v743 = vtanh.pop %v449
  %v744 = vtanh.pop %v454
  %v745 = vtanh.pop %v459
  %v746 = vtanh.pop %v464
  %v747 = vtanh.pop %v469
  %v748 = vtanh.pop %v474
  %v749 = vtanh.pop %v479
  %v750 = vtanh.pop %v484
  %v751 = vtanh.pop %v489
  %v752 = vtanh.pop %v494
  %v753 = vtanh.pop %v499
  %v754 = vtanh.pop %v504
  %v755 = vtanh.pop %v509
  %v756 = vtanh.pop %v514
  %v757 = vtanh.pop %v519
  %v758 = vtanh.pop %v524
  %v759 = vtanh.pop %v529
  %v760 = vtanh.pop %v534
  %v761 = vtanh.pop %v539
  %v762 = vtanh.pop %v544
  %v763 = vtanh.pop %v549
  %v764 = vtanh.pop %v554
  %v765 = vtanh.pop %v559
  %v766 = vtanh.pop %v564
  %v767 = vtanh.pop %v569
  %v768 = vtanh.pop %v574
  %v769 = vtanh.pop %v579
  %v770 = vtanh.pop %v584
  %v771 = vtanh.pop %v589
  %v772 = vtanh.pop %v594
  %v773 = vtanh.pop %v599
  %v774 = vtanh.pop %v604
  %v775 = vtanh.pop %v609
  %v776 = vtanh.pop %v614
  %v777 = vtanh.pop %v619
  %v778 = vtanh.pop %v624
  %v779 = vtanh.pop %v629
  %v780 = vtanh.pop %v634
  %v781 = vtanh.pop %v639
  %v782 = vtanh.pop %v644
  %v783 = vtanh.pop %v649
  %v784 = vtanh.pop %v654
  %v785 = vtanh.pop %v659
  %v786 = vtanh.pop %v664
  %v787 = vtanh.pop %v669
  %v788 = vtanh.pop %v674
  %v789 = vtanh.pop %v679
  %v790 = vtanh.pop %v684
  %v791 = vtanh.pop %v689
  %v792 = vtanh.pop %v694
  %v793 = vtanh.pop %v699
  %v794 = vtanh.pop %v704
  %v795 = vtanh.pop %v709
  %v796 = vtanh.pop %v714
  %v797 = vtanh.pop %v719
  %v798 = vtanh.pop %v724
  %v799 = vtanh.pop %v729
  %v800 = vtanh.pop %v734
  %v801 = vlaneseq
  %v802 = vshrl.u32 %v801, 7
  %v803 = vsub.s32 0, %v802
  %v804 = vrot.slane %v152, %v803
  %809 = vrot.lane.b32.xlu0 %v142, 96
  %v810 = vpop.permute.xlu0 %809
  %811 = vrot.lane.b32.xlu0 %v143, 96
  %v812 = vpop.permute.xlu0 %811
  %813 = vrot.lane.b32.xlu0 %v144, 96
  %v814 = vpop.permute.xlu0 %813
  %815 = vrot.lane.b32.xlu0 %v147, 96
  %v816 = vpop.permute.xlu0 %815
  %822 = vrot.lane.b32.xlu0 %v804, 96
  %v823 = vpop.permute.xlu0 %822
  %vm825 = vcmask 261120
  %v827 = vsel %vm825, %v737, 0
  %v830 = vsel %vm825, %v738, 0
  %v833 = vsel %vm825, %v739, 0
  %v836 = vsel %vm825, %v740, 0
  %v839 = vsel %vm825, %v741, 0
  %v842 = vsel %vm825, %v742, 0
  %v845 = vsel %vm825, %v743, 0
  %v848 = vsel %vm825, %v744, 0
  %v851 = vsel %vm825, %v745, 0
  %v854 = vsel %vm825, %v746, 0
  %v857 = vsel %vm825, %v747, 0
  %v860 = vsel %vm825, %v748, 0
  %v863 = vsel %vm825, %v749, 0
  %v866 = vsel %vm825, %v750, 0
  %v869 = vsel %vm825, %v751, 0
  %v872 = vsel %vm825, %v752, 0
  %v875 = vsel %vm825, %v753, 0
  %v878 = vsel %vm825, %v754, 0
  %v881 = vsel %vm825, %v755, 0
  %v884 = vsel %vm825, %v756, 0
  %v887 = vsel %vm825, %v757, 0
  %v890 = vsel %vm825, %v758, 0
  %v893 = vsel %vm825, %v759, 0
  %v896 = vsel %vm825, %v760, 0
  %v899 = vsel %vm825, %v761, 0
  %v902 = vsel %vm825, %v762, 0
  %v905 = vsel %vm825, %v763, 0
  %v908 = vsel %vm825, %v764, 0
  %v911 = vsel %vm825, %v765, 0
  %v914 = vsel %vm825, %v766, 0
  %v917 = vsel %vm825, %v767, 0
  %v920 = vsel %vm825, %v768, 0
  %v923 = vsel %vm825, %v769, 0
  %v926 = vsel %vm825, %v770, 0
  %v929 = vsel %vm825, %v771, 0
  %v932 = vsel %vm825, %v772, 0
  %v935 = vsel %vm825, %v773, 0
  %v938 = vsel %vm825, %v774, 0
  %v941 = vsel %vm825, %v775, 0
  %v944 = vsel %vm825, %v776, 0
  %v947 = vsel %vm825, %v777, 0
  %v950 = vsel %vm825, %v778, 0
  %v953 = vsel %vm825, %v779, 0
  %v956 = vsel %vm825, %v780, 0
  %v959 = vsel %vm825, %v781, 0
  %v962 = vsel %vm825, %v782, 0
  %v965 = vsel %vm825, %v783, 0
  %v968 = vsel %vm825, %v784, 0
  %v971 = vsel %vm825, %v785, 0
  %v974 = vsel %vm825, %v786, 0
  %v977 = vsel %vm825, %v787, 0
  %v980 = vsel %vm825, %v788, 0
  %v983 = vsel %vm825, %v789, 0
  %v986 = vsel %vm825, %v790, 0
  %v989 = vsel %vm825, %v791, 0
  %v992 = vsel %vm825, %v792, 0
  %v995 = vsel %vm825, %v793, 0
  %v998 = vsel %vm825, %v794, 0
  %v1001 = vsel %vm825, %v795, 0
  %v1004 = vsel %vm825, %v796, 0
  %v1007 = vsel %vm825, %v797, 0
  %v1010 = vsel %vm825, %v798, 0
  %v1013 = vsel %vm825, %v799, 0
  %v1016 = vsel %vm825, %v800, 0
  %1018 = vmatprep.subr.mxu0 0.0
  %1019 = vmatpush1.msra.mxu0 %v810
  %1020 = vmatprep.subr.mxu0 0.0
  %1021 = vmatpush1.msra.mxu0 %v812
  %1022 = vmatprep.subr.mxu0 0.0
  %1023 = vmatpush1.msra.mxu0 %v814
  %1024 = vmatprep.subr.mxu0 0.0
  %1025 = vmatpush1.msra.mxu0 %v816
  %1026 = vmatprep.subr.mxu0 0.0
  %1027 = vmatpush1.msra.mxu0 0.0
  %1028 = vmatprep.subr.mxu0 0.0
  %1029 = vmatpush1.msra.mxu0 0.0
  %1030 = vmatprep.subr.mxu0 0.0
  %1031 = vmatpush1.msra.mxu0 0.0
  %1032 = vmatprep.subr.mxu0 0.0
  %1033 = vmatpush1.msra.mxu0 0.0
  %1034 = vmatprep.subr.mxu0 0.0
  %1035 = vmatpush1.msra.mxu0 0.0
  %1036 = vmatprep.subr.mxu0 0.0
  %1037 = vmatpush1.msra.mxu0 0.0
  %1038 = vmatprep.subr.mxu0 0.0
  %1039 = vmatpush1.msra.mxu0 0.0
  %1040 = vmatprep.subr.mxu0 0.0
  %1041 = vmatpush1.msra.mxu0 0.0
  %1042 = vmatprep.subr.mxu0 0.0
  %1043 = vmatpush1.msra.mxu0 0.0
  %1044 = vmatprep.subr.mxu0 0.0
  %1045 = vmatpush1.msra.mxu0 0.0
  %1046 = vmatprep.subr.mxu0 0.0
  %1047 = vmatpush1.msra.mxu0 0.0
  %1048 = vmatprep.subr.mxu0 0.0
  %1049 = vmatpush1.msra.mxu0 0.0
  %1050 = vmatprep.subr.mxu0 0.0
  %1051 = vmatpush1.msra.mxu0 0.0
  %1052 = vmatprep.subr.mxu0 0.0
  %1053 = vmatpush1.msra.mxu0 0.0
  %1054 = vmatprep.subr.mxu0 0.0
  %1055 = vmatpush1.msra.mxu0 0.0
  %1056 = vmatprep.subr.mxu0 0.0
  %1057 = vmatpush1.msra.mxu0 0.0
  %1058 = vmatprep.subr.mxu0 0.0
  %1059 = vmatpush1.msra.mxu0 0.0
  %1060 = vmatprep.subr.mxu0 0.0
  %1061 = vmatpush1.msra.mxu0 0.0
  %1062 = vmatprep.subr.mxu0 0.0
  %1063 = vmatpush1.msra.mxu0 0.0
  %1064 = vmatprep.subr.mxu0 0.0
  %1065 = vmatpush1.msra.mxu0 0.0
  %1066 = vmatprep.subr.mxu0 0.0
  %1067 = vmatpush1.msra.mxu0 0.0
  %1068 = vmatprep.subr.mxu0 0.0
  %1069 = vmatpush1.msra.mxu0 0.0
  %1070 = vmatprep.subr.mxu0 0.0
  %1071 = vmatpush1.msra.mxu0 0.0
  %1072 = vmatprep.subr.mxu0 0.0
  %1073 = vmatpush1.msra.mxu0 0.0
  %1074 = vmatprep.subr.mxu0 0.0
  %1075 = vmatpush1.msra.mxu0 0.0
  %1076 = vmatprep.subr.mxu0 0.0
  %1077 = vmatpush1.msra.mxu0 0.0
  %1078 = vmatprep.subr.mxu0 0.0
  %1079 = vmatpush1.msra.mxu0 0.0
  %1080 = vmatprep.subr.mxu0 0.0
  %1081 = vmatpush1.msra.mxu0 0.0
  %1082 = vmatprep.mubr.f32.mxu0 0.0
  %1083 = vmatmul.mubr.f32.gmra.mrb[0].mxu0 %v827
  %v1084 = vpop.f32.mrb[0].mxu0
  %v1085 = vadd.f32 %v823, %v1084
  %v1086 = vpop.f32.mrb[0].mxu0
  %1087 = vmatprep.mubr.f32.mxu0 0.0
  %1088 = vmatmul.mubr.f32.gmra.mrb[0].mxu0 %v830
  %v1089 = vpop.f32.mrb[0].mxu0
  %v1090 = vadd.f32 %v823, %v1089
  %v1091 = vpop.f32.mrb[0].mxu0
  %1092 = vmatprep.mubr.f32.mxu0 0.0
  %1093 = vmatmul.mubr.f32.gmra.mrb[0].mxu0 %v833
  %v1094 = vpop.f32.mrb[0].mxu0
  %v1095 = vadd.f32 %v823, %v1094
  %v1096 = vpop.f32.mrb[0].mxu0
  %1097 = vmatprep.mubr.f32.mxu0 0.0
  %1098 = vmatmul.mubr.f32.gmra.mrb[0].mxu0 %v836
  %v1099 = vpop.f32.mrb[0].mxu0
  %v1100 = vadd.f32 %v823, %v1099
  %v1101 = vpop.f32.mrb[0].mxu0
  %1102 = vmatprep.mubr.f32.mxu0 0.0
  %1103 = vmatmul.mubr.f32.gmra.mrb[0].mxu0 %v839
  %v1104 = vpop.f32.mrb[0].mxu0
  %v1105 = vadd.f32 %v823, %v1104
  %v1106 = vpop.f32.mrb[0].mxu0
  %1107 = vmatprep.mubr.f32.mxu0 0.0
  %1108 = vmatmul.mubr.f32.gmra.mrb[0].mxu0 %v842
  %v1109 = vpop.f32.mrb[0].mxu0
  %v1110 = vadd.f32 %v823, %v1109
  %v1111 = vpop.f32.mrb[0].mxu0
  %1112 = vmatprep.mubr.f32.mxu0 0.0
  %1113 = vmatmul.mubr.f32.gmra.mrb[0].mxu0 %v845
  %v1114 = vpop.f32.mrb[0].mxu0
  %v1115 = vadd.f32 %v823, %v1114
  %v1116 = vpop.f32.mrb[0].mxu0
  %1117 = vmatprep.mubr.f32.mxu0 0.0
  %1118 = vmatmul.mubr.f32.gmra.mrb[0].mxu0 %v848
  %v1119 = vpop.f32.mrb[0].mxu0
  %v1120 = vadd.f32 %v823, %v1119
  %v1121 = vpop.f32.mrb[0].mxu0
  %1122 = vmatprep.mubr.f32.mxu0 0.0
  %1123 = vmatmul.mubr.f32.gmra.mrb[0].mxu0 %v851
  %v1124 = vpop.f32.mrb[0].mxu0
  %v1125 = vadd.f32 %v823, %v1124
  %v1126 = vpop.f32.mrb[0].mxu0
  %1127 = vmatprep.mubr.f32.mxu0 0.0
  %1128 = vmatmul.mubr.f32.gmra.mrb[0].mxu0 %v854
  %v1129 = vpop.f32.mrb[0].mxu0
  %v1130 = vadd.f32 %v823, %v1129
  %v1131 = vpop.f32.mrb[0].mxu0
  %1132 = vmatprep.mubr.f32.mxu0 0.0
  %1133 = vmatmul.mubr.f32.gmra.mrb[0].mxu0 %v857
  %v1134 = vpop.f32.mrb[0].mxu0
  %v1135 = vadd.f32 %v823, %v1134
  %v1136 = vpop.f32.mrb[0].mxu0
  %1137 = vmatprep.mubr.f32.mxu0 0.0
  %1138 = vmatmul.mubr.f32.gmra.mrb[0].mxu0 %v860
  %v1139 = vpop.f32.mrb[0].mxu0
  %v1140 = vadd.f32 %v823, %v1139
  %v1141 = vpop.f32.mrb[0].mxu0
  %1142 = vmatprep.mubr.f32.mxu0 0.0
  %1143 = vmatmul.mubr.f32.gmra.mrb[0].mxu0 %v863
  %v1144 = vpop.f32.mrb[0].mxu0
  %v1145 = vadd.f32 %v823, %v1144
  %v1146 = vpop.f32.mrb[0].mxu0
  %1147 = vmatprep.mubr.f32.mxu0 0.0
  %1148 = vmatmul.mubr.f32.gmra.mrb[0].mxu0 %v866
  %v1149 = vpop.f32.mrb[0].mxu0
  %v1150 = vadd.f32 %v823, %v1149
  %v1151 = vpop.f32.mrb[0].mxu0
  %1152 = vmatprep.mubr.f32.mxu0 0.0
  %1153 = vmatmul.mubr.f32.gmra.mrb[0].mxu0 %v869
  %v1154 = vpop.f32.mrb[0].mxu0
  %v1155 = vadd.f32 %v823, %v1154
  %v1156 = vpop.f32.mrb[0].mxu0
  %1157 = vmatprep.mubr.f32.mxu0 0.0
  %1158 = vmatmul.mubr.f32.gmra.mrb[0].mxu0 %v872
  %v1159 = vpop.f32.mrb[0].mxu0
  %v1160 = vadd.f32 %v823, %v1159
  %v1161 = vpop.f32.mrb[0].mxu0
  %1162 = vmatprep.mubr.f32.mxu0 0.0
  %1163 = vmatmul.mubr.f32.gmra.mrb[0].mxu0 %v875
  %v1164 = vpop.f32.mrb[0].mxu0
  %v1165 = vadd.f32 %v823, %v1164
  %v1166 = vpop.f32.mrb[0].mxu0
  %1167 = vmatprep.mubr.f32.mxu0 0.0
  %1168 = vmatmul.mubr.f32.gmra.mrb[0].mxu0 %v878
  %v1169 = vpop.f32.mrb[0].mxu0
  %v1170 = vadd.f32 %v823, %v1169
  %v1171 = vpop.f32.mrb[0].mxu0
  %1172 = vmatprep.mubr.f32.mxu0 0.0
  %1173 = vmatmul.mubr.f32.gmra.mrb[0].mxu0 %v881
  %v1174 = vpop.f32.mrb[0].mxu0
  %v1175 = vadd.f32 %v823, %v1174
  %v1176 = vpop.f32.mrb[0].mxu0
  %1177 = vmatprep.mubr.f32.mxu0 0.0
  %1178 = vmatmul.mubr.f32.gmra.mrb[0].mxu0 %v884
  %v1179 = vpop.f32.mrb[0].mxu0
  %v1180 = vadd.f32 %v823, %v1179
  %v1181 = vpop.f32.mrb[0].mxu0
  %1182 = vmatprep.mubr.f32.mxu0 0.0
  %1183 = vmatmul.mubr.f32.gmra.mrb[0].mxu0 %v887
  %v1184 = vpop.f32.mrb[0].mxu0
  %v1185 = vadd.f32 %v823, %v1184
  %v1186 = vpop.f32.mrb[0].mxu0
  %1187 = vmatprep.mubr.f32.mxu0 0.0
  %1188 = vmatmul.mubr.f32.gmra.mrb[0].mxu0 %v890
  %v1189 = vpop.f32.mrb[0].mxu0
  %v1190 = vadd.f32 %v823, %v1189
  %v1191 = vpop.f32.mrb[0].mxu0
  %1192 = vmatprep.mubr.f32.mxu0 0.0
  %1193 = vmatmul.mubr.f32.gmra.mrb[0].mxu0 %v893
  %v1194 = vpop.f32.mrb[0].mxu0
  %v1195 = vadd.f32 %v823, %v1194
  %v1196 = vpop.f32.mrb[0].mxu0
  %1197 = vmatprep.mubr.f32.mxu0 0.0
  %1198 = vmatmul.mubr.f32.gmra.mrb[0].mxu0 %v896
  %v1199 = vpop.f32.mrb[0].mxu0
  %v1200 = vadd.f32 %v823, %v1199
  %v1201 = vpop.f32.mrb[0].mxu0
  %1202 = vmatprep.mubr.f32.mxu0 0.0
  %1203 = vmatmul.mubr.f32.gmra.mrb[0].mxu0 %v899
  %v1204 = vpop.f32.mrb[0].mxu0
  %v1205 = vadd.f32 %v823, %v1204
  %v1206 = vpop.f32.mrb[0].mxu0
  %1207 = vmatprep.mubr.f32.mxu0 0.0
  %1208 = vmatmul.mubr.f32.gmra.mrb[0].mxu0 %v902
  %v1209 = vpop.f32.mrb[0].mxu0
  %v1210 = vadd.f32 %v823, %v1209
  %v1211 = vpop.f32.mrb[0].mxu0
  %1212 = vmatprep.mubr.f32.mxu0 0.0
  %1213 = vmatmul.mubr.f32.gmra.mrb[0].mxu0 %v905
  %v1214 = vpop.f32.mrb[0].mxu0
  %v1215 = vadd.f32 %v823, %v1214
  %v1216 = vpop.f32.mrb[0].mxu0
  %1217 = vmatprep.mubr.f32.mxu0 0.0
  %1218 = vmatmul.mubr.f32.gmra.mrb[0].mxu0 %v908
  %v1219 = vpop.f32.mrb[0].mxu0
  %v1220 = vadd.f32 %v823, %v1219
  %v1221 = vpop.f32.mrb[0].mxu0
  %1222 = vmatprep.mubr.f32.mxu0 0.0
  %1223 = vmatmul.mubr.f32.gmra.mrb[0].mxu0 %v911
  %v1224 = vpop.f32.mrb[0].mxu0
  %v1225 = vadd.f32 %v823, %v1224
  %v1226 = vpop.f32.mrb[0].mxu0
  %1227 = vmatprep.mubr.f32.mxu0 0.0
  %1228 = vmatmul.mubr.f32.gmra.mrb[0].mxu0 %v914
  %v1229 = vpop.f32.mrb[0].mxu0
  %v1230 = vadd.f32 %v823, %v1229
  %v1231 = vpop.f32.mrb[0].mxu0
  %1232 = vmatprep.mubr.f32.mxu0 0.0
  %1233 = vmatmul.mubr.f32.gmra.mrb[0].mxu0 %v917
  %v1234 = vpop.f32.mrb[0].mxu0
  %v1235 = vadd.f32 %v823, %v1234
  %v1236 = vpop.f32.mrb[0].mxu0
  %1237 = vmatprep.mubr.f32.mxu0 0.0
  %1238 = vmatmul.mubr.f32.gmra.mrb[0].mxu0 %v920
  %v1239 = vpop.f32.mrb[0].mxu0
  %v1240 = vadd.f32 %v823, %v1239
  %v1241 = vpop.f32.mrb[0].mxu0
  %1242 = vmatprep.mubr.f32.mxu0 0.0
  %1243 = vmatmul.mubr.f32.gmra.mrb[0].mxu0 %v923
  %v1244 = vpop.f32.mrb[0].mxu0
  %v1245 = vadd.f32 %v823, %v1244
  %v1246 = vpop.f32.mrb[0].mxu0
  %1247 = vmatprep.mubr.f32.mxu0 0.0
  %1248 = vmatmul.mubr.f32.gmra.mrb[0].mxu0 %v926
  %v1249 = vpop.f32.mrb[0].mxu0
  %v1250 = vadd.f32 %v823, %v1249
  %v1251 = vpop.f32.mrb[0].mxu0
  %1252 = vmatprep.mubr.f32.mxu0 0.0
  %1253 = vmatmul.mubr.f32.gmra.mrb[0].mxu0 %v929
  %v1254 = vpop.f32.mrb[0].mxu0
  %v1255 = vadd.f32 %v823, %v1254
  %v1256 = vpop.f32.mrb[0].mxu0
  %1257 = vmatprep.mubr.f32.mxu0 0.0
  %1258 = vmatmul.mubr.f32.gmra.mrb[0].mxu0 %v932
  %v1259 = vpop.f32.mrb[0].mxu0
  %v1260 = vadd.f32 %v823, %v1259
  %v1261 = vpop.f32.mrb[0].mxu0
  %1262 = vmatprep.mubr.f32.mxu0 0.0
  %1263 = vmatmul.mubr.f32.gmra.mrb[0].mxu0 %v935
  %v1264 = vpop.f32.mrb[0].mxu0
  %v1265 = vadd.f32 %v823, %v1264
  %v1266 = vpop.f32.mrb[0].mxu0
  %1267 = vmatprep.mubr.f32.mxu0 0.0
  %1268 = vmatmul.mubr.f32.gmra.mrb[0].mxu0 %v938
  %v1269 = vpop.f32.mrb[0].mxu0
  %v1270 = vadd.f32 %v823, %v1269
  %v1271 = vpop.f32.mrb[0].mxu0
  %1272 = vmatprep.mubr.f32.mxu0 0.0
  %1273 = vmatmul.mubr.f32.gmra.mrb[0].mxu0 %v941
  %v1274 = vpop.f32.mrb[0].mxu0
  %v1275 = vadd.f32 %v823, %v1274
  %v1276 = vpop.f32.mrb[0].mxu0
  %1277 = vmatprep.mubr.f32.mxu0 0.0
  %1278 = vmatmul.mubr.f32.gmra.mrb[0].mxu0 %v944
  %v1279 = vpop.f32.mrb[0].mxu0
  %v1280 = vadd.f32 %v823, %v1279
  %v1281 = vpop.f32.mrb[0].mxu0
  %1282 = vmatprep.mubr.f32.mxu0 0.0
  %1283 = vmatmul.mubr.f32.gmra.mrb[0].mxu0 %v947
  %v1284 = vpop.f32.mrb[0].mxu0
  %v1285 = vadd.f32 %v823, %v1284
  %v1286 = vpop.f32.mrb[0].mxu0
  %1287 = vmatprep.mubr.f32.mxu0 0.0
  %1288 = vmatmul.mubr.f32.gmra.mrb[0].mxu0 %v950
  %v1289 = vpop.f32.mrb[0].mxu0
  %v1290 = vadd.f32 %v823, %v1289
  %v1291 = vpop.f32.mrb[0].mxu0
  %1292 = vmatprep.mubr.f32.mxu0 0.0
  %1293 = vmatmul.mubr.f32.gmra.mrb[0].mxu0 %v953
  %v1294 = vpop.f32.mrb[0].mxu0
  %v1295 = vadd.f32 %v823, %v1294
  %v1296 = vpop.f32.mrb[0].mxu0
  %1297 = vmatprep.mubr.f32.mxu0 0.0
  %1298 = vmatmul.mubr.f32.gmra.mrb[0].mxu0 %v956
  %v1299 = vpop.f32.mrb[0].mxu0
  %v1300 = vadd.f32 %v823, %v1299
  %v1301 = vpop.f32.mrb[0].mxu0
  %1302 = vmatprep.mubr.f32.mxu0 0.0
  %1303 = vmatmul.mubr.f32.gmra.mrb[0].mxu0 %v959
  %v1304 = vpop.f32.mrb[0].mxu0
  %v1305 = vadd.f32 %v823, %v1304
  %v1306 = vpop.f32.mrb[0].mxu0
  %1307 = vmatprep.mubr.f32.mxu0 0.0
  %1308 = vmatmul.mubr.f32.gmra.mrb[0].mxu0 %v962
  %v1309 = vpop.f32.mrb[0].mxu0
  %v1310 = vadd.f32 %v823, %v1309
  %v1311 = vpop.f32.mrb[0].mxu0
  %1312 = vmatprep.mubr.f32.mxu0 0.0
  %1313 = vmatmul.mubr.f32.gmra.mrb[0].mxu0 %v965
  %v1314 = vpop.f32.mrb[0].mxu0
  %v1315 = vadd.f32 %v823, %v1314
  %v1316 = vpop.f32.mrb[0].mxu0
  %1317 = vmatprep.mubr.f32.mxu0 0.0
  %1318 = vmatmul.mubr.f32.gmra.mrb[0].mxu0 %v968
  %v1319 = vpop.f32.mrb[0].mxu0
  %v1320 = vadd.f32 %v823, %v1319
  %v1321 = vpop.f32.mrb[0].mxu0
  %1322 = vmatprep.mubr.f32.mxu0 0.0
  %1323 = vmatmul.mubr.f32.gmra.mrb[0].mxu0 %v971
  %v1324 = vpop.f32.mrb[0].mxu0
  %v1325 = vadd.f32 %v823, %v1324
  %v1326 = vpop.f32.mrb[0].mxu0
  %1327 = vmatprep.mubr.f32.mxu0 0.0
  %1328 = vmatmul.mubr.f32.gmra.mrb[0].mxu0 %v974
  %v1329 = vpop.f32.mrb[0].mxu0
  %v1330 = vadd.f32 %v823, %v1329
  %v1331 = vpop.f32.mrb[0].mxu0
  %1332 = vmatprep.mubr.f32.mxu0 0.0
  %1333 = vmatmul.mubr.f32.gmra.mrb[0].mxu0 %v977
  %v1334 = vpop.f32.mrb[0].mxu0
  %v1335 = vadd.f32 %v823, %v1334
  %v1336 = vpop.f32.mrb[0].mxu0
  %1337 = vmatprep.mubr.f32.mxu0 0.0
  %1338 = vmatmul.mubr.f32.gmra.mrb[0].mxu0 %v980
  %v1339 = vpop.f32.mrb[0].mxu0
  %v1340 = vadd.f32 %v823, %v1339
  %v1341 = vpop.f32.mrb[0].mxu0
  %1342 = vmatprep.mubr.f32.mxu0 0.0
  %1343 = vmatmul.mubr.f32.gmra.mrb[0].mxu0 %v983
  %v1344 = vpop.f32.mrb[0].mxu0
  %v1345 = vadd.f32 %v823, %v1344
  %v1346 = vpop.f32.mrb[0].mxu0
  %1347 = vmatprep.mubr.f32.mxu0 0.0
  %1348 = vmatmul.mubr.f32.gmra.mrb[0].mxu0 %v986
  %v1349 = vpop.f32.mrb[0].mxu0
  %v1350 = vadd.f32 %v823, %v1349
  %v1351 = vpop.f32.mrb[0].mxu0
  %1352 = vmatprep.mubr.f32.mxu0 0.0
  %1353 = vmatmul.mubr.f32.gmra.mrb[0].mxu0 %v989
  %v1354 = vpop.f32.mrb[0].mxu0
  %v1355 = vadd.f32 %v823, %v1354
  %v1356 = vpop.f32.mrb[0].mxu0
  %1357 = vmatprep.mubr.f32.mxu0 0.0
  %1358 = vmatmul.mubr.f32.gmra.mrb[0].mxu0 %v992
  %v1359 = vpop.f32.mrb[0].mxu0
  %v1360 = vadd.f32 %v823, %v1359
  %v1361 = vpop.f32.mrb[0].mxu0
  %1362 = vmatprep.mubr.f32.mxu0 0.0
  %1363 = vmatmul.mubr.f32.gmra.mrb[0].mxu0 %v995
  %v1364 = vpop.f32.mrb[0].mxu0
  %v1365 = vadd.f32 %v823, %v1364
  %v1366 = vpop.f32.mrb[0].mxu0
  %1367 = vmatprep.mubr.f32.mxu0 0.0
  %1368 = vmatmul.mubr.f32.gmra.mrb[0].mxu0 %v998
  %v1369 = vpop.f32.mrb[0].mxu0
  %v1370 = vadd.f32 %v823, %v1369
  %v1371 = vpop.f32.mrb[0].mxu0
  %1372 = vmatprep.mubr.f32.mxu0 0.0
  %1373 = vmatmul.mubr.f32.gmra.mrb[0].mxu0 %v1001
  %v1374 = vpop.f32.mrb[0].mxu0
  %v1375 = vadd.f32 %v823, %v1374
  %v1376 = vpop.f32.mrb[0].mxu0
  %1377 = vmatprep.mubr.f32.mxu0 0.0
  %1378 = vmatmul.mubr.f32.gmra.mrb[0].mxu0 %v1004
  %v1379 = vpop.f32.mrb[0].mxu0
  %v1380 = vadd.f32 %v823, %v1379
  %v1381 = vpop.f32.mrb[0].mxu0
  %1382 = vmatprep.mubr.f32.mxu0 0.0
  %1383 = vmatmul.mubr.f32.gmra.mrb[0].mxu0 %v1007
  %v1384 = vpop.f32.mrb[0].mxu0
  %v1385 = vadd.f32 %v823, %v1384
  %v1386 = vpop.f32.mrb[0].mxu0
  %1387 = vmatprep.mubr.f32.mxu0 0.0
  %1388 = vmatmul.mubr.f32.gmra.mrb[0].mxu0 %v1010
  %v1389 = vpop.f32.mrb[0].mxu0
  %v1390 = vadd.f32 %v823, %v1389
  %v1391 = vpop.f32.mrb[0].mxu0
  %1392 = vmatprep.mubr.f32.mxu0 0.0
  %1393 = vmatmul.mubr.f32.gmra.mrb[0].mxu0 %v1013
  %v1394 = vpop.f32.mrb[0].mxu0
  %v1395 = vadd.f32 %v823, %v1394
  %v1396 = vpop.f32.mrb[0].mxu0
  %1397 = vmatprep.mubr.f32.mxu0 0.0
  %1398 = vmatmul.mubr.f32.gmra.mrb[0].mxu0 %v1016
  %v1399 = vpop.f32.mrb[0].mxu0
  %v1400 = vadd.f32 %v823, %v1399
  %v1401 = vpop.f32.mrb[0].mxu0
  %1402 = vdwg.mxu0
  %vm1403 = vcmask 130048
  %1404 = vst.msk [vmem:[%s3] sm:$0xff] %vm1403, %v1085
  %1405 = vst.msk [vmem:[%s3 + $0x8] sm:$0xff] %vm1403, %v1090
  %1406 = vst.msk [vmem:[%s3 + $0x10] sm:$0xff] %vm1403, %v1095
  %1407 = vst.msk [vmem:[%s3 + $0x18] sm:$0xff] %vm1403, %v1100
  %1408 = vst.msk [vmem:[%s3 + $0x20] sm:$0xff] %vm1403, %v1105
  %1409 = vst.msk [vmem:[%s3 + $0x28] sm:$0xff] %vm1403, %v1110
  %1410 = vst.msk [vmem:[%s3 + $0x30] sm:$0xff] %vm1403, %v1115
  %1411 = vst.msk [vmem:[%s3 + $0x38] sm:$0xff] %vm1403, %v1120
  %1412 = vst.msk [vmem:[%s3 + $0x40] sm:$0xff] %vm1403, %v1125
  %1413 = vst.msk [vmem:[%s3 + $0x48] sm:$0xff] %vm1403, %v1130
  %1414 = vst.msk [vmem:[%s3 + $0x50] sm:$0xff] %vm1403, %v1135
  %1415 = vst.msk [vmem:[%s3 + $0x58] sm:$0xff] %vm1403, %v1140
  %1416 = vst.msk [vmem:[%s3 + $0x60] sm:$0xff] %vm1403, %v1145
  %1417 = vst.msk [vmem:[%s3 + $0x68] sm:$0xff] %vm1403, %v1150
  %1418 = vst.msk [vmem:[%s3 + $0x70] sm:$0xff] %vm1403, %v1155
  %1419 = vst.msk [vmem:[%s3 + $0x78] sm:$0xff] %vm1403, %v1160
  %1420 = vst.msk [vmem:[%s3 + $0x80] sm:$0xff] %vm1403, %v1165
  %1421 = vst.msk [vmem:[%s3 + $0x88] sm:$0xff] %vm1403, %v1170
  %1422 = vst.msk [vmem:[%s3 + $0x90] sm:$0xff] %vm1403, %v1175
  %1423 = vst.msk [vmem:[%s3 + $0x98] sm:$0xff] %vm1403, %v1180
  %1424 = vst.msk [vmem:[%s3 + $0xa0] sm:$0xff] %vm1403, %v1185
  %1425 = vst.msk [vmem:[%s3 + $0xa8] sm:$0xff] %vm1403, %v1190
  %1426 = vst.msk [vmem:[%s3 + $0xb0] sm:$0xff] %vm1403, %v1195
  %1427 = vst.msk [vmem:[%s3 + $0xb8] sm:$0xff] %vm1403, %v1200
  %1428 = vst.msk [vmem:[%s3 + $0xc0] sm:$0xff] %vm1403, %v1205
  %1429 = vst.msk [vmem:[%s3 + $0xc8] sm:$0xff] %vm1403, %v1210
  %1430 = vst.msk [vmem:[%s3 + $0xd0] sm:$0xff] %vm1403, %v1215
  %1431 = vst.msk [vmem:[%s3 + $0xd8] sm:$0xff] %vm1403, %v1220
  %1432 = vst.msk [vmem:[%s3 + $0xe0] sm:$0xff] %vm1403, %v1225
  %1433 = vst.msk [vmem:[%s3 + $0xe8] sm:$0xff] %vm1403, %v1230
  %1434 = vst.msk [vmem:[%s3 + $0xf0] sm:$0xff] %vm1403, %v1235
  %1435 = vst.msk [vmem:[%s3 + $0xf8] sm:$0xff] %vm1403, %v1240
  %1436 = vst.msk [vmem:[%s3 + $0x100] sm:$0xff] %vm1403, %v1245
  %1437 = vst.msk [vmem:[%s3 + $0x108] sm:$0xff] %vm1403, %v1250
  %1438 = vst.msk [vmem:[%s3 + $0x110] sm:$0xff] %vm1403, %v1255
  %1439 = vst.msk [vmem:[%s3 + $0x118] sm:$0xff] %vm1403, %v1260
  %1440 = vst.msk [vmem:[%s3 + $0x120] sm:$0xff] %vm1403, %v1265
  %1441 = vst.msk [vmem:[%s3 + $0x128] sm:$0xff] %vm1403, %v1270
  %1442 = vst.msk [vmem:[%s3 + $0x130] sm:$0xff] %vm1403, %v1275
  %1443 = vst.msk [vmem:[%s3 + $0x138] sm:$0xff] %vm1403, %v1280
  %1444 = vst.msk [vmem:[%s3 + $0x140] sm:$0xff] %vm1403, %v1285
  %1445 = vst.msk [vmem:[%s3 + $0x148] sm:$0xff] %vm1403, %v1290
  %1446 = vst.msk [vmem:[%s3 + $0x150] sm:$0xff] %vm1403, %v1295
  %1447 = vst.msk [vmem:[%s3 + $0x158] sm:$0xff] %vm1403, %v1300
  %1448 = vst.msk [vmem:[%s3 + $0x160] sm:$0xff] %vm1403, %v1305
  %1449 = vst.msk [vmem:[%s3 + $0x168] sm:$0xff] %vm1403, %v1310
  %1450 = vst.msk [vmem:[%s3 + $0x170] sm:$0xff] %vm1403, %v1315
  %1451 = vst.msk [vmem:[%s3 + $0x178] sm:$0xff] %vm1403, %v1320
  %1452 = vst.msk [vmem:[%s3 + $0x180] sm:$0xff] %vm1403, %v1325
  %1453 = vst.msk [vmem:[%s3 + $0x188] sm:$0xff] %vm1403, %v1330
  %1454 = vst.msk [vmem:[%s3 + $0x190] sm:$0xff] %vm1403, %v1335
  %1455 = vst.msk [vmem:[%s3 + $0x198] sm:$0xff] %vm1403, %v1340
  %1456 = vst.msk [vmem:[%s3 + $0x1a0] sm:$0xff] %vm1403, %v1345
  %1457 = vst.msk [vmem:[%s3 + $0x1a8] sm:$0xff] %vm1403, %v1350
  %1458 = vst.msk [vmem:[%s3 + $0x1b0] sm:$0xff] %vm1403, %v1355
  %1459 = vst.msk [vmem:[%s3 + $0x1b8] sm:$0xff] %vm1403, %v1360
  %1460 = vst.msk [vmem:[%s3 + $0x1c0] sm:$0xff] %vm1403, %v1365
  %1461 = vst.msk [vmem:[%s3 + $0x1c8] sm:$0xff] %vm1403, %v1370
  %1462 = vst.msk [vmem:[%s3 + $0x1d0] sm:$0xff] %vm1403, %v1375
  %1463 = vst.msk [vmem:[%s3 + $0x1d8] sm:$0xff] %vm1403, %v1380
  %1464 = vst.msk [vmem:[%s3 + $0x1e0] sm:$0xff] %vm1403, %v1385
  %1465 = vst.msk [vmem:[%s3 + $0x1e8] sm:$0xff] %vm1403, %v1390
  %1466 = vst.msk [vmem:[%s3 + $0x1f0] sm:$0xff] %vm1403, %v1395
  %1467 = vst.msk [vmem:[%s3 + $0x1f8] sm:$0xff] %vm1403, %v1400
  %v1468 = vmul.f32 %v153, 0.5
  %v1469 = vmul.f32 %v1468, 1.442695
  %v1470 = vpow.pop %v1469
  %v1471 = vlaneseq
  %v1472 = vshrl.u32 %v1471, 7
  %v1473 = vsub.s32 0, %v1472
  %v1474 = vrot.slane %v1470, %v1473
  %1539 = vrot.lane.b32.xlu0 %v78, 32
  %v1540 = vpop.permute.xlu0 %1539
  %1541 = vrot.lane.b32.xlu0 %v79, 32
  %v1542 = vpop.permute.xlu0 %1541
  %1543 = vrot.lane.b32.xlu0 %v80, 32
  %v1544 = vpop.permute.xlu0 %1543
  %1545 = vrot.lane.b32.xlu0 %v81, 32
  %v1546 = vpop.permute.xlu0 %1545
  %1547 = vrot.lane.b32.xlu0 %v82, 32
  %v1548 = vpop.permute.xlu0 %1547
  %1549 = vrot.lane.b32.xlu0 %v83, 32
  %v1550 = vpop.permute.xlu0 %1549
  %1551 = vrot.lane.b32.xlu0 %v84, 32
  %v1552 = vpop.permute.xlu0 %1551
  %1553 = vrot.lane.b32.xlu0 %v85, 32
  %v1554 = vpop.permute.xlu0 %1553
  %1555 = vrot.lane.b32.xlu0 %v86, 32
  %v1556 = vpop.permute.xlu0 %1555
  %1557 = vrot.lane.b32.xlu0 %v87, 32
  %v1558 = vpop.permute.xlu0 %1557
  %1559 = vrot.lane.b32.xlu0 %v88, 32
  %v1560 = vpop.permute.xlu0 %1559
  %1561 = vrot.lane.b32.xlu0 %v89, 32
  %v1562 = vpop.permute.xlu0 %1561
  %1563 = vrot.lane.b32.xlu0 %v90, 32
  %v1564 = vpop.permute.xlu0 %1563
  %1565 = vrot.lane.b32.xlu0 %v91, 32
  %v1566 = vpop.permute.xlu0 %1565
  %1567 = vrot.lane.b32.xlu0 %v92, 32
  %v1568 = vpop.permute.xlu0 %1567
  %1569 = vrot.lane.b32.xlu0 %v93, 32
  %v1570 = vpop.permute.xlu0 %1569
  %1571 = vrot.lane.b32.xlu0 %v94, 32
  %v1572 = vpop.permute.xlu0 %1571
  %1573 = vrot.lane.b32.xlu0 %v95, 32
  %v1574 = vpop.permute.xlu0 %1573
  %1575 = vrot.lane.b32.xlu0 %v96, 32
  %v1576 = vpop.permute.xlu0 %1575
  %1577 = vrot.lane.b32.xlu0 %v97, 32
  %v1578 = vpop.permute.xlu0 %1577
  %1579 = vrot.lane.b32.xlu0 %v98, 32
  %v1580 = vpop.permute.xlu0 %1579
  %1581 = vrot.lane.b32.xlu0 %v99, 32
  %v1582 = vpop.permute.xlu0 %1581
  %1583 = vrot.lane.b32.xlu0 %v100, 32
  %v1584 = vpop.permute.xlu0 %1583
  %1585 = vrot.lane.b32.xlu0 %v101, 32
  %v1586 = vpop.permute.xlu0 %1585
  %1587 = vrot.lane.b32.xlu0 %v102, 32
  %v1588 = vpop.permute.xlu0 %1587
  %1589 = vrot.lane.b32.xlu0 %v103, 32
  %v1590 = vpop.permute.xlu0 %1589
  %1591 = vrot.lane.b32.xlu0 %v104, 32
  %v1592 = vpop.permute.xlu0 %1591
  %1593 = vrot.lane.b32.xlu0 %v105, 32
  %v1594 = vpop.permute.xlu0 %1593
  %1595 = vrot.lane.b32.xlu0 %v106, 32
  %v1596 = vpop.permute.xlu0 %1595
  %1597 = vrot.lane.b32.xlu0 %v107, 32
  %v1598 = vpop.permute.xlu0 %1597
  %1599 = vrot.lane.b32.xlu0 %v108, 32
  %v1600 = vpop.permute.xlu0 %1599
  %1601 = vrot.lane.b32.xlu0 %v109, 32
  %v1602 = vpop.permute.xlu0 %1601
  %1603 = vrot.lane.b32.xlu0 %v110, 32
  %v1604 = vpop.permute.xlu0 %1603
  %1605 = vrot.lane.b32.xlu0 %v111, 32
  %v1606 = vpop.permute.xlu0 %1605
  %1607 = vrot.lane.b32.xlu0 %v112, 32
  %v1608 = vpop.permute.xlu0 %1607
  %1609 = vrot.lane.b32.xlu0 %v113, 32
  %v1610 = vpop.permute.xlu0 %1609
  %1611 = vrot.lane.b32.xlu0 %v114, 32
  %v1612 = vpop.permute.xlu0 %1611
  %1613 = vrot.lane.b32.xlu0 %v115, 32
  %v1614 = vpop.permute.xlu0 %1613
  %1615 = vrot.lane.b32.xlu0 %v116, 32
  %v1616 = vpop.permute.xlu0 %1615
  %1617 = vrot.lane.b32.xlu0 %v117, 32
  %v1618 = vpop.permute.xlu0 %1617
  %1619 = vrot.lane.b32.xlu0 %v118, 32
  %v1620 = vpop.permute.xlu0 %1619
  %1621 = vrot.lane.b32.xlu0 %v119, 32
  %v1622 = vpop.permute.xlu0 %1621
  %1623 = vrot.lane.b32.xlu0 %v120, 32
  %v1624 = vpop.permute.xlu0 %1623
  %1625 = vrot.lane.b32.xlu0 %v121, 32
  %v1626 = vpop.permute.xlu0 %1625
  %1627 = vrot.lane.b32.xlu0 %v122, 32
  %v1628 = vpop.permute.xlu0 %1627
  %1629 = vrot.lane.b32.xlu0 %v123, 32
  %v1630 = vpop.permute.xlu0 %1629
  %1631 = vrot.lane.b32.xlu0 %v124, 32
  %v1632 = vpop.permute.xlu0 %1631
  %1633 = vrot.lane.b32.xlu0 %v125, 32
  %v1634 = vpop.permute.xlu0 %1633
  %1635 = vrot.lane.b32.xlu0 %v126, 32
  %v1636 = vpop.permute.xlu0 %1635
  %1637 = vrot.lane.b32.xlu0 %v127, 32
  %v1638 = vpop.permute.xlu0 %1637
  %1639 = vrot.lane.b32.xlu0 %v128, 32
  %v1640 = vpop.permute.xlu0 %1639
  %1641 = vrot.lane.b32.xlu0 %v129, 32
  %v1642 = vpop.permute.xlu0 %1641
  %1643 = vrot.lane.b32.xlu0 %v130, 32
  %v1644 = vpop.permute.xlu0 %1643
  %1645 = vrot.lane.b32.xlu0 %v131, 32
  %v1646 = vpop.permute.xlu0 %1645
  %1647 = vrot.lane.b32.xlu0 %v132, 32
  %v1648 = vpop.permute.xlu0 %1647
  %1649 = vrot.lane.b32.xlu0 %v133, 32
  %v1650 = vpop.permute.xlu0 %1649
  %1651 = vrot.lane.b32.xlu0 %v134, 32
  %v1652 = vpop.permute.xlu0 %1651
  %1653 = vrot.lane.b32.xlu0 %v135, 32
  %v1654 = vpop.permute.xlu0 %1653
  %1655 = vrot.lane.b32.xlu0 %v136, 32
  %v1656 = vpop.permute.xlu0 %1655
  %1657 = vrot.lane.b32.xlu0 %v137, 32
  %v1658 = vpop.permute.xlu0 %1657
  %1659 = vrot.lane.b32.xlu0 %v138, 32
  %v1660 = vpop.permute.xlu0 %1659
  %1661 = vrot.lane.b32.xlu0 %v139, 32
  %v1662 = vpop.permute.xlu0 %1661
  %1663 = vrot.lane.b32.xlu0 %v140, 32
  %v1664 = vpop.permute.xlu0 %1663
  %1665 = vrot.lane.b32.xlu0 %v141, 32
  %v1666 = vpop.permute.xlu0 %1665
  %v1731 = vmul.f32 %v1474, %v1540
  %v1732 = vmul.f32 %v1474, %v1542
  %v1733 = vmul.f32 %v1474, %v1544
  %v1734 = vmul.f32 %v1474, %v1546
  %v1735 = vmul.f32 %v1474, %v1548
  %v1736 = vmul.f32 %v1474, %v1550
  %v1737 = vmul.f32 %v1474, %v1552
  %v1738 = vmul.f32 %v1474, %v1554
  %v1739 = vmul.f32 %v1474, %v1556
  %v1740 = vmul.f32 %v1474, %v1558
  %v1741 = vmul.f32 %v1474, %v1560
  %v1742 = vmul.f32 %v1474, %v1562
  %v1743 = vmul.f32 %v1474, %v1564
  %v1744 = vmul.f32 %v1474, %v1566
  %v1745 = vmul.f32 %v1474, %v1568
  %v1746 = vmul.f32 %v1474, %v1570
  %v1747 = vmul.f32 %v1474, %v1572
  %v1748 = vmul.f32 %v1474, %v1574
  %v1749 = vmul.f32 %v1474, %v1576
  %v1750 = vmul.f32 %v1474, %v1578
  %v1751 = vmul.f32 %v1474, %v1580
  %v1752 = vmul.f32 %v1474, %v1582
  %v1753 = vmul.f32 %v1474, %v1584
  %v1754 = vmul.f32 %v1474, %v1586
  %v1755 = vmul.f32 %v1474, %v1588
  %v1756 = vmul.f32 %v1474, %v1590
  %v1757 = vmul.f32 %v1474, %v1592
  %v1758 = vmul.f32 %v1474, %v1594
  %v1759 = vmul.f32 %v1474, %v1596
  %v1760 = vmul.f32 %v1474, %v1598
  %v1761 = vmul.f32 %v1474, %v1600
  %v1762 = vmul.f32 %v1474, %v1602
  %v1763 = vmul.f32 %v1474, %v1604
  %v1764 = vmul.f32 %v1474, %v1606
  %v1765 = vmul.f32 %v1474, %v1608
  %v1766 = vmul.f32 %v1474, %v1610
  %v1767 = vmul.f32 %v1474, %v1612
  %v1768 = vmul.f32 %v1474, %v1614
  %v1769 = vmul.f32 %v1474, %v1616
  %v1770 = vmul.f32 %v1474, %v1618
  %v1771 = vmul.f32 %v1474, %v1620
  %v1772 = vmul.f32 %v1474, %v1622
  %v1773 = vmul.f32 %v1474, %v1624
  %v1774 = vmul.f32 %v1474, %v1626
  %v1775 = vmul.f32 %v1474, %v1628
  %v1776 = vmul.f32 %v1474, %v1630
  %v1777 = vmul.f32 %v1474, %v1632
  %v1778 = vmul.f32 %v1474, %v1634
  %v1779 = vmul.f32 %v1474, %v1636
  %v1780 = vmul.f32 %v1474, %v1638
  %v1781 = vmul.f32 %v1474, %v1640
  %v1782 = vmul.f32 %v1474, %v1642
  %v1783 = vmul.f32 %v1474, %v1644
  %v1784 = vmul.f32 %v1474, %v1646
  %v1785 = vmul.f32 %v1474, %v1648
  %v1786 = vmul.f32 %v1474, %v1650
  %v1787 = vmul.f32 %v1474, %v1652
  %v1788 = vmul.f32 %v1474, %v1654
  %v1789 = vmul.f32 %v1474, %v1656
  %v1790 = vmul.f32 %v1474, %v1658
  %v1791 = vmul.f32 %v1474, %v1660
  %v1792 = vmul.f32 %v1474, %v1662
  %v1793 = vmul.f32 %v1474, %v1664
  %v1794 = vmul.f32 %v1474, %v1666
  %1859 = vrot.lane.b32.xlu0 %v1731, 96
  %v1860 = vpop.permute.xlu0 %1859
  %1861 = vrot.lane.b32.xlu0 %v1732, 96
  %v1862 = vpop.permute.xlu0 %1861
  %1863 = vrot.lane.b32.xlu0 %v1733, 96
  %v1864 = vpop.permute.xlu0 %1863
  %1865 = vrot.lane.b32.xlu0 %v1734, 96
  %v1866 = vpop.permute.xlu0 %1865
  %1867 = vrot.lane.b32.xlu0 %v1735, 96
  %v1868 = vpop.permute.xlu0 %1867
  %1869 = vrot.lane.b32.xlu0 %v1736, 96
  %v1870 = vpop.permute.xlu0 %1869
  %1871 = vrot.lane.b32.xlu0 %v1737, 96
  %v1872 = vpop.permute.xlu0 %1871
  %1873 = vrot.lane.b32.xlu0 %v1738, 96
  %v1874 = vpop.permute.xlu0 %1873
  %1875 = vrot.lane.b32.xlu0 %v1739, 96
  %v1876 = vpop.permute.xlu0 %1875
  %1877 = vrot.lane.b32.xlu0 %v1740, 96
  %v1878 = vpop.permute.xlu0 %1877
  %1879 = vrot.lane.b32.xlu0 %v1741, 96
  %v1880 = vpop.permute.xlu0 %1879
  %1881 = vrot.lane.b32.xlu0 %v1742, 96
  %v1882 = vpop.permute.xlu0 %1881
  %1883 = vrot.lane.b32.xlu0 %v1743, 96
  %v1884 = vpop.permute.xlu0 %1883
  %1885 = vrot.lane.b32.xlu0 %v1744, 96
  %v1886 = vpop.permute.xlu0 %1885
  %1887 = vrot.lane.b32.xlu0 %v1745, 96
  %v1888 = vpop.permute.xlu0 %1887
  %1889 = vrot.lane.b32.xlu0 %v1746, 96
  %v1890 = vpop.permute.xlu0 %1889
  %1891 = vrot.lane.b32.xlu0 %v1747, 96
  %v1892 = vpop.permute.xlu0 %1891
  %1893 = vrot.lane.b32.xlu0 %v1748, 96
  %v1894 = vpop.permute.xlu0 %1893
  %1895 = vrot.lane.b32.xlu0 %v1749, 96
  %v1896 = vpop.permute.xlu0 %1895
  %1897 = vrot.lane.b32.xlu0 %v1750, 96
  %v1898 = vpop.permute.xlu0 %1897
  %1899 = vrot.lane.b32.xlu0 %v1751, 96
  %v1900 = vpop.permute.xlu0 %1899
  %1901 = vrot.lane.b32.xlu0 %v1752, 96
  %v1902 = vpop.permute.xlu0 %1901
  %1903 = vrot.lane.b32.xlu0 %v1753, 96
  %v1904 = vpop.permute.xlu0 %1903
  %1905 = vrot.lane.b32.xlu0 %v1754, 96
  %v1906 = vpop.permute.xlu0 %1905
  %1907 = vrot.lane.b32.xlu0 %v1755, 96
  %v1908 = vpop.permute.xlu0 %1907
  %1909 = vrot.lane.b32.xlu0 %v1756, 96
  %v1910 = vpop.permute.xlu0 %1909
  %1911 = vrot.lane.b32.xlu0 %v1757, 96
  %v1912 = vpop.permute.xlu0 %1911
  %1913 = vrot.lane.b32.xlu0 %v1758, 96
  %v1914 = vpop.permute.xlu0 %1913
  %1915 = vrot.lane.b32.xlu0 %v1759, 96
  %v1916 = vpop.permute.xlu0 %1915
  %1917 = vrot.lane.b32.xlu0 %v1760, 96
  %v1918 = vpop.permute.xlu0 %1917
  %1919 = vrot.lane.b32.xlu0 %v1761, 96
  %v1920 = vpop.permute.xlu0 %1919
  %1921 = vrot.lane.b32.xlu0 %v1762, 96
  %v1922 = vpop.permute.xlu0 %1921
  %1923 = vrot.lane.b32.xlu0 %v1763, 96
  %v1924 = vpop.permute.xlu0 %1923
  %1925 = vrot.lane.b32.xlu0 %v1764, 96
  %v1926 = vpop.permute.xlu0 %1925
  %1927 = vrot.lane.b32.xlu0 %v1765, 96
  %v1928 = vpop.permute.xlu0 %1927
  %1929 = vrot.lane.b32.xlu0 %v1766, 96
  %v1930 = vpop.permute.xlu0 %1929
  %1931 = vrot.lane.b32.xlu0 %v1767, 96
  %v1932 = vpop.permute.xlu0 %1931
  %1933 = vrot.lane.b32.xlu0 %v1768, 96
  %v1934 = vpop.permute.xlu0 %1933
  %1935 = vrot.lane.b32.xlu0 %v1769, 96
  %v1936 = vpop.permute.xlu0 %1935
  %1937 = vrot.lane.b32.xlu0 %v1770, 96
  %v1938 = vpop.permute.xlu0 %1937
  %1939 = vrot.lane.b32.xlu0 %v1771, 96
  %v1940 = vpop.permute.xlu0 %1939
  %1941 = vrot.lane.b32.xlu0 %v1772, 96
  %v1942 = vpop.permute.xlu0 %1941
  %1943 = vrot.lane.b32.xlu0 %v1773, 96
  %v1944 = vpop.permute.xlu0 %1943
  %1945 = vrot.lane.b32.xlu0 %v1774, 96
  %v1946 = vpop.permute.xlu0 %1945
  %1947 = vrot.lane.b32.xlu0 %v1775, 96
  %v1948 = vpop.permute.xlu0 %1947
  %1949 = vrot.lane.b32.xlu0 %v1776, 96
  %v1950 = vpop.permute.xlu0 %1949
  %1951 = vrot.lane.b32.xlu0 %v1777, 96
  %v1952 = vpop.permute.xlu0 %1951
  %1953 = vrot.lane.b32.xlu0 %v1778, 96
  %v1954 = vpop.permute.xlu0 %1953
  %1955 = vrot.lane.b32.xlu0 %v1779, 96
  %v1956 = vpop.permute.xlu0 %1955
  %1957 = vrot.lane.b32.xlu0 %v1780, 96
  %v1958 = vpop.permute.xlu0 %1957
  %1959 = vrot.lane.b32.xlu0 %v1781, 96
  %v1960 = vpop.permute.xlu0 %1959
  %1961 = vrot.lane.b32.xlu0 %v1782, 96
  %v1962 = vpop.permute.xlu0 %1961
  %1963 = vrot.lane.b32.xlu0 %v1783, 96
  %v1964 = vpop.permute.xlu0 %1963
  %1965 = vrot.lane.b32.xlu0 %v1784, 96
  %v1966 = vpop.permute.xlu0 %1965
  %1967 = vrot.lane.b32.xlu0 %v1785, 96
  %v1968 = vpop.permute.xlu0 %1967
  %1969 = vrot.lane.b32.xlu0 %v1786, 96
  %v1970 = vpop.permute.xlu0 %1969
  %1971 = vrot.lane.b32.xlu0 %v1787, 96
  %v1972 = vpop.permute.xlu0 %1971
  %1973 = vrot.lane.b32.xlu0 %v1788, 96
  %v1974 = vpop.permute.xlu0 %1973
  %1975 = vrot.lane.b32.xlu0 %v1789, 96
  %v1976 = vpop.permute.xlu0 %1975
  %1977 = vrot.lane.b32.xlu0 %v1790, 96
  %v1978 = vpop.permute.xlu0 %1977
  %1979 = vrot.lane.b32.xlu0 %v1791, 96
  %v1980 = vpop.permute.xlu0 %1979
  %1981 = vrot.lane.b32.xlu0 %v1792, 96
  %v1982 = vpop.permute.xlu0 %1981
  %1983 = vrot.lane.b32.xlu0 %v1793, 96
  %v1984 = vpop.permute.xlu0 %1983
  %1985 = vrot.lane.b32.xlu0 %v1794, 96
  %v1986 = vpop.permute.xlu0 %1985
  %v2051 = vadd.f32 %v1085, %v1860
  %v2052 = vadd.f32 %v1090, %v1862
  %v2053 = vadd.f32 %v1095, %v1864
  %v2054 = vadd.f32 %v1100, %v1866
  %v2055 = vadd.f32 %v1105, %v1868
  %v2056 = vadd.f32 %v1110, %v1870
  %v2057 = vadd.f32 %v1115, %v1872
  %v2058 = vadd.f32 %v1120, %v1874
  %v2059 = vadd.f32 %v1125, %v1876
  %v2060 = vadd.f32 %v1130, %v1878
  %v2061 = vadd.f32 %v1135, %v1880
  %v2062 = vadd.f32 %v1140, %v1882
  %v2063 = vadd.f32 %v1145, %v1884
  %v2064 = vadd.f32 %v1150, %v1886
  %v2065 = vadd.f32 %v1155, %v1888
  %v2066 = vadd.f32 %v1160, %v1890
  %v2067 = vadd.f32 %v1165, %v1892
  %v2068 = vadd.f32 %v1170, %v1894
  %v2069 = vadd.f32 %v1175, %v1896
  %v2070 = vadd.f32 %v1180, %v1898
  %v2071 = vadd.f32 %v1185, %v1900
  %v2072 = vadd.f32 %v1190, %v1902
  %v2073 = vadd.f32 %v1195, %v1904
  %v2074 = vadd.f32 %v1200, %v1906
  %v2075 = vadd.f32 %v1205, %v1908
  %v2076 = vadd.f32 %v1210, %v1910
  %v2077 = vadd.f32 %v1215, %v1912
  %v2078 = vadd.f32 %v1220, %v1914
  %v2079 = vadd.f32 %v1225, %v1916
  %v2080 = vadd.f32 %v1230, %v1918
  %v2081 = vadd.f32 %v1235, %v1920
  %v2082 = vadd.f32 %v1240, %v1922
  %v2083 = vadd.f32 %v1245, %v1924
  %v2084 = vadd.f32 %v1250, %v1926
  %v2085 = vadd.f32 %v1255, %v1928
  %v2086 = vadd.f32 %v1260, %v1930
  %v2087 = vadd.f32 %v1265, %v1932
  %v2088 = vadd.f32 %v1270, %v1934
  %v2089 = vadd.f32 %v1275, %v1936
  %v2090 = vadd.f32 %v1280, %v1938
  %v2091 = vadd.f32 %v1285, %v1940
  %v2092 = vadd.f32 %v1290, %v1942
  %v2093 = vadd.f32 %v1295, %v1944
  %v2094 = vadd.f32 %v1300, %v1946
  %v2095 = vadd.f32 %v1305, %v1948
  %v2096 = vadd.f32 %v1310, %v1950
  %v2097 = vadd.f32 %v1315, %v1952
  %v2098 = vadd.f32 %v1320, %v1954
  %v2099 = vadd.f32 %v1325, %v1956
  %v2100 = vadd.f32 %v1330, %v1958
  %v2101 = vadd.f32 %v1335, %v1960
  %v2102 = vadd.f32 %v1340, %v1962
  %v2103 = vadd.f32 %v1345, %v1964
  %v2104 = vadd.f32 %v1350, %v1966
  %v2105 = vadd.f32 %v1355, %v1968
  %v2106 = vadd.f32 %v1360, %v1970
  %v2107 = vadd.f32 %v1365, %v1972
  %v2108 = vadd.f32 %v1370, %v1974
  %v2109 = vadd.f32 %v1375, %v1976
  %v2110 = vadd.f32 %v1380, %v1978
  %v2111 = vadd.f32 %v1385, %v1980
  %v2112 = vadd.f32 %v1390, %v1982
  %v2113 = vadd.f32 %v1395, %v1984
  %v2114 = vadd.f32 %v1400, %v1986
  %2179 = vrot.lane.b32.xlu0 %v2051, 16
  %v2180 = vpop.permute.xlu0 %2179
  %2181 = vrot.lane.b32.xlu0 %v2052, 16
  %v2182 = vpop.permute.xlu0 %2181
  %2183 = vrot.lane.b32.xlu0 %v2053, 16
  %v2184 = vpop.permute.xlu0 %2183
  %2185 = vrot.lane.b32.xlu0 %v2054, 16
  %v2186 = vpop.permute.xlu0 %2185
  %2187 = vrot.lane.b32.xlu0 %v2055, 16
  %v2188 = vpop.permute.xlu0 %2187
  %2189 = vrot.lane.b32.xlu0 %v2056, 16
  %v2190 = vpop.permute.xlu0 %2189
  %2191 = vrot.lane.b32.xlu0 %v2057, 16
  %v2192 = vpop.permute.xlu0 %2191
  %2193 = vrot.lane.b32.xlu0 %v2058, 16
  %v2194 = vpop.permute.xlu0 %2193
  %2195 = vrot.lane.b32.xlu0 %v2059, 16
  %v2196 = vpop.permute.xlu0 %2195
  %2197 = vrot.lane.b32.xlu0 %v2060, 16
  %v2198 = vpop.permute.xlu0 %2197
  %2199 = vrot.lane.b32.xlu0 %v2061, 16
  %v2200 = vpop.permute.xlu0 %2199
  %2201 = vrot.lane.b32.xlu0 %v2062, 16
  %v2202 = vpop.permute.xlu0 %2201
  %2203 = vrot.lane.b32.xlu0 %v2063, 16
  %v2204 = vpop.permute.xlu0 %2203
  %2205 = vrot.lane.b32.xlu0 %v2064, 16
  %v2206 = vpop.permute.xlu0 %2205
  %2207 = vrot.lane.b32.xlu0 %v2065, 16
  %v2208 = vpop.permute.xlu0 %2207
  %2209 = vrot.lane.b32.xlu0 %v2066, 16
  %v2210 = vpop.permute.xlu0 %2209
  %2211 = vrot.lane.b32.xlu0 %v2067, 16
  %v2212 = vpop.permute.xlu0 %2211
  %2213 = vrot.lane.b32.xlu0 %v2068, 16
  %v2214 = vpop.permute.xlu0 %2213
  %2215 = vrot.lane.b32.xlu0 %v2069, 16
  %v2216 = vpop.permute.xlu0 %2215
  %2217 = vrot.lane.b32.xlu0 %v2070, 16
  %v2218 = vpop.permute.xlu0 %2217
  %2219 = vrot.lane.b32.xlu0 %v2071, 16
  %v2220 = vpop.permute.xlu0 %2219
  %2221 = vrot.lane.b32.xlu0 %v2072, 16
  %v2222 = vpop.permute.xlu0 %2221
  %2223 = vrot.lane.b32.xlu0 %v2073, 16
  %v2224 = vpop.permute.xlu0 %2223
  %2225 = vrot.lane.b32.xlu0 %v2074, 16
  %v2226 = vpop.permute.xlu0 %2225
  %2227 = vrot.lane.b32.xlu0 %v2075, 16
  %v2228 = vpop.permute.xlu0 %2227
  %2229 = vrot.lane.b32.xlu0 %v2076, 16
  %v2230 = vpop.permute.xlu0 %2229
  %2231 = vrot.lane.b32.xlu0 %v2077, 16
  %v2232 = vpop.permute.xlu0 %2231
  %2233 = vrot.lane.b32.xlu0 %v2078, 16
  %v2234 = vpop.permute.xlu0 %2233
  %2235 = vrot.lane.b32.xlu0 %v2079, 16
  %v2236 = vpop.permute.xlu0 %2235
  %2237 = vrot.lane.b32.xlu0 %v2080, 16
  %v2238 = vpop.permute.xlu0 %2237
  %2239 = vrot.lane.b32.xlu0 %v2081, 16
  %v2240 = vpop.permute.xlu0 %2239
  %2241 = vrot.lane.b32.xlu0 %v2082, 16
  %v2242 = vpop.permute.xlu0 %2241
  %2243 = vrot.lane.b32.xlu0 %v2083, 16
  %v2244 = vpop.permute.xlu0 %2243
  %2245 = vrot.lane.b32.xlu0 %v2084, 16
  %v2246 = vpop.permute.xlu0 %2245
  %2247 = vrot.lane.b32.xlu0 %v2085, 16
  %v2248 = vpop.permute.xlu0 %2247
  %2249 = vrot.lane.b32.xlu0 %v2086, 16
  %v2250 = vpop.permute.xlu0 %2249
  %2251 = vrot.lane.b32.xlu0 %v2087, 16
  %v2252 = vpop.permute.xlu0 %2251
  %2253 = vrot.lane.b32.xlu0 %v2088, 16
  %v2254 = vpop.permute.xlu0 %2253
  %2255 = vrot.lane.b32.xlu0 %v2089, 16
  %v2256 = vpop.permute.xlu0 %2255
  %2257 = vrot.lane.b32.xlu0 %v2090, 16
  %v2258 = vpop.permute.xlu0 %2257
  %2259 = vrot.lane.b32.xlu0 %v2091, 16
  %v2260 = vpop.permute.xlu0 %2259
  %2261 = vrot.lane.b32.xlu0 %v2092, 16
  %v2262 = vpop.permute.xlu0 %2261
  %2263 = vrot.lane.b32.xlu0 %v2093, 16
  %v2264 = vpop.permute.xlu0 %2263
  %2265 = vrot.lane.b32.xlu0 %v2094, 16
  %v2266 = vpop.permute.xlu0 %2265
  %2267 = vrot.lane.b32.xlu0 %v2095, 16
  %v2268 = vpop.permute.xlu0 %2267
  %2269 = vrot.lane.b32.xlu0 %v2096, 16
  %v2270 = vpop.permute.xlu0 %2269
  %2271 = vrot.lane.b32.xlu0 %v2097, 16
  %v2272 = vpop.permute.xlu0 %2271
  %2273 = vrot.lane.b32.xlu0 %v2098, 16
  %v2274 = vpop.permute.xlu0 %2273
  %2275 = vrot.lane.b32.xlu0 %v2099, 16
  %v2276 = vpop.permute.xlu0 %2275
  %2277 = vrot.lane.b32.xlu0 %v2100, 16
  %v2278 = vpop.permute.xlu0 %2277
  %2279 = vrot.lane.b32.xlu0 %v2101, 16
  %v2280 = vpop.permute.xlu0 %2279
  %2281 = vrot.lane.b32.xlu0 %v2102, 16
  %v2282 = vpop.permute.xlu0 %2281
  %2283 = vrot.lane.b32.xlu0 %v2103, 16
  %v2284 = vpop.permute.xlu0 %2283
  %2285 = vrot.lane.b32.xlu0 %v2104, 16
  %v2286 = vpop.permute.xlu0 %2285
  %2287 = vrot.lane.b32.xlu0 %v2105, 16
  %v2288 = vpop.permute.xlu0 %2287
  %2289 = vrot.lane.b32.xlu0 %v2106, 16
  %v2290 = vpop.permute.xlu0 %2289
  %2291 = vrot.lane.b32.xlu0 %v2107, 16
  %v2292 = vpop.permute.xlu0 %2291
  %2293 = vrot.lane.b32.xlu0 %v2108, 16
  %v2294 = vpop.permute.xlu0 %2293
  %2295 = vrot.lane.b32.xlu0 %v2109, 16
  %v2296 = vpop.permute.xlu0 %2295
  %2297 = vrot.lane.b32.xlu0 %v2110, 16
  %v2298 = vpop.permute.xlu0 %2297
  %2299 = vrot.lane.b32.xlu0 %v2111, 16
  %v2300 = vpop.permute.xlu0 %2299
  %2301 = vrot.lane.b32.xlu0 %v2112, 16
  %v2302 = vpop.permute.xlu0 %2301
  %2303 = vrot.lane.b32.xlu0 %v2113, 16
  %v2304 = vpop.permute.xlu0 %2303
  %2305 = vrot.lane.b32.xlu0 %v2114, 16
  %v2306 = vpop.permute.xlu0 %2305
  %vm2371 = vcmask 261248
  %2372 = vst.msk [vmem:[%s3] sm:$0xff] %vm2371, %v2180
  %2373 = vst.msk [vmem:[%s3 + $0x8] sm:$0xff] %vm2371, %v2182
  %2374 = vst.msk [vmem:[%s3 + $0x10] sm:$0xff] %vm2371, %v2184
  %2375 = vst.msk [vmem:[%s3 + $0x18] sm:$0xff] %vm2371, %v2186
  %2376 = vst.msk [vmem:[%s3 + $0x20] sm:$0xff] %vm2371, %v2188
  %2377 = vst.msk [vmem:[%s3 + $0x28] sm:$0xff] %vm2371, %v2190
  %2378 = vst.msk [vmem:[%s3 + $0x30] sm:$0xff] %vm2371, %v2192
  %2379 = vst.msk [vmem:[%s3 + $0x38] sm:$0xff] %vm2371, %v2194
  %2380 = vst.msk [vmem:[%s3 + $0x40] sm:$0xff] %vm2371, %v2196
  %2381 = vst.msk [vmem:[%s3 + $0x48] sm:$0xff] %vm2371, %v2198
  %2382 = vst.msk [vmem:[%s3 + $0x50] sm:$0xff] %vm2371, %v2200
  %2383 = vst.msk [vmem:[%s3 + $0x58] sm:$0xff] %vm2371, %v2202
  %2384 = vst.msk [vmem:[%s3 + $0x60] sm:$0xff] %vm2371, %v2204
  %2385 = vst.msk [vmem:[%s3 + $0x68] sm:$0xff] %vm2371, %v2206
  %2386 = vst.msk [vmem:[%s3 + $0x70] sm:$0xff] %vm2371, %v2208
  %2387 = vst.msk [vmem:[%s3 + $0x78] sm:$0xff] %vm2371, %v2210
  %2388 = vst.msk [vmem:[%s3 + $0x80] sm:$0xff] %vm2371, %v2212
  %2389 = vst.msk [vmem:[%s3 + $0x88] sm:$0xff] %vm2371, %v2214
  %2390 = vst.msk [vmem:[%s3 + $0x90] sm:$0xff] %vm2371, %v2216
  %2391 = vst.msk [vmem:[%s3 + $0x98] sm:$0xff] %vm2371, %v2218
  %2392 = vst.msk [vmem:[%s3 + $0xa0] sm:$0xff] %vm2371, %v2220
  %2393 = vst.msk [vmem:[%s3 + $0xa8] sm:$0xff] %vm2371, %v2222
  %2394 = vst.msk [vmem:[%s3 + $0xb0] sm:$0xff] %vm2371, %v2224
  %2395 = vst.msk [vmem:[%s3 + $0xb8] sm:$0xff] %vm2371, %v2226
  %2396 = vst.msk [vmem:[%s3 + $0xc0] sm:$0xff] %vm2371, %v2228
  %2397 = vst.msk [vmem:[%s3 + $0xc8] sm:$0xff] %vm2371, %v2230
  %2398 = vst.msk [vmem:[%s3 + $0xd0] sm:$0xff] %vm2371, %v2232
  %2399 = vst.msk [vmem:[%s3 + $0xd8] sm:$0xff] %vm2371, %v2234
  %2400 = vst.msk [vmem:[%s3 + $0xe0] sm:$0xff] %vm2371, %v2236
  %2401 = vst.msk [vmem:[%s3 + $0xe8] sm:$0xff] %vm2371, %v2238
  %2402 = vst.msk [vmem:[%s3 + $0xf0] sm:$0xff] %vm2371, %v2240
  %2403 = vst.msk [vmem:[%s3 + $0xf8] sm:$0xff] %vm2371, %v2242
  %2404 = vst.msk [vmem:[%s3 + $0x100] sm:$0xff] %vm2371, %v2244
  %2405 = vst.msk [vmem:[%s3 + $0x108] sm:$0xff] %vm2371, %v2246
  %2406 = vst.msk [vmem:[%s3 + $0x110] sm:$0xff] %vm2371, %v2248
  %2407 = vst.msk [vmem:[%s3 + $0x118] sm:$0xff] %vm2371, %v2250
  %2408 = vst.msk [vmem:[%s3 + $0x120] sm:$0xff] %vm2371, %v2252
  %2409 = vst.msk [vmem:[%s3 + $0x128] sm:$0xff] %vm2371, %v2254
  %2410 = vst.msk [vmem:[%s3 + $0x130] sm:$0xff] %vm2371, %v2256
  %2411 = vst.msk [vmem:[%s3 + $0x138] sm:$0xff] %vm2371, %v2258
  %2412 = vst.msk [vmem:[%s3 + $0x140] sm:$0xff] %vm2371, %v2260
  %2413 = vst.msk [vmem:[%s3 + $0x148] sm:$0xff] %vm2371, %v2262
  %2414 = vst.msk [vmem:[%s3 + $0x150] sm:$0xff] %vm2371, %v2264
  %2415 = vst.msk [vmem:[%s3 + $0x158] sm:$0xff] %vm2371, %v2266
  %2416 = vst.msk [vmem:[%s3 + $0x160] sm:$0xff] %vm2371, %v2268
  %2417 = vst.msk [vmem:[%s3 + $0x168] sm:$0xff] %vm2371, %v2270
  %2418 = vst.msk [vmem:[%s3 + $0x170] sm:$0xff] %vm2371, %v2272
  %2419 = vst.msk [vmem:[%s3 + $0x178] sm:$0xff] %vm2371, %v2274
  %2420 = vst.msk [vmem:[%s3 + $0x180] sm:$0xff] %vm2371, %v2276
  %2421 = vst.msk [vmem:[%s3 + $0x188] sm:$0xff] %vm2371, %v2278
  %2422 = vst.msk [vmem:[%s3 + $0x190] sm:$0xff] %vm2371, %v2280
  %2423 = vst.msk [vmem:[%s3 + $0x198] sm:$0xff] %vm2371, %v2282
  %2424 = vst.msk [vmem:[%s3 + $0x1a0] sm:$0xff] %vm2371, %v2284
  %2425 = vst.msk [vmem:[%s3 + $0x1a8] sm:$0xff] %vm2371, %v2286
  %2426 = vst.msk [vmem:[%s3 + $0x1b0] sm:$0xff] %vm2371, %v2288
  %2427 = vst.msk [vmem:[%s3 + $0x1b8] sm:$0xff] %vm2371, %v2290
  %2428 = vst.msk [vmem:[%s3 + $0x1c0] sm:$0xff] %vm2371, %v2292
  %2429 = vst.msk [vmem:[%s3 + $0x1c8] sm:$0xff] %vm2371, %v2294
  %2430 = vst.msk [vmem:[%s3 + $0x1d0] sm:$0xff] %vm2371, %v2296
  %2431 = vst.msk [vmem:[%s3 + $0x1d8] sm:$0xff] %vm2371, %v2298
  %2432 = vst.msk [vmem:[%s3 + $0x1e0] sm:$0xff] %vm2371, %v2300
  %2433 = vst.msk [vmem:[%s3 + $0x1e8] sm:$0xff] %vm2371, %v2302
  %2434 = vst.msk [vmem:[%s3 + $0x1f0] sm:$0xff] %vm2371, %v2304
  %2435 = vst.msk [vmem:[%s3 + $0x1f8] sm:$0xff] %vm2371, %v2306
  %v2436 = vmul.f32 %v2051, %v2051
  %v2437 = vmul.f32 %v2052, %v2052
  %v2438 = vmul.f32 %v2053, %v2053
  %v2439 = vmul.f32 %v2054, %v2054
  %v2440 = vmul.f32 %v2055, %v2055
  %v2441 = vmul.f32 %v2056, %v2056
  %v2442 = vmul.f32 %v2057, %v2057
  %v2443 = vmul.f32 %v2058, %v2058
  %v2444 = vmul.f32 %v2059, %v2059
  %v2445 = vmul.f32 %v2060, %v2060
  %v2446 = vmul.f32 %v2061, %v2061
  %v2447 = vmul.f32 %v2062, %v2062
  %v2448 = vmul.f32 %v2063, %v2063
  %v2449 = vmul.f32 %v2064, %v2064
  %v2450 = vmul.f32 %v2065, %v2065
  %v2451 = vmul.f32 %v2066, %v2066
  %v2452 = vmul.f32 %v2067, %v2067
  %v2453 = vmul.f32 %v2068, %v2068
  %v2454 = vmul.f32 %v2069, %v2069
  %v2455 = vmul.f32 %v2070, %v2070
  %v2456 = vmul.f32 %v2071, %v2071
  %v2457 = vmul.f32 %v2072, %v2072
  %v2458 = vmul.f32 %v2073, %v2073
  %v2459 = vmul.f32 %v2074, %v2074
  %v2460 = vmul.f32 %v2075, %v2075
  %v2461 = vmul.f32 %v2076, %v2076
  %v2462 = vmul.f32 %v2077, %v2077
  %v2463 = vmul.f32 %v2078, %v2078
  %v2464 = vmul.f32 %v2079, %v2079
  %v2465 = vmul.f32 %v2080, %v2080
  %v2466 = vmul.f32 %v2081, %v2081
  %v2467 = vmul.f32 %v2082, %v2082
  %v2468 = vmul.f32 %v2083, %v2083
  %v2469 = vmul.f32 %v2084, %v2084
  %v2470 = vmul.f32 %v2085, %v2085
  %v2471 = vmul.f32 %v2086, %v2086
  %v2472 = vmul.f32 %v2087, %v2087
  %v2473 = vmul.f32 %v2088, %v2088
  %v2474 = vmul.f32 %v2089, %v2089
  %v2475 = vmul.f32 %v2090, %v2090
  %v2476 = vmul.f32 %v2091, %v2091
  %v2477 = vmul.f32 %v2092, %v2092
  %v2478 = vmul.f32 %v2093, %v2093
  %v2479 = vmul.f32 %v2094, %v2094
  %v2480 = vmul.f32 %v2095, %v2095
  %v2481 = vmul.f32 %v2096, %v2096
  %v2482 = vmul.f32 %v2097, %v2097
  %v2483 = vmul.f32 %v2098, %v2098
  %v2484 = vmul.f32 %v2099, %v2099
  %v2485 = vmul.f32 %v2100, %v2100
  %v2486 = vmul.f32 %v2101, %v2101
  %v2487 = vmul.f32 %v2102, %v2102
  %v2488 = vmul.f32 %v2103, %v2103
  %v2489 = vmul.f32 %v2104, %v2104
  %v2490 = vmul.f32 %v2105, %v2105
  %v2491 = vmul.f32 %v2106, %v2106
  %v2492 = vmul.f32 %v2107, %v2107
  %v2493 = vmul.f32 %v2108, %v2108
  %v2494 = vmul.f32 %v2109, %v2109
  %v2495 = vmul.f32 %v2110, %v2110
  %v2496 = vmul.f32 %v2111, %v2111
  %v2497 = vmul.f32 %v2112, %v2112
  %v2498 = vmul.f32 %v2113, %v2113
  %v2499 = vmul.f32 %v2114, %v2114
  %v2500 = vmul.f32 %v2436, %v2051
  %v2501 = vmul.f32 %v2437, %v2052
  %v2502 = vmul.f32 %v2438, %v2053
  %v2503 = vmul.f32 %v2439, %v2054
  %v2504 = vmul.f32 %v2440, %v2055
  %v2505 = vmul.f32 %v2441, %v2056
  %v2506 = vmul.f32 %v2442, %v2057
  %v2507 = vmul.f32 %v2443, %v2058
  %v2508 = vmul.f32 %v2444, %v2059
  %v2509 = vmul.f32 %v2445, %v2060
  %v2510 = vmul.f32 %v2446, %v2061
  %v2511 = vmul.f32 %v2447, %v2062
  %v2512 = vmul.f32 %v2448, %v2063
  %v2513 = vmul.f32 %v2449, %v2064
  %v2514 = vmul.f32 %v2450, %v2065
  %v2515 = vmul.f32 %v2451, %v2066
  %v2516 = vmul.f32 %v2452, %v2067
  %v2517 = vmul.f32 %v2453, %v2068
  %v2518 = vmul.f32 %v2454, %v2069
  %v2519 = vmul.f32 %v2455, %v2070
  %v2520 = vmul.f32 %v2456, %v2071
  %v2521 = vmul.f32 %v2457, %v2072
  %v2522 = vmul.f32 %v2458, %v2073
  %v2523 = vmul.f32 %v2459, %v2074
  %v2524 = vmul.f32 %v2460, %v2075
  %v2525 = vmul.f32 %v2461, %v2076
  %v2526 = vmul.f32 %v2462, %v2077
  %v2527 = vmul.f32 %v2463, %v2078
  %v2528 = vmul.f32 %v2464, %v2079
  %v2529 = vmul.f32 %v2465, %v2080
  %v2530 = vmul.f32 %v2466, %v2081
  %v2531 = vmul.f32 %v2467, %v2082
  %v2532 = vmul.f32 %v2468, %v2083
  %v2533 = vmul.f32 %v2469, %v2084
  %v2534 = vmul.f32 %v2470, %v2085
  %v2535 = vmul.f32 %v2471, %v2086
  %v2536 = vmul.f32 %v2472, %v2087
  %v2537 = vmul.f32 %v2473, %v2088
  %v2538 = vmul.f32 %v2474, %v2089
  %v2539 = vmul.f32 %v2475, %v2090
  %v2540 = vmul.f32 %v2476, %v2091
  %v2541 = vmul.f32 %v2477, %v2092
  %v2542 = vmul.f32 %v2478, %v2093
  %v2543 = vmul.f32 %v2479, %v2094
  %v2544 = vmul.f32 %v2480, %v2095
  %v2545 = vmul.f32 %v2481, %v2096
  %v2546 = vmul.f32 %v2482, %v2097
  %v2547 = vmul.f32 %v2483, %v2098
  %v2548 = vmul.f32 %v2484, %v2099
  %v2549 = vmul.f32 %v2485, %v2100
  %v2550 = vmul.f32 %v2486, %v2101
  %v2551 = vmul.f32 %v2487, %v2102
  %v2552 = vmul.f32 %v2488, %v2103
  %v2553 = vmul.f32 %v2489, %v2104
  %v2554 = vmul.f32 %v2490, %v2105
  %v2555 = vmul.f32 %v2491, %v2106
  %v2556 = vmul.f32 %v2492, %v2107
  %v2557 = vmul.f32 %v2493, %v2108
  %v2558 = vmul.f32 %v2494, %v2109
  %v2559 = vmul.f32 %v2495, %v2110
  %v2560 = vmul.f32 %v2496, %v2111
  %v2561 = vmul.f32 %v2497, %v2112
  %v2562 = vmul.f32 %v2498, %v2113
  %v2563 = vmul.f32 %v2499, %v2114
  %v2564 = vsub.f32 %v2500, %v2051
  %v2565 = vsub.f32 %v2501, %v2052
  %v2566 = vsub.f32 %v2502, %v2053
  %v2567 = vsub.f32 %v2503, %v2054
  %v2568 = vsub.f32 %v2504, %v2055
  %v2569 = vsub.f32 %v2505, %v2056
  %v2570 = vsub.f32 %v2506, %v2057
  %v2571 = vsub.f32 %v2507, %v2058
  %v2572 = vsub.f32 %v2508, %v2059
  %v2573 = vsub.f32 %v2509, %v2060
  %v2574 = vsub.f32 %v2510, %v2061
  %v2575 = vsub.f32 %v2511, %v2062
  %v2576 = vsub.f32 %v2512, %v2063
  %v2577 = vsub.f32 %v2513, %v2064
  %v2578 = vsub.f32 %v2514, %v2065
  %v2579 = vsub.f32 %v2515, %v2066
  %v2580 = vsub.f32 %v2516, %v2067
  %v2581 = vsub.f32 %v2517, %v2068
  %v2582 = vsub.f32 %v2518, %v2069
  %v2583 = vsub.f32 %v2519, %v2070
  %v2584 = vsub.f32 %v2520, %v2071
  %v2585 = vsub.f32 %v2521, %v2072
  %v2586 = vsub.f32 %v2522, %v2073
  %v2587 = vsub.f32 %v2523, %v2074
  %v2588 = vsub.f32 %v2524, %v2075
  %v2589 = vsub.f32 %v2525, %v2076
  %v2590 = vsub.f32 %v2526, %v2077
  %v2591 = vsub.f32 %v2527, %v2078
  %v2592 = vsub.f32 %v2528, %v2079
  %v2593 = vsub.f32 %v2529, %v2080
  %v2594 = vsub.f32 %v2530, %v2081
  %v2595 = vsub.f32 %v2531, %v2082
  %v2596 = vsub.f32 %v2532, %v2083
  %v2597 = vsub.f32 %v2533, %v2084
  %v2598 = vsub.f32 %v2534, %v2085
  %v2599 = vsub.f32 %v2535, %v2086
  %v2600 = vsub.f32 %v2536, %v2087
  %v2601 = vsub.f32 %v2537, %v2088
  %v2602 = vsub.f32 %v2538, %v2089
  %v2603 = vsub.f32 %v2539, %v2090
  %v2604 = vsub.f32 %v2540, %v2091
  %v2605 = vsub.f32 %v2541, %v2092
  %v2606 = vsub.f32 %v2542, %v2093
  %v2607 = vsub.f32 %v2543, %v2094
  %v2608 = vsub.f32 %v2544, %v2095
  %v2609 = vsub.f32 %v2545, %v2096
  %v2610 = vsub.f32 %v2546, %v2097
  %v2611 = vsub.f32 %v2547, %v2098
  %v2612 = vsub.f32 %v2548, %v2099
  %v2613 = vsub.f32 %v2549, %v2100
  %v2614 = vsub.f32 %v2550, %v2101
  %v2615 = vsub.f32 %v2551, %v2102
  %v2616 = vsub.f32 %v2552, %v2103
  %v2617 = vsub.f32 %v2553, %v2104
  %v2618 = vsub.f32 %v2554, %v2105
  %v2619 = vsub.f32 %v2555, %v2106
  %v2620 = vsub.f32 %v2556, %v2107
  %v2621 = vsub.f32 %v2557, %v2108
  %v2622 = vsub.f32 %v2558, %v2109
  %v2623 = vsub.f32 %v2559, %v2110
  %v2624 = vsub.f32 %v2560, %v2111
  %v2625 = vsub.f32 %v2561, %v2112
  %v2626 = vsub.f32 %v2562, %v2113
  %v2627 = vsub.f32 %v2563, %v2114
  %2692 = vrot.lane.b32.xlu0 %v2564, 32
  %v2693 = vpop.permute.xlu0 %2692
  %2694 = vrot.lane.b32.xlu0 %v2565, 32
  %v2695 = vpop.permute.xlu0 %2694
  %2696 = vrot.lane.b32.xlu0 %v2566, 32
  %v2697 = vpop.permute.xlu0 %2696
  %2698 = vrot.lane.b32.xlu0 %v2567, 32
  %v2699 = vpop.permute.xlu0 %2698
  %2700 = vrot.lane.b32.xlu0 %v2568, 32
  %v2701 = vpop.permute.xlu0 %2700
  %2702 = vrot.lane.b32.xlu0 %v2569, 32
  %v2703 = vpop.permute.xlu0 %2702
  %2704 = vrot.lane.b32.xlu0 %v2570, 32
  %v2705 = vpop.permute.xlu0 %2704
  %2706 = vrot.lane.b32.xlu0 %v2571, 32
  %v2707 = vpop.permute.xlu0 %2706
  %2708 = vrot.lane.b32.xlu0 %v2572, 32
  %v2709 = vpop.permute.xlu0 %2708
  %2710 = vrot.lane.b32.xlu0 %v2573, 32
  %v2711 = vpop.permute.xlu0 %2710
  %2712 = vrot.lane.b32.xlu0 %v2574, 32
  %v2713 = vpop.permute.xlu0 %2712
  %2714 = vrot.lane.b32.xlu0 %v2575, 32
  %v2715 = vpop.permute.xlu0 %2714
  %2716 = vrot.lane.b32.xlu0 %v2576, 32
  %v2717 = vpop.permute.xlu0 %2716
  %2718 = vrot.lane.b32.xlu0 %v2577, 32
  %v2719 = vpop.permute.xlu0 %2718
  %2720 = vrot.lane.b32.xlu0 %v2578, 32
  %v2721 = vpop.permute.xlu0 %2720
  %2722 = vrot.lane.b32.xlu0 %v2579, 32
  %v2723 = vpop.permute.xlu0 %2722
  %2724 = vrot.lane.b32.xlu0 %v2580, 32
  %v2725 = vpop.permute.xlu0 %2724
  %2726 = vrot.lane.b32.xlu0 %v2581, 32
  %v2727 = vpop.permute.xlu0 %2726
  %2728 = vrot.lane.b32.xlu0 %v2582, 32
  %v2729 = vpop.permute.xlu0 %2728
  %2730 = vrot.lane.b32.xlu0 %v2583, 32
  %v2731 = vpop.permute.xlu0 %2730
  %2732 = vrot.lane.b32.xlu0 %v2584, 32
  %v2733 = vpop.permute.xlu0 %2732
  %2734 = vrot.lane.b32.xlu0 %v2585, 32
  %v2735 = vpop.permute.xlu0 %2734
  %2736 = vrot.lane.b32.xlu0 %v2586, 32
  %v2737 = vpop.permute.xlu0 %2736
  %2738 = vrot.lane.b32.xlu0 %v2587, 32
  %v2739 = vpop.permute.xlu0 %2738
  %2740 = vrot.lane.b32.xlu0 %v2588, 32
  %v2741 = vpop.permute.xlu0 %2740
  %2742 = vrot.lane.b32.xlu0 %v2589, 32
  %v2743 = vpop.permute.xlu0 %2742
  %2744 = vrot.lane.b32.xlu0 %v2590, 32
  %v2745 = vpop.permute.xlu0 %2744
  %2746 = vrot.lane.b32.xlu0 %v2591, 32
  %v2747 = vpop.permute.xlu0 %2746
  %2748 = vrot.lane.b32.xlu0 %v2592, 32
  %v2749 = vpop.permute.xlu0 %2748
  %2750 = vrot.lane.b32.xlu0 %v2593, 32
  %v2751 = vpop.permute.xlu0 %2750
  %2752 = vrot.lane.b32.xlu0 %v2594, 32
  %v2753 = vpop.permute.xlu0 %2752
  %2754 = vrot.lane.b32.xlu0 %v2595, 32
  %v2755 = vpop.permute.xlu0 %2754
  %2756 = vrot.lane.b32.xlu0 %v2596, 32
  %v2757 = vpop.permute.xlu0 %2756
  %2758 = vrot.lane.b32.xlu0 %v2597, 32
  %v2759 = vpop.permute.xlu0 %2758
  %2760 = vrot.lane.b32.xlu0 %v2598, 32
  %v2761 = vpop.permute.xlu0 %2760
  %2762 = vrot.lane.b32.xlu0 %v2599, 32
  %v2763 = vpop.permute.xlu0 %2762
  %2764 = vrot.lane.b32.xlu0 %v2600, 32
  %v2765 = vpop.permute.xlu0 %2764
  %2766 = vrot.lane.b32.xlu0 %v2601, 32
  %v2767 = vpop.permute.xlu0 %2766
  %2768 = vrot.lane.b32.xlu0 %v2602, 32
  %v2769 = vpop.permute.xlu0 %2768
  %2770 = vrot.lane.b32.xlu0 %v2603, 32
  %v2771 = vpop.permute.xlu0 %2770
  %2772 = vrot.lane.b32.xlu0 %v2604, 32
  %v2773 = vpop.permute.xlu0 %2772
  %2774 = vrot.lane.b32.xlu0 %v2605, 32
  %v2775 = vpop.permute.xlu0 %2774
  %2776 = vrot.lane.b32.xlu0 %v2606, 32
  %v2777 = vpop.permute.xlu0 %2776
  %2778 = vrot.lane.b32.xlu0 %v2607, 32
  %v2779 = vpop.permute.xlu0 %2778
  %2780 = vrot.lane.b32.xlu0 %v2608, 32
  %v2781 = vpop.permute.xlu0 %2780
  %2782 = vrot.lane.b32.xlu0 %v2609, 32
  %v2783 = vpop.permute.xlu0 %2782
  %2784 = vrot.lane.b32.xlu0 %v2610, 32
  %v2785 = vpop.permute.xlu0 %2784
  %2786 = vrot.lane.b32.xlu0 %v2611, 32
  %v2787 = vpop.permute.xlu0 %2786
  %2788 = vrot.lane.b32.xlu0 %v2612, 32
  %v2789 = vpop.permute.xlu0 %2788
  %2790 = vrot.lane.b32.xlu0 %v2613, 32
  %v2791 = vpop.permute.xlu0 %2790
  %2792 = vrot.lane.b32.xlu0 %v2614, 32
  %v2793 = vpop.permute.xlu0 %2792
  %2794 = vrot.lane.b32.xlu0 %v2615, 32
  %v2795 = vpop.permute.xlu0 %2794
  %2796 = vrot.lane.b32.xlu0 %v2616, 32
  %v2797 = vpop.permute.xlu0 %2796
  %2798 = vrot.lane.b32.xlu0 %v2617, 32
  %v2799 = vpop.permute.xlu0 %2798
  %2800 = vrot.lane.b32.xlu0 %v2618, 32
  %v2801 = vpop.permute.xlu0 %2800
  %2802 = vrot.lane.b32.xlu0 %v2619, 32
  %v2803 = vpop.permute.xlu0 %2802
  %2804 = vrot.lane.b32.xlu0 %v2620, 32
  %v2805 = vpop.permute.xlu0 %2804
  %2806 = vrot.lane.b32.xlu0 %v2621, 32
  %v2807 = vpop.permute.xlu0 %2806
  %2808 = vrot.lane.b32.xlu0 %v2622, 32
  %v2809 = vpop.permute.xlu0 %2808
  %2810 = vrot.lane.b32.xlu0 %v2623, 32
  %v2811 = vpop.permute.xlu0 %2810
  %2812 = vrot.lane.b32.xlu0 %v2624, 32
  %v2813 = vpop.permute.xlu0 %2812
  %2814 = vrot.lane.b32.xlu0 %v2625, 32
  %v2815 = vpop.permute.xlu0 %2814
  %2816 = vrot.lane.b32.xlu0 %v2626, 32
  %v2817 = vpop.permute.xlu0 %2816
  %2818 = vrot.lane.b32.xlu0 %v2627, 32
  %v2819 = vpop.permute.xlu0 %2818
  %vm2884 = vcmask 392448
  %2885 = vst.msk [vmem:[%s3] sm:$0xff] %vm2884, %v2693
  %2886 = vst.msk [vmem:[%s3 + $0x8] sm:$0xff] %vm2884, %v2695
  %2887 = vst.msk [vmem:[%s3 + $0x10] sm:$0xff] %vm2884, %v2697
  %2888 = vst.msk [vmem:[%s3 + $0x18] sm:$0xff] %vm2884, %v2699
  %2889 = vst.msk [vmem:[%s3 + $0x20] sm:$0xff] %vm2884, %v2701
  %2890 = vst.msk [vmem:[%s3 + $0x28] sm:$0xff] %vm2884, %v2703
  %2891 = vst.msk [vmem:[%s3 + $0x30] sm:$0xff] %vm2884, %v2705
  %2892 = vst.msk [vmem:[%s3 + $0x38] sm:$0xff] %vm2884, %v2707
  %2893 = vst.msk [vmem:[%s3 + $0x40] sm:$0xff] %vm2884, %v2709
  %2894 = vst.msk [vmem:[%s3 + $0x48] sm:$0xff] %vm2884, %v2711
  %2895 = vst.msk [vmem:[%s3 + $0x50] sm:$0xff] %vm2884, %v2713
  %2896 = vst.msk [vmem:[%s3 + $0x58] sm:$0xff] %vm2884, %v2715
  %2897 = vst.msk [vmem:[%s3 + $0x60] sm:$0xff] %vm2884, %v2717
  %2898 = vst.msk [vmem:[%s3 + $0x68] sm:$0xff] %vm2884, %v2719
  %2899 = vst.msk [vmem:[%s3 + $0x70] sm:$0xff] %vm2884, %v2721
  %2900 = vst.msk [vmem:[%s3 + $0x78] sm:$0xff] %vm2884, %v2723
  %2901 = vst.msk [vmem:[%s3 + $0x80] sm:$0xff] %vm2884, %v2725
  %2902 = vst.msk [vmem:[%s3 + $0x88] sm:$0xff] %vm2884, %v2727
  %2903 = vst.msk [vmem:[%s3 + $0x90] sm:$0xff] %vm2884, %v2729
  %2904 = vst.msk [vmem:[%s3 + $0x98] sm:$0xff] %vm2884, %v2731
  %2905 = vst.msk [vmem:[%s3 + $0xa0] sm:$0xff] %vm2884, %v2733
  %2906 = vst.msk [vmem:[%s3 + $0xa8] sm:$0xff] %vm2884, %v2735
  %2907 = vst.msk [vmem:[%s3 + $0xb0] sm:$0xff] %vm2884, %v2737
  %2908 = vst.msk [vmem:[%s3 + $0xb8] sm:$0xff] %vm2884, %v2739
  %2909 = vst.msk [vmem:[%s3 + $0xc0] sm:$0xff] %vm2884, %v2741
  %2910 = vst.msk [vmem:[%s3 + $0xc8] sm:$0xff] %vm2884, %v2743
  %2911 = vst.msk [vmem:[%s3 + $0xd0] sm:$0xff] %vm2884, %v2745
  %2912 = vst.msk [vmem:[%s3 + $0xd8] sm:$0xff] %vm2884, %v2747
  %2913 = vst.msk [vmem:[%s3 + $0xe0] sm:$0xff] %vm2884, %v2749
  %2914 = vst.msk [vmem:[%s3 + $0xe8] sm:$0xff] %vm2884, %v2751
  %2915 = vst.msk [vmem:[%s3 + $0xf0] sm:$0xff] %vm2884, %v2753
  %2916 = vst.msk [vmem:[%s3 + $0xf8] sm:$0xff] %vm2884, %v2755
  %2917 = vst.msk [vmem:[%s3 + $0x100] sm:$0xff] %vm2884, %v2757
  %2918 = vst.msk [vmem:[%s3 + $0x108] sm:$0xff] %vm2884, %v2759
  %2919 = vst.msk [vmem:[%s3 + $0x110] sm:$0xff] %vm2884, %v2761
  %2920 = vst.msk [vmem:[%s3 + $0x118] sm:$0xff] %vm2884, %v2763
  %2921 = vst.msk [vmem:[%s3 + $0x120] sm:$0xff] %vm2884, %v2765
  %2922 = vst.msk [vmem:[%s3 + $0x128] sm:$0xff] %vm2884, %v2767
  %2923 = vst.msk [vmem:[%s3 + $0x130] sm:$0xff] %vm2884, %v2769
  %2924 = vst.msk [vmem:[%s3 + $0x138] sm:$0xff] %vm2884, %v2771
  %2925 = vst.msk [vmem:[%s3 + $0x140] sm:$0xff] %vm2884, %v2773
  %2926 = vst.msk [vmem:[%s3 + $0x148] sm:$0xff] %vm2884, %v2775
  %2927 = vst.msk [vmem:[%s3 + $0x150] sm:$0xff] %vm2884, %v2777
  %2928 = vst.msk [vmem:[%s3 + $0x158] sm:$0xff] %vm2884, %v2779
  %2929 = vst.msk [vmem:[%s3 + $0x160] sm:$0xff] %vm2884, %v2781
  %2930 = vst.msk [vmem:[%s3 + $0x168] sm:$0xff] %vm2884, %v2783
  %2931 = vst.msk [vmem:[%s3 + $0x170] sm:$0xff] %vm2884, %v2785
  %2932 = vst.msk [vmem:[%s3 + $0x178] sm:$0xff] %vm2884, %v2787
  %2933 = vst.msk [vmem:[%s3 + $0x180] sm:$0xff] %vm2884, %v2789
  %2934 = vst.msk [vmem:[%s3 + $0x188] sm:$0xff] %vm2884, %v2791
  %2935 = vst.msk [vmem:[%s3 + $0x190] sm:$0xff] %vm2884, %v2793
  %2936 = vst.msk [vmem:[%s3 + $0x198] sm:$0xff] %vm2884, %v2795
  %2937 = vst.msk [vmem:[%s3 + $0x1a0] sm:$0xff] %vm2884, %v2797
  %2938 = vst.msk [vmem:[%s3 + $0x1a8] sm:$0xff] %vm2884, %v2799
  %2939 = vst.msk [vmem:[%s3 + $0x1b0] sm:$0xff] %vm2884, %v2801
  %2940 = vst.msk [vmem:[%s3 + $0x1b8] sm:$0xff] %vm2884, %v2803
  %2941 = vst.msk [vmem:[%s3 + $0x1c0] sm:$0xff] %vm2884, %v2805
  %2942 = vst.msk [vmem:[%s3 + $0x1c8] sm:$0xff] %vm2884, %v2807
  %2943 = vst.msk [vmem:[%s3 + $0x1d0] sm:$0xff] %vm2884, %v2809
  %2944 = vst.msk [vmem:[%s3 + $0x1d8] sm:$0xff] %vm2884, %v2811
  %2945 = vst.msk [vmem:[%s3 + $0x1e0] sm:$0xff] %vm2884, %v2813
  %2946 = vst.msk [vmem:[%s3 + $0x1e8] sm:$0xff] %vm2884, %v2815
  %2947 = vst.msk [vmem:[%s3 + $0x1f0] sm:$0xff] %vm2884, %v2817
  %2948 = vst.msk [vmem:[%s3 + $0x1f8] sm:$0xff] %vm2884, %v2819
  %v2949 = vlaneseq
  %v2950 = vshrl.u32 %v2949, 7
  %v2951 = vsub.s32 0, %v2950
  %v2952 = vrot.slane %v146, %v2951
  %v2953 = vsel %vm1403, %v2051, 0
  %v2955 = vsel %vm1403, %v2052, 0
  %v2957 = vsel %vm1403, %v2053, 0
  %v2959 = vsel %vm1403, %v2054, 0
  %v2961 = vsel %vm1403, %v2055, 0
  %v2963 = vsel %vm1403, %v2056, 0
  %v2965 = vsel %vm1403, %v2057, 0
  %v2967 = vsel %vm1403, %v2058, 0
  %v2969 = vsel %vm1403, %v2059, 0
  %v2971 = vsel %vm1403, %v2060, 0
  %v2973 = vsel %vm1403, %v2061, 0
  %v2975 = vsel %vm1403, %v2062, 0
  %v2977 = vsel %vm1403, %v2063, 0
  %v2979 = vsel %vm1403, %v2064, 0
  %v2981 = vsel %vm1403, %v2065, 0
  %v2983 = vsel %vm1403, %v2066, 0
  %v2985 = vsel %vm1403, %v2067, 0
  %v2987 = vsel %vm1403, %v2068, 0
  %v2989 = vsel %vm1403, %v2069, 0
  %v2991 = vsel %vm1403, %v2070, 0
  %v2993 = vsel %vm1403, %v2071, 0
  %v2995 = vsel %vm1403, %v2072, 0
  %v2997 = vsel %vm1403, %v2073, 0
  %v2999 = vsel %vm1403, %v2074, 0
  %v3001 = vsel %vm1403, %v2075, 0
  %v3003 = vsel %vm1403, %v2076, 0
  %v3005 = vsel %vm1403, %v2077, 0
  %v3007 = vsel %vm1403, %v2078, 0
  %v3009 = vsel %vm1403, %v2079, 0
  %v3011 = vsel %vm1403, %v2080, 0
  %v3013 = vsel %vm1403, %v2081, 0
  %v3015 = vsel %vm1403, %v2082, 0
  %v3017 = vsel %vm1403, %v2083, 0
  %v3019 = vsel %vm1403, %v2084, 0
  %v3021 = vsel %vm1403, %v2085, 0
  %v3023 = vsel %vm1403, %v2086, 0
  %v3025 = vsel %vm1403, %v2087, 0
  %v3027 = vsel %vm1403, %v2088, 0
  %v3029 = vsel %vm1403, %v2089, 0
  %v3031 = vsel %vm1403, %v2090, 0
  %v3033 = vsel %vm1403, %v2091, 0
  %v3035 = vsel %vm1403, %v2092, 0
  %v3037 = vsel %vm1403, %v2093, 0
  %v3039 = vsel %vm1403, %v2094, 0
  %v3041 = vsel %vm1403, %v2095, 0
  %v3043 = vsel %vm1403, %v2096, 0
  %v3045 = vsel %vm1403, %v2097, 0
  %v3047 = vsel %vm1403, %v2098, 0
  %v3049 = vsel %vm1403, %v2099, 0
  %v3051 = vsel %vm1403, %v2100, 0
  %v3053 = vsel %vm1403, %v2101, 0
  %v3055 = vsel %vm1403, %v2102, 0
  %v3057 = vsel %vm1403, %v2103, 0
  %v3059 = vsel %vm1403, %v2104, 0
  %v3061 = vsel %vm1403, %v2105, 0
  %v3063 = vsel %vm1403, %v2106, 0
  %v3065 = vsel %vm1403, %v2107, 0
  %v3067 = vsel %vm1403, %v2108, 0
  %v3069 = vsel %vm1403, %v2109, 0
  %v3071 = vsel %vm1403, %v2110, 0
  %v3073 = vsel %vm1403, %v2111, 0
  %v3075 = vsel %vm1403, %v2112, 0
  %v3077 = vsel %vm1403, %v2113, 0
  %v3079 = vsel %vm1403, %v2114, 0
  %3081 = vmatprep.subr.mxu0 0.0
  %3082 = vmatpush1.msra.mxu0 %v143
  %3083 = vmatprep.subr.mxu0 0.0
  %3084 = vmatpush1.msra.mxu0 %v144
  %3085 = vmatprep.subr.mxu0 0.0
  %3086 = vmatpush1.msra.mxu0 0.0
  %3087 = vmatprep.subr.mxu0 0.0
  %3088 = vmatpush1.msra.mxu0 0.0
  %3089 = vmatprep.subr.mxu0 0.0
  %3090 = vmatpush1.msra.mxu0 0.0
  %3091 = vmatprep.subr.mxu0 0.0
  %3092 = vmatpush1.msra.mxu0 0.0
  %3093 = vmatprep.subr.mxu0 0.0
  %3094 = vmatpush1.msra.mxu0 0.0
  %3095 = vmatprep.subr.mxu0 0.0
  %3096 = vmatpush1.msra.mxu0 0.0
  %3097 = vmatprep.subr.mxu0 0.0
  %3098 = vmatpush1.msra.mxu0 0.0
  %3099 = vmatprep.subr.mxu0 0.0
  %3100 = vmatpush1.msra.mxu0 0.0
  %3101 = vmatprep.subr.mxu0 0.0
  %3102 = vmatpush1.msra.mxu0 0.0
  %3103 = vmatprep.subr.mxu0 0.0
  %3104 = vmatpush1.msra.mxu0 0.0
  %3105 = vmatprep.subr.mxu0 0.0
  %3106 = vmatpush1.msra.mxu0 0.0
  %3107 = vmatprep.subr.mxu0 0.0
  %3108 = vmatpush1.msra.mxu0 0.0
  %3109 = vmatprep.subr.mxu0 0.0
  %3110 = vmatpush1.msra.mxu0 0.0
  %3111 = vmatprep.subr.mxu0 0.0
  %3112 = vmatpush1.msra.mxu0 0.0
  %3113 = vmatprep.subr.mxu0 0.0
  %3114 = vmatpush1.msra.mxu0 0.0
  %3115 = vmatprep.subr.mxu0 0.0
  %3116 = vmatpush1.msra.mxu0 0.0
  %3117 = vmatprep.subr.mxu0 0.0
  %3118 = vmatpush1.msra.mxu0 0.0
  %3119 = vmatprep.subr.mxu0 0.0
  %3120 = vmatpush1.msra.mxu0 0.0
  %3121 = vmatprep.subr.mxu0 0.0
  %3122 = vmatpush1.msra.mxu0 0.0
  %3123 = vmatprep.subr.mxu0 0.0
  %3124 = vmatpush1.msra.mxu0 0.0
  %3125 = vmatprep.subr.mxu0 0.0
  %3126 = vmatpush1.msra.mxu0 0.0
  %3127 = vmatprep.subr.mxu0 0.0
  %3128 = vmatpush1.msra.mxu0 0.0
  %3129 = vmatprep.subr.mxu0 0.0
  %3130 = vmatpush1.msra.mxu0 0.0
  %3131 = vmatprep.subr.mxu0 0.0
  %3132 = vmatpush1.msra.mxu0 0.0
  %3133 = vmatprep.subr.mxu0 0.0
  %3134 = vmatpush1.msra.mxu0 0.0
  %3135 = vmatprep.subr.mxu0 0.0
  %3136 = vmatpush1.msra.mxu0 0.0
  %3137 = vmatprep.subr.mxu0 0.0
  %3138 = vmatpush1.msra.mxu0 0.0
  %3139 = vmatprep.subr.mxu0 0.0
  %3140 = vmatpush1.msra.mxu0 0.0
  %3141 = vmatprep.subr.mxu0 0.0
  %3142 = vmatpush1.msra.mxu0 0.0
  %3143 = vmatprep.subr.mxu0 0.0
  %3144 = vmatpush1.msra.mxu0 0.0
  %3145 = vmatprep.mubr.f32.mxu0 0.0
  %3146 = vmatmul.mubr.f32.gmra.mrb[0].mxu0 %v2953
  %v3147 = vpop.f32.mrb[0].mxu0
  %v3148 = vadd.f32 %v2952, %v3147
  %v3149 = vpop.f32.mrb[0].mxu0
  %3150 = vmatprep.mubr.f32.mxu0 0.0
  %3151 = vmatmul.mubr.f32.gmra.mrb[0].mxu0 %v2955
  %v3152 = vpop.f32.mrb[0].mxu0
  %v3153 = vadd.f32 %v2952, %v3152
  %v3154 = vpop.f32.mrb[0].mxu0
  %3155 = vmatprep.mubr.f32.mxu0 0.0
  %3156 = vmatmul.mubr.f32.gmra.mrb[0].mxu0 %v2957
  %v3157 = vpop.f32.mrb[0].mxu0
  %v3158 = vadd.f32 %v2952, %v3157
  %v3159 = vpop.f32.mrb[0].mxu0
  %3160 = vmatprep.mubr.f32.mxu0 0.0
  %3161 = vmatmul.mubr.f32.gmra.mrb[0].mxu0 %v2959
  %v3162 = vpop.f32.mrb[0].mxu0
  %v3163 = vadd.f32 %v2952, %v3162
  %v3164 = vpop.f32.mrb[0].mxu0
  %3165 = vmatprep.mubr.f32.mxu0 0.0
  %3166 = vmatmul.mubr.f32.gmra.mrb[0].mxu0 %v2961
  %v3167 = vpop.f32.mrb[0].mxu0
  %v3168 = vadd.f32 %v2952, %v3167
  %v3169 = vpop.f32.mrb[0].mxu0
  %3170 = vmatprep.mubr.f32.mxu0 0.0
  %3171 = vmatmul.mubr.f32.gmra.mrb[0].mxu0 %v2963
  %v3172 = vpop.f32.mrb[0].mxu0
  %v3173 = vadd.f32 %v2952, %v3172
  %v3174 = vpop.f32.mrb[0].mxu0
  %3175 = vmatprep.mubr.f32.mxu0 0.0
  %3176 = vmatmul.mubr.f32.gmra.mrb[0].mxu0 %v2965
  %v3177 = vpop.f32.mrb[0].mxu0
  %v3178 = vadd.f32 %v2952, %v3177
  %v3179 = vpop.f32.mrb[0].mxu0
  %3180 = vmatprep.mubr.f32.mxu0 0.0
  %3181 = vmatmul.mubr.f32.gmra.mrb[0].mxu0 %v2967
  %v3182 = vpop.f32.mrb[0].mxu0
  %v3183 = vadd.f32 %v2952, %v3182
  %v3184 = vpop.f32.mrb[0].mxu0
  %3185 = vmatprep.mubr.f32.mxu0 0.0
  %3186 = vmatmul.mubr.f32.gmra.mrb[0].mxu0 %v2969
  %v3187 = vpop.f32.mrb[0].mxu0
  %v3188 = vadd.f32 %v2952, %v3187
  %v3189 = vpop.f32.mrb[0].mxu0
  %3190 = vmatprep.mubr.f32.mxu0 0.0
  %3191 = vmatmul.mubr.f32.gmra.mrb[0].mxu0 %v2971
  %v3192 = vpop.f32.mrb[0].mxu0
  %v3193 = vadd.f32 %v2952, %v3192
  %v3194 = vpop.f32.mrb[0].mxu0
  %3195 = vmatprep.mubr.f32.mxu0 0.0
  %3196 = vmatmul.mubr.f32.gmra.mrb[0].mxu0 %v2973
  %v3197 = vpop.f32.mrb[0].mxu0
  %v3198 = vadd.f32 %v2952, %v3197
  %v3199 = vpop.f32.mrb[0].mxu0
  %3200 = vmatprep.mubr.f32.mxu0 0.0
  %3201 = vmatmul.mubr.f32.gmra.mrb[0].mxu0 %v2975
  %v3202 = vpop.f32.mrb[0].mxu0
  %v3203 = vadd.f32 %v2952, %v3202
  %v3204 = vpop.f32.mrb[0].mxu0
  %3205 = vmatprep.mubr.f32.mxu0 0.0
  %3206 = vmatmul.mubr.f32.gmra.mrb[0].mxu0 %v2977
  %v3207 = vpop.f32.mrb[0].mxu0
  %v3208 = vadd.f32 %v2952, %v3207
  %v3209 = vpop.f32.mrb[0].mxu0
  %3210 = vmatprep.mubr.f32.mxu0 0.0
  %3211 = vmatmul.mubr.f32.gmra.mrb[0].mxu0 %v2979
  %v3212 = vpop.f32.mrb[0].mxu0
  %v3213 = vadd.f32 %v2952, %v3212
  %v3214 = vpop.f32.mrb[0].mxu0
  %3215 = vmatprep.mubr.f32.mxu0 0.0
  %3216 = vmatmul.mubr.f32.gmra.mrb[0].mxu0 %v2981
  %v3217 = vpop.f32.mrb[0].mxu0
  %v3218 = vadd.f32 %v2952, %v3217
  %v3219 = vpop.f32.mrb[0].mxu0
  %3220 = vmatprep.mubr.f32.mxu0 0.0
  %3221 = vmatmul.mubr.f32.gmra.mrb[0].mxu0 %v2983
  %v3222 = vpop.f32.mrb[0].mxu0
  %v3223 = vadd.f32 %v2952, %v3222
  %v3224 = vpop.f32.mrb[0].mxu0
  %3225 = vmatprep.mubr.f32.mxu0 0.0
  %3226 = vmatmul.mubr.f32.gmra.mrb[0].mxu0 %v2985
  %v3227 = vpop.f32.mrb[0].mxu0
  %v3228 = vadd.f32 %v2952, %v3227
  %v3229 = vpop.f32.mrb[0].mxu0
  %3230 = vmatprep.mubr.f32.mxu0 0.0
  %3231 = vmatmul.mubr.f32.gmra.mrb[0].mxu0 %v2987
  %v3232 = vpop.f32.mrb[0].mxu0
  %v3233 = vadd.f32 %v2952, %v3232
  %v3234 = vpop.f32.mrb[0].mxu0
  %3235 = vmatprep.mubr.f32.mxu0 0.0
  %3236 = vmatmul.mubr.f32.gmra.mrb[0].mxu0 %v2989
  %v3237 = vpop.f32.mrb[0].mxu0
  %v3238 = vadd.f32 %v2952, %v3237
  %v3239 = vpop.f32.mrb[0].mxu0
  %3240 = vmatprep.mubr.f32.mxu0 0.0
  %3241 = vmatmul.mubr.f32.gmra.mrb[0].mxu0 %v2991
  %v3242 = vpop.f32.mrb[0].mxu0
  %v3243 = vadd.f32 %v2952, %v3242
  %v3244 = vpop.f32.mrb[0].mxu0
  %3245 = vmatprep.mubr.f32.mxu0 0.0
  %3246 = vmatmul.mubr.f32.gmra.mrb[0].mxu0 %v2993
  %v3247 = vpop.f32.mrb[0].mxu0
  %v3248 = vadd.f32 %v2952, %v3247
  %v3249 = vpop.f32.mrb[0].mxu0
  %3250 = vmatprep.mubr.f32.mxu0 0.0
  %3251 = vmatmul.mubr.f32.gmra.mrb[0].mxu0 %v2995
  %v3252 = vpop.f32.mrb[0].mxu0
  %v3253 = vadd.f32 %v2952, %v3252
  %v3254 = vpop.f32.mrb[0].mxu0
  %3255 = vmatprep.mubr.f32.mxu0 0.0
  %3256 = vmatmul.mubr.f32.gmra.mrb[0].mxu0 %v2997
  %v3257 = vpop.f32.mrb[0].mxu0
  %v3258 = vadd.f32 %v2952, %v3257
  %v3259 = vpop.f32.mrb[0].mxu0
  %3260 = vmatprep.mubr.f32.mxu0 0.0
  %3261 = vmatmul.mubr.f32.gmra.mrb[0].mxu0 %v2999
  %v3262 = vpop.f32.mrb[0].mxu0
  %v3263 = vadd.f32 %v2952, %v3262
  %v3264 = vpop.f32.mrb[0].mxu0
  %3265 = vmatprep.mubr.f32.mxu0 0.0
  %3266 = vmatmul.mubr.f32.gmra.mrb[0].mxu0 %v3001
  %v3267 = vpop.f32.mrb[0].mxu0
  %v3268 = vadd.f32 %v2952, %v3267
  %v3269 = vpop.f32.mrb[0].mxu0
  %3270 = vmatprep.mubr.f32.mxu0 0.0
  %3271 = vmatmul.mubr.f32.gmra.mrb[0].mxu0 %v3003
  %v3272 = vpop.f32.mrb[0].mxu0
  %v3273 = vadd.f32 %v2952, %v3272
  %v3274 = vpop.f32.mrb[0].mxu0
  %3275 = vmatprep.mubr.f32.mxu0 0.0
  %3276 = vmatmul.mubr.f32.gmra.mrb[0].mxu0 %v3005
  %v3277 = vpop.f32.mrb[0].mxu0
  %v3278 = vadd.f32 %v2952, %v3277
  %v3279 = vpop.f32.mrb[0].mxu0
  %3280 = vmatprep.mubr.f32.mxu0 0.0
  %3281 = vmatmul.mubr.f32.gmra.mrb[0].mxu0 %v3007
  %v3282 = vpop.f32.mrb[0].mxu0
  %v3283 = vadd.f32 %v2952, %v3282
  %v3284 = vpop.f32.mrb[0].mxu0
  %3285 = vmatprep.mubr.f32.mxu0 0.0
  %3286 = vmatmul.mubr.f32.gmra.mrb[0].mxu0 %v3009
  %v3287 = vpop.f32.mrb[0].mxu0
  %v3288 = vadd.f32 %v2952, %v3287
  %v3289 = vpop.f32.mrb[0].mxu0
  %3290 = vmatprep.mubr.f32.mxu0 0.0
  %3291 = vmatmul.mubr.f32.gmra.mrb[0].mxu0 %v3011
  %v3292 = vpop.f32.mrb[0].mxu0
  %v3293 = vadd.f32 %v2952, %v3292
  %v3294 = vpop.f32.mrb[0].mxu0
  %3295 = vmatprep.mubr.f32.mxu0 0.0
  %3296 = vmatmul.mubr.f32.gmra.mrb[0].mxu0 %v3013
  %v3297 = vpop.f32.mrb[0].mxu0
  %v3298 = vadd.f32 %v2952, %v3297
  %v3299 = vpop.f32.mrb[0].mxu0
  %3300 = vmatprep.mubr.f32.mxu0 0.0
  %3301 = vmatmul.mubr.f32.gmra.mrb[0].mxu0 %v3015
  %v3302 = vpop.f32.mrb[0].mxu0
  %v3303 = vadd.f32 %v2952, %v3302
  %v3304 = vpop.f32.mrb[0].mxu0
  %3305 = vmatprep.mubr.f32.mxu0 0.0
  %3306 = vmatmul.mubr.f32.gmra.mrb[0].mxu0 %v3017
  %v3307 = vpop.f32.mrb[0].mxu0
  %v3308 = vadd.f32 %v2952, %v3307
  %v3309 = vpop.f32.mrb[0].mxu0
  %3310 = vmatprep.mubr.f32.mxu0 0.0
  %3311 = vmatmul.mubr.f32.gmra.mrb[0].mxu0 %v3019
  %v3312 = vpop.f32.mrb[0].mxu0
  %v3313 = vadd.f32 %v2952, %v3312
  %v3314 = vpop.f32.mrb[0].mxu0
  %3315 = vmatprep.mubr.f32.mxu0 0.0
  %3316 = vmatmul.mubr.f32.gmra.mrb[0].mxu0 %v3021
  %v3317 = vpop.f32.mrb[0].mxu0
  %v3318 = vadd.f32 %v2952, %v3317
  %v3319 = vpop.f32.mrb[0].mxu0
  %3320 = vmatprep.mubr.f32.mxu0 0.0
  %3321 = vmatmul.mubr.f32.gmra.mrb[0].mxu0 %v3023
  %v3322 = vpop.f32.mrb[0].mxu0
  %v3323 = vadd.f32 %v2952, %v3322
  %v3324 = vpop.f32.mrb[0].mxu0
  %3325 = vmatprep.mubr.f32.mxu0 0.0
  %3326 = vmatmul.mubr.f32.gmra.mrb[0].mxu0 %v3025
  %v3327 = vpop.f32.mrb[0].mxu0
  %v3328 = vadd.f32 %v2952, %v3327
  %v3329 = vpop.f32.mrb[0].mxu0
  %3330 = vmatprep.mubr.f32.mxu0 0.0
  %3331 = vmatmul.mubr.f32.gmra.mrb[0].mxu0 %v3027
  %v3332 = vpop.f32.mrb[0].mxu0
  %v3333 = vadd.f32 %v2952, %v3332
  %v3334 = vpop.f32.mrb[0].mxu0
  %3335 = vmatprep.mubr.f32.mxu0 0.0
  %3336 = vmatmul.mubr.f32.gmra.mrb[0].mxu0 %v3029
  %v3337 = vpop.f32.mrb[0].mxu0
  %v3338 = vadd.f32 %v2952, %v3337
  %v3339 = vpop.f32.mrb[0].mxu0
  %3340 = vmatprep.mubr.f32.mxu0 0.0
  %3341 = vmatmul.mubr.f32.gmra.mrb[0].mxu0 %v3031
  %v3342 = vpop.f32.mrb[0].mxu0
  %v3343 = vadd.f32 %v2952, %v3342
  %v3344 = vpop.f32.mrb[0].mxu0
  %3345 = vmatprep.mubr.f32.mxu0 0.0
  %3346 = vmatmul.mubr.f32.gmra.mrb[0].mxu0 %v3033
  %v3347 = vpop.f32.mrb[0].mxu0
  %v3348 = vadd.f32 %v2952, %v3347
  %v3349 = vpop.f32.mrb[0].mxu0
  %3350 = vmatprep.mubr.f32.mxu0 0.0
  %3351 = vmatmul.mubr.f32.gmra.mrb[0].mxu0 %v3035
  %v3352 = vpop.f32.mrb[0].mxu0
  %v3353 = vadd.f32 %v2952, %v3352
  %v3354 = vpop.f32.mrb[0].mxu0
  %3355 = vmatprep.mubr.f32.mxu0 0.0
  %3356 = vmatmul.mubr.f32.gmra.mrb[0].mxu0 %v3037
  %v3357 = vpop.f32.mrb[0].mxu0
  %v3358 = vadd.f32 %v2952, %v3357
  %v3359 = vpop.f32.mrb[0].mxu0
  %3360 = vmatprep.mubr.f32.mxu0 0.0
  %3361 = vmatmul.mubr.f32.gmra.mrb[0].mxu0 %v3039
  %v3362 = vpop.f32.mrb[0].mxu0
  %v3363 = vadd.f32 %v2952, %v3362
  %v3364 = vpop.f32.mrb[0].mxu0
  %3365 = vmatprep.mubr.f32.mxu0 0.0
  %3366 = vmatmul.mubr.f32.gmra.mrb[0].mxu0 %v3041
  %v3367 = vpop.f32.mrb[0].mxu0
  %v3368 = vadd.f32 %v2952, %v3367
  %v3369 = vpop.f32.mrb[0].mxu0
  %3370 = vmatprep.mubr.f32.mxu0 0.0
  %3371 = vmatmul.mubr.f32.gmra.mrb[0].mxu0 %v3043
  %v3372 = vpop.f32.mrb[0].mxu0
  %v3373 = vadd.f32 %v2952, %v3372
  %v3374 = vpop.f32.mrb[0].mxu0
  %3375 = vmatprep.mubr.f32.mxu0 0.0
  %3376 = vmatmul.mubr.f32.gmra.mrb[0].mxu0 %v3045
  %v3377 = vpop.f32.mrb[0].mxu0
  %v3378 = vadd.f32 %v2952, %v3377
  %v3379 = vpop.f32.mrb[0].mxu0
  %3380 = vmatprep.mubr.f32.mxu0 0.0
  %3381 = vmatmul.mubr.f32.gmra.mrb[0].mxu0 %v3047
  %v3382 = vpop.f32.mrb[0].mxu0
  %v3383 = vadd.f32 %v2952, %v3382
  %v3384 = vpop.f32.mrb[0].mxu0
  %3385 = vmatprep.mubr.f32.mxu0 0.0
  %3386 = vmatmul.mubr.f32.gmra.mrb[0].mxu0 %v3049
  %v3387 = vpop.f32.mrb[0].mxu0
  %v3388 = vadd.f32 %v2952, %v3387
  %v3389 = vpop.f32.mrb[0].mxu0
  %3390 = vmatprep.mubr.f32.mxu0 0.0
  %3391 = vmatmul.mubr.f32.gmra.mrb[0].mxu0 %v3051
  %v3392 = vpop.f32.mrb[0].mxu0
  %v3393 = vadd.f32 %v2952, %v3392
  %v3394 = vpop.f32.mrb[0].mxu0
  %3395 = vmatprep.mubr.f32.mxu0 0.0
  %3396 = vmatmul.mubr.f32.gmra.mrb[0].mxu0 %v3053
  %v3397 = vpop.f32.mrb[0].mxu0
  %v3398 = vadd.f32 %v2952, %v3397
  %v3399 = vpop.f32.mrb[0].mxu0
  %3400 = vmatprep.mubr.f32.mxu0 0.0
  %3401 = vmatmul.mubr.f32.gmra.mrb[0].mxu0 %v3055
  %v3402 = vpop.f32.mrb[0].mxu0
  %v3403 = vadd.f32 %v2952, %v3402
  %v3404 = vpop.f32.mrb[0].mxu0
  %3405 = vmatprep.mubr.f32.mxu0 0.0
  %3406 = vmatmul.mubr.f32.gmra.mrb[0].mxu0 %v3057
  %v3407 = vpop.f32.mrb[0].mxu0
  %v3408 = vadd.f32 %v2952, %v3407
  %v3409 = vpop.f32.mrb[0].mxu0
  %3410 = vmatprep.mubr.f32.mxu0 0.0
  %3411 = vmatmul.mubr.f32.gmra.mrb[0].mxu0 %v3059
  %v3412 = vpop.f32.mrb[0].mxu0
  %v3413 = vadd.f32 %v2952, %v3412
  %v3414 = vpop.f32.mrb[0].mxu0
  %3415 = vmatprep.mubr.f32.mxu0 0.0
  %3416 = vmatmul.mubr.f32.gmra.mrb[0].mxu0 %v3061
  %v3417 = vpop.f32.mrb[0].mxu0
  %v3418 = vadd.f32 %v2952, %v3417
  %v3419 = vpop.f32.mrb[0].mxu0
  %3420 = vmatprep.mubr.f32.mxu0 0.0
  %3421 = vmatmul.mubr.f32.gmra.mrb[0].mxu0 %v3063
  %v3422 = vpop.f32.mrb[0].mxu0
  %v3423 = vadd.f32 %v2952, %v3422
  %v3424 = vpop.f32.mrb[0].mxu0
  %3425 = vmatprep.mubr.f32.mxu0 0.0
  %3426 = vmatmul.mubr.f32.gmra.mrb[0].mxu0 %v3065
  %v3427 = vpop.f32.mrb[0].mxu0
  %v3428 = vadd.f32 %v2952, %v3427
  %v3429 = vpop.f32.mrb[0].mxu0
  %3430 = vmatprep.mubr.f32.mxu0 0.0
  %3431 = vmatmul.mubr.f32.gmra.mrb[0].mxu0 %v3067
  %v3432 = vpop.f32.mrb[0].mxu0
  %v3433 = vadd.f32 %v2952, %v3432
  %v3434 = vpop.f32.mrb[0].mxu0
  %3435 = vmatprep.mubr.f32.mxu0 0.0
  %3436 = vmatmul.mubr.f32.gmra.mrb[0].mxu0 %v3069
  %v3437 = vpop.f32.mrb[0].mxu0
  %v3438 = vadd.f32 %v2952, %v3437
  %v3439 = vpop.f32.mrb[0].mxu0
  %3440 = vmatprep.mubr.f32.mxu0 0.0
  %3441 = vmatmul.mubr.f32.gmra.mrb[0].mxu0 %v3071
  %v3442 = vpop.f32.mrb[0].mxu0
  %v3443 = vadd.f32 %v2952, %v3442
  %v3444 = vpop.f32.mrb[0].mxu0
  %3445 = vmatprep.mubr.f32.mxu0 0.0
  %3446 = vmatmul.mubr.f32.gmra.mrb[0].mxu0 %v3073
  %v3447 = vpop.f32.mrb[0].mxu0
  %v3448 = vadd.f32 %v2952, %v3447
  %v3449 = vpop.f32.mrb[0].mxu0
  %3450 = vmatprep.mubr.f32.mxu0 0.0
  %3451 = vmatmul.mubr.f32.gmra.mrb[0].mxu0 %v3075
  %v3452 = vpop.f32.mrb[0].mxu0
  %v3453 = vadd.f32 %v2952, %v3452
  %v3454 = vpop.f32.mrb[0].mxu0
  %3455 = vmatprep.mubr.f32.mxu0 0.0
  %3456 = vmatmul.mubr.f32.gmra.mrb[0].mxu0 %v3077
  %v3457 = vpop.f32.mrb[0].mxu0
  %v3458 = vadd.f32 %v2952, %v3457
  %v3459 = vpop.f32.mrb[0].mxu0
  %3460 = vmatprep.mubr.f32.mxu0 0.0
  %3461 = vmatmul.mubr.f32.gmra.mrb[0].mxu0 %v3079
  %v3462 = vpop.f32.mrb[0].mxu0
  %v3463 = vadd.f32 %v2952, %v3462
  %v3464 = vpop.f32.mrb[0].mxu0
  %3465 = vdwg.mxu0
  %v3466 = vtanh.pop %v3148
  %v3467 = vtanh.pop %v3153
  %v3468 = vtanh.pop %v3158
  %v3469 = vtanh.pop %v3163
  %v3470 = vtanh.pop %v3168
  %v3471 = vtanh.pop %v3173
  %v3472 = vtanh.pop %v3178
  %v3473 = vtanh.pop %v3183
  %v3474 = vtanh.pop %v3188
  %v3475 = vtanh.pop %v3193
  %v3476 = vtanh.pop %v3198
  %v3477 = vtanh.pop %v3203
  %v3478 = vtanh.pop %v3208
  %v3479 = vtanh.pop %v3213
  %v3480 = vtanh.pop %v3218
  %v3481 = vtanh.pop %v3223
  %v3482 = vtanh.pop %v3228
  %v3483 = vtanh.pop %v3233
  %v3484 = vtanh.pop %v3238
  %v3485 = vtanh.pop %v3243
  %v3486 = vtanh.pop %v3248
  %v3487 = vtanh.pop %v3253
  %v3488 = vtanh.pop %v3258
  %v3489 = vtanh.pop %v3263
  %v3490 = vtanh.pop %v3268
  %v3491 = vtanh.pop %v3273
  %v3492 = vtanh.pop %v3278
  %v3493 = vtanh.pop %v3283
  %v3494 = vtanh.pop %v3288
  %v3495 = vtanh.pop %v3293
  %v3496 = vtanh.pop %v3298
  %v3497 = vtanh.pop %v3303
  %v3498 = vtanh.pop %v3308
  %v3499 = vtanh.pop %v3313
  %v3500 = vtanh.pop %v3318
  %v3501 = vtanh.pop %v3323
  %v3502 = vtanh.pop %v3328
  %v3503 = vtanh.pop %v3333
  %v3504 = vtanh.pop %v3338
  %v3505 = vtanh.pop %v3343
  %v3506 = vtanh.pop %v3348
  %v3507 = vtanh.pop %v3353
  %v3508 = vtanh.pop %v3358
  %v3509 = vtanh.pop %v3363
  %v3510 = vtanh.pop %v3368
  %v3511 = vtanh.pop %v3373
  %v3512 = vtanh.pop %v3378
  %v3513 = vtanh.pop %v3383
  %v3514 = vtanh.pop %v3388
  %v3515 = vtanh.pop %v3393
  %v3516 = vtanh.pop %v3398
  %v3517 = vtanh.pop %v3403
  %v3518 = vtanh.pop %v3408
  %v3519 = vtanh.pop %v3413
  %v3520 = vtanh.pop %v3418
  %v3521 = vtanh.pop %v3423
  %v3522 = vtanh.pop %v3428
  %v3523 = vtanh.pop %v3433
  %v3524 = vtanh.pop %v3438
  %v3525 = vtanh.pop %v3443
  %v3526 = vtanh.pop %v3448
  %v3527 = vtanh.pop %v3453
  %v3528 = vtanh.pop %v3458
  %v3529 = vtanh.pop %v3463
  %v3530 = vlaneseq
  %v3531 = vshrl.u32 %v3530, 7
  %v3532 = vsub.s32 0, %v3531
  %v3533 = vrot.slane %v154, %v3532
  %3538 = vrot.lane.b32.xlu0 %v148, 96
  %v3539 = vpop.permute.xlu0 %3538
  %3540 = vrot.lane.b32.xlu0 %v149, 96
  %v3541 = vpop.permute.xlu0 %3540
  %3542 = vrot.lane.b32.xlu0 %v150, 96
  %v3543 = vpop.permute.xlu0 %3542
  %3544 = vrot.lane.b32.xlu0 %v151, 96
  %v3545 = vpop.permute.xlu0 %3544
  %3551 = vrot.lane.b32.xlu0 %v3533, 96
  %v3552 = vpop.permute.xlu0 %3551
  %v3555 = vsel %vm825, %v3466, 0
  %v3558 = vsel %vm825, %v3467, 0
  %v3561 = vsel %vm825, %v3468, 0
  %v3564 = vsel %vm825, %v3469, 0
  %v3567 = vsel %vm825, %v3470, 0
  %v3570 = vsel %vm825, %v3471, 0
  %v3573 = vsel %vm825, %v3472, 0
  %v3576 = vsel %vm825, %v3473, 0
  %v3579 = vsel %vm825, %v3474, 0
  %v3582 = vsel %vm825, %v3475, 0
  %v3585 = vsel %vm825, %v3476, 0
  %v3588 = vsel %vm825, %v3477, 0
  %v3591 = vsel %vm825, %v3478, 0
  %v3594 = vsel %vm825, %v3479, 0
  %v3597 = vsel %vm825, %v3480, 0
  %v3600 = vsel %vm825, %v3481, 0
  %v3603 = vsel %vm825, %v3482, 0
  %v3606 = vsel %vm825, %v3483, 0
  %v3609 = vsel %vm825, %v3484, 0
  %v3612 = vsel %vm825, %v3485, 0
  %v3615 = vsel %vm825, %v3486, 0
  %v3618 = vsel %vm825, %v3487, 0
  %v3621 = vsel %vm825, %v3488, 0
  %v3624 = vsel %vm825, %v3489, 0
  %v3627 = vsel %vm825, %v3490, 0
  %v3630 = vsel %vm825, %v3491, 0
  %v3633 = vsel %vm825, %v3492, 0
  %v3636 = vsel %vm825, %v3493, 0
  %v3639 = vsel %vm825, %v3494, 0
  %v3642 = vsel %vm825, %v3495, 0
  %v3645 = vsel %vm825, %v3496, 0
  %v3648 = vsel %vm825, %v3497, 0
  %v3651 = vsel %vm825, %v3498, 0
  %v3654 = vsel %vm825, %v3499, 0
  %v3657 = vsel %vm825, %v3500, 0
  %v3660 = vsel %vm825, %v3501, 0
  %v3663 = vsel %vm825, %v3502, 0
  %v3666 = vsel %vm825, %v3503, 0
  %v3669 = vsel %vm825, %v3504, 0
  %v3672 = vsel %vm825, %v3505, 0
  %v3675 = vsel %vm825, %v3506, 0
  %v3678 = vsel %vm825, %v3507, 0
  %v3681 = vsel %vm825, %v3508, 0
  %v3684 = vsel %vm825, %v3509, 0
  %v3687 = vsel %vm825, %v3510, 0
  %v3690 = vsel %vm825, %v3511, 0
  %v3693 = vsel %vm825, %v3512, 0
  %v3696 = vsel %vm825, %v3513, 0
  %v3699 = vsel %vm825, %v3514, 0
  %v3702 = vsel %vm825, %v3515, 0
  %v3705 = vsel %vm825, %v3516, 0
  %v3708 = vsel %vm825, %v3517, 0
  %v3711 = vsel %vm825, %v3518, 0
  %v3714 = vsel %vm825, %v3519, 0
  %v3717 = vsel %vm825, %v3520, 0
  %v3720 = vsel %vm825, %v3521, 0
  %v3723 = vsel %vm825, %v3522, 0
  %v3726 = vsel %vm825, %v3523, 0
  %v3729 = vsel %vm825, %v3524, 0
  %v3732 = vsel %vm825, %v3525, 0
  %v3735 = vsel %vm825, %v3526, 0
  %v3738 = vsel %vm825, %v3527, 0
  %v3741 = vsel %vm825, %v3528, 0
  %v3744 = vsel %vm825, %v3529, 0
  %3746 = vmatprep.subr.mxu0 0.0
  %3747 = vmatpush1.msra.mxu0 %v3539
  %3748 = vmatprep.subr.mxu0 0.0
  %3749 = vmatpush1.msra.mxu0 %v3541
  %3750 = vmatprep.subr.mxu0 0.0
  %3751 = vmatpush1.msra.mxu0 %v3543
  %3752 = vmatprep.subr.mxu0 0.0
  %3753 = vmatpush1.msra.mxu0 %v3545
  %3754 = vmatprep.subr.mxu0 0.0
  %3755 = vmatpush1.msra.mxu0 0.0
  %3756 = vmatprep.subr.mxu0 0.0
  %3757 = vmatpush1.msra.mxu0 0.0
  %3758 = vmatprep.subr.mxu0 0.0
  %3759 = vmatpush1.msra.mxu0 0.0
  %3760 = vmatprep.subr.mxu0 0.0
  %3761 = vmatpush1.msra.mxu0 0.0
  %3762 = vmatprep.subr.mxu0 0.0
  %3763 = vmatpush1.msra.mxu0 0.0
  %3764 = vmatprep.subr.mxu0 0.0
  %3765 = vmatpush1.msra.mxu0 0.0
  %3766 = vmatprep.subr.mxu0 0.0
  %3767 = vmatpush1.msra.mxu0 0.0
  %3768 = vmatprep.subr.mxu0 0.0
  %3769 = vmatpush1.msra.mxu0 0.0
  %3770 = vmatprep.subr.mxu0 0.0
  %3771 = vmatpush1.msra.mxu0 0.0
  %3772 = vmatprep.subr.mxu0 0.0
  %3773 = vmatpush1.msra.mxu0 0.0
  %3774 = vmatprep.subr.mxu0 0.0
  %3775 = vmatpush1.msra.mxu0 0.0
  %3776 = vmatprep.subr.mxu0 0.0
  %3777 = vmatpush1.msra.mxu0 0.0
  %3778 = vmatprep.subr.mxu0 0.0
  %3779 = vmatpush1.msra.mxu0 0.0
  %3780 = vmatprep.subr.mxu0 0.0
  %3781 = vmatpush1.msra.mxu0 0.0
  %3782 = vmatprep.subr.mxu0 0.0
  %3783 = vmatpush1.msra.mxu0 0.0
  %3784 = vmatprep.subr.mxu0 0.0
  %3785 = vmatpush1.msra.mxu0 0.0
  %3786 = vmatprep.subr.mxu0 0.0
  %3787 = vmatpush1.msra.mxu0 0.0
  %3788 = vmatprep.subr.mxu0 0.0
  %3789 = vmatpush1.msra.mxu0 0.0
  %3790 = vmatprep.subr.mxu0 0.0
  %3791 = vmatpush1.msra.mxu0 0.0
  %3792 = vmatprep.subr.mxu0 0.0
  %3793 = vmatpush1.msra.mxu0 0.0
  %3794 = vmatprep.subr.mxu0 0.0
  %3795 = vmatpush1.msra.mxu0 0.0
  %3796 = vmatprep.subr.mxu0 0.0
  %3797 = vmatpush1.msra.mxu0 0.0
  %3798 = vmatprep.subr.mxu0 0.0
  %3799 = vmatpush1.msra.mxu0 0.0
  %3800 = vmatprep.subr.mxu0 0.0
  %3801 = vmatpush1.msra.mxu0 0.0
  %3802 = vmatprep.subr.mxu0 0.0
  %3803 = vmatpush1.msra.mxu0 0.0
  %3804 = vmatprep.subr.mxu0 0.0
  %3805 = vmatpush1.msra.mxu0 0.0
  %3806 = vmatprep.subr.mxu0 0.0
  %3807 = vmatpush1.msra.mxu0 0.0
  %3808 = vmatprep.subr.mxu0 0.0
  %3809 = vmatpush1.msra.mxu0 0.0
  %3810 = vmatprep.mubr.f32.mxu0 0.0
  %3811 = vmatmul.mubr.f32.gmra.mrb[0].mxu0 %v3555
  %v3812 = vpop.f32.mrb[0].mxu0
  %v3813 = vadd.f32 %v3552, %v3812
  %v3814 = vpop.f32.mrb[0].mxu0
  %3815 = vmatprep.mubr.f32.mxu0 0.0
  %3816 = vmatmul.mubr.f32.gmra.mrb[0].mxu0 %v3558
  %v3817 = vpop.f32.mrb[0].mxu0
  %v3818 = vadd.f32 %v3552, %v3817
  %v3819 = vpop.f32.mrb[0].mxu0
  %3820 = vmatprep.mubr.f32.mxu0 0.0
  %3821 = vmatmul.mubr.f32.gmra.mrb[0].mxu0 %v3561
  %v3822 = vpop.f32.mrb[0].mxu0
  %v3823 = vadd.f32 %v3552, %v3822
  %v3824 = vpop.f32.mrb[0].mxu0
  %3825 = vmatprep.mubr.f32.mxu0 0.0
  %3826 = vmatmul.mubr.f32.gmra.mrb[0].mxu0 %v3564
  %v3827 = vpop.f32.mrb[0].mxu0
  %v3828 = vadd.f32 %v3552, %v3827
  %v3829 = vpop.f32.mrb[0].mxu0
  %3830 = vmatprep.mubr.f32.mxu0 0.0
  %3831 = vmatmul.mubr.f32.gmra.mrb[0].mxu0 %v3567
  %v3832 = vpop.f32.mrb[0].mxu0
  %v3833 = vadd.f32 %v3552, %v3832
  %v3834 = vpop.f32.mrb[0].mxu0
  %3835 = vmatprep.mubr.f32.mxu0 0.0
  %3836 = vmatmul.mubr.f32.gmra.mrb[0].mxu0 %v3570
  %v3837 = vpop.f32.mrb[0].mxu0
  %v3838 = vadd.f32 %v3552, %v3837
  %v3839 = vpop.f32.mrb[0].mxu0
  %3840 = vmatprep.mubr.f32.mxu0 0.0
  %3841 = vmatmul.mubr.f32.gmra.mrb[0].mxu0 %v3573
  %v3842 = vpop.f32.mrb[0].mxu0
  %v3843 = vadd.f32 %v3552, %v3842
  %v3844 = vpop.f32.mrb[0].mxu0
  %3845 = vmatprep.mubr.f32.mxu0 0.0
  %3846 = vmatmul.mubr.f32.gmra.mrb[0].mxu0 %v3576
  %v3847 = vpop.f32.mrb[0].mxu0
  %v3848 = vadd.f32 %v3552, %v3847
  %v3849 = vpop.f32.mrb[0].mxu0
  %3850 = vmatprep.mubr.f32.mxu0 0.0
  %3851 = vmatmul.mubr.f32.gmra.mrb[0].mxu0 %v3579
  %v3852 = vpop.f32.mrb[0].mxu0
  %v3853 = vadd.f32 %v3552, %v3852
  %v3854 = vpop.f32.mrb[0].mxu0
  %3855 = vmatprep.mubr.f32.mxu0 0.0
  %3856 = vmatmul.mubr.f32.gmra.mrb[0].mxu0 %v3582
  %v3857 = vpop.f32.mrb[0].mxu0
  %v3858 = vadd.f32 %v3552, %v3857
  %v3859 = vpop.f32.mrb[0].mxu0
  %3860 = vmatprep.mubr.f32.mxu0 0.0
  %3861 = vmatmul.mubr.f32.gmra.mrb[0].mxu0 %v3585
  %v3862 = vpop.f32.mrb[0].mxu0
  %v3863 = vadd.f32 %v3552, %v3862
  %v3864 = vpop.f32.mrb[0].mxu0
  %3865 = vmatprep.mubr.f32.mxu0 0.0
  %3866 = vmatmul.mubr.f32.gmra.mrb[0].mxu0 %v3588
  %v3867 = vpop.f32.mrb[0].mxu0
  %v3868 = vadd.f32 %v3552, %v3867
  %v3869 = vpop.f32.mrb[0].mxu0
  %3870 = vmatprep.mubr.f32.mxu0 0.0
  %3871 = vmatmul.mubr.f32.gmra.mrb[0].mxu0 %v3591
  %v3872 = vpop.f32.mrb[0].mxu0
  %v3873 = vadd.f32 %v3552, %v3872
  %v3874 = vpop.f32.mrb[0].mxu0
  %3875 = vmatprep.mubr.f32.mxu0 0.0
  %3876 = vmatmul.mubr.f32.gmra.mrb[0].mxu0 %v3594
  %v3877 = vpop.f32.mrb[0].mxu0
  %v3878 = vadd.f32 %v3552, %v3877
  %v3879 = vpop.f32.mrb[0].mxu0
  %3880 = vmatprep.mubr.f32.mxu0 0.0
  %3881 = vmatmul.mubr.f32.gmra.mrb[0].mxu0 %v3597
  %v3882 = vpop.f32.mrb[0].mxu0
  %v3883 = vadd.f32 %v3552, %v3882
  %v3884 = vpop.f32.mrb[0].mxu0
  %3885 = vmatprep.mubr.f32.mxu0 0.0
  %3886 = vmatmul.mubr.f32.gmra.mrb[0].mxu0 %v3600
  %v3887 = vpop.f32.mrb[0].mxu0
  %v3888 = vadd.f32 %v3552, %v3887
  %v3889 = vpop.f32.mrb[0].mxu0
  %3890 = vmatprep.mubr.f32.mxu0 0.0
  %3891 = vmatmul.mubr.f32.gmra.mrb[0].mxu0 %v3603
  %v3892 = vpop.f32.mrb[0].mxu0
  %v3893 = vadd.f32 %v3552, %v3892
  %v3894 = vpop.f32.mrb[0].mxu0
  %3895 = vmatprep.mubr.f32.mxu0 0.0
  %3896 = vmatmul.mubr.f32.gmra.mrb[0].mxu0 %v3606
  %v3897 = vpop.f32.mrb[0].mxu0
  %v3898 = vadd.f32 %v3552, %v3897
  %v3899 = vpop.f32.mrb[0].mxu0
  %3900 = vmatprep.mubr.f32.mxu0 0.0
  %3901 = vmatmul.mubr.f32.gmra.mrb[0].mxu0 %v3609
  %v3902 = vpop.f32.mrb[0].mxu0
  %v3903 = vadd.f32 %v3552, %v3902
  %v3904 = vpop.f32.mrb[0].mxu0
  %3905 = vmatprep.mubr.f32.mxu0 0.0
  %3906 = vmatmul.mubr.f32.gmra.mrb[0].mxu0 %v3612
  %v3907 = vpop.f32.mrb[0].mxu0
  %v3908 = vadd.f32 %v3552, %v3907
  %v3909 = vpop.f32.mrb[0].mxu0
  %3910 = vmatprep.mubr.f32.mxu0 0.0
  %3911 = vmatmul.mubr.f32.gmra.mrb[0].mxu0 %v3615
  %v3912 = vpop.f32.mrb[0].mxu0
  %v3913 = vadd.f32 %v3552, %v3912
  %v3914 = vpop.f32.mrb[0].mxu0
  %3915 = vmatprep.mubr.f32.mxu0 0.0
  %3916 = vmatmul.mubr.f32.gmra.mrb[0].mxu0 %v3618
  %v3917 = vpop.f32.mrb[0].mxu0
  %v3918 = vadd.f32 %v3552, %v3917
  %v3919 = vpop.f32.mrb[0].mxu0
  %3920 = vmatprep.mubr.f32.mxu0 0.0
  %3921 = vmatmul.mubr.f32.gmra.mrb[0].mxu0 %v3621
  %v3922 = vpop.f32.mrb[0].mxu0
  %v3923 = vadd.f32 %v3552, %v3922
  %v3924 = vpop.f32.mrb[0].mxu0
  %3925 = vmatprep.mubr.f32.mxu0 0.0
  %3926 = vmatmul.mubr.f32.gmra.mrb[0].mxu0 %v3624
  %v3927 = vpop.f32.mrb[0].mxu0
  %v3928 = vadd.f32 %v3552, %v3927
  %v3929 = vpop.f32.mrb[0].mxu0
  %3930 = vmatprep.mubr.f32.mxu0 0.0
  %3931 = vmatmul.mubr.f32.gmra.mrb[0].mxu0 %v3627
  %v3932 = vpop.f32.mrb[0].mxu0
  %v3933 = vadd.f32 %v3552, %v3932
  %v3934 = vpop.f32.mrb[0].mxu0
  %3935 = vmatprep.mubr.f32.mxu0 0.0
  %3936 = vmatmul.mubr.f32.gmra.mrb[0].mxu0 %v3630
  %v3937 = vpop.f32.mrb[0].mxu0
  %v3938 = vadd.f32 %v3552, %v3937
  %v3939 = vpop.f32.mrb[0].mxu0
  %3940 = vmatprep.mubr.f32.mxu0 0.0
  %3941 = vmatmul.mubr.f32.gmra.mrb[0].mxu0 %v3633
  %v3942 = vpop.f32.mrb[0].mxu0
  %v3943 = vadd.f32 %v3552, %v3942
  %v3944 = vpop.f32.mrb[0].mxu0
  %3945 = vmatprep.mubr.f32.mxu0 0.0
  %3946 = vmatmul.mubr.f32.gmra.mrb[0].mxu0 %v3636
  %v3947 = vpop.f32.mrb[0].mxu0
  %v3948 = vadd.f32 %v3552, %v3947
  %v3949 = vpop.f32.mrb[0].mxu0
  %3950 = vmatprep.mubr.f32.mxu0 0.0
  %3951 = vmatmul.mubr.f32.gmra.mrb[0].mxu0 %v3639
  %v3952 = vpop.f32.mrb[0].mxu0
  %v3953 = vadd.f32 %v3552, %v3952
  %v3954 = vpop.f32.mrb[0].mxu0
  %3955 = vmatprep.mubr.f32.mxu0 0.0
  %3956 = vmatmul.mubr.f32.gmra.mrb[0].mxu0 %v3642
  %v3957 = vpop.f32.mrb[0].mxu0
  %v3958 = vadd.f32 %v3552, %v3957
  %v3959 = vpop.f32.mrb[0].mxu0
  %3960 = vmatprep.mubr.f32.mxu0 0.0
  %3961 = vmatmul.mubr.f32.gmra.mrb[0].mxu0 %v3645
  %v3962 = vpop.f32.mrb[0].mxu0
  %v3963 = vadd.f32 %v3552, %v3962
  %v3964 = vpop.f32.mrb[0].mxu0
  %3965 = vmatprep.mubr.f32.mxu0 0.0
  %3966 = vmatmul.mubr.f32.gmra.mrb[0].mxu0 %v3648
  %v3967 = vpop.f32.mrb[0].mxu0
  %v3968 = vadd.f32 %v3552, %v3967
  %v3969 = vpop.f32.mrb[0].mxu0
  %3970 = vmatprep.mubr.f32.mxu0 0.0
  %3971 = vmatmul.mubr.f32.gmra.mrb[0].mxu0 %v3651
  %v3972 = vpop.f32.mrb[0].mxu0
  %v3973 = vadd.f32 %v3552, %v3972
  %v3974 = vpop.f32.mrb[0].mxu0
  %3975 = vmatprep.mubr.f32.mxu0 0.0
  %3976 = vmatmul.mubr.f32.gmra.mrb[0].mxu0 %v3654
  %v3977 = vpop.f32.mrb[0].mxu0
  %v3978 = vadd.f32 %v3552, %v3977
  %v3979 = vpop.f32.mrb[0].mxu0
  %3980 = vmatprep.mubr.f32.mxu0 0.0
  %3981 = vmatmul.mubr.f32.gmra.mrb[0].mxu0 %v3657
  %v3982 = vpop.f32.mrb[0].mxu0
  %v3983 = vadd.f32 %v3552, %v3982
  %v3984 = vpop.f32.mrb[0].mxu0
  %3985 = vmatprep.mubr.f32.mxu0 0.0
  %3986 = vmatmul.mubr.f32.gmra.mrb[0].mxu0 %v3660
  %v3987 = vpop.f32.mrb[0].mxu0
  %v3988 = vadd.f32 %v3552, %v3987
  %v3989 = vpop.f32.mrb[0].mxu0
  %3990 = vmatprep.mubr.f32.mxu0 0.0
  %3991 = vmatmul.mubr.f32.gmra.mrb[0].mxu0 %v3663
  %v3992 = vpop.f32.mrb[0].mxu0
  %v3993 = vadd.f32 %v3552, %v3992
  %v3994 = vpop.f32.mrb[0].mxu0
  %3995 = vmatprep.mubr.f32.mxu0 0.0
  %3996 = vmatmul.mubr.f32.gmra.mrb[0].mxu0 %v3666
  %v3997 = vpop.f32.mrb[0].mxu0
  %v3998 = vadd.f32 %v3552, %v3997
  %v3999 = vpop.f32.mrb[0].mxu0
  %4000 = vmatprep.mubr.f32.mxu0 0.0
  %4001 = vmatmul.mubr.f32.gmra.mrb[0].mxu0 %v3669
  %v4002 = vpop.f32.mrb[0].mxu0
  %v4003 = vadd.f32 %v3552, %v4002
  %v4004 = vpop.f32.mrb[0].mxu0
  %4005 = vmatprep.mubr.f32.mxu0 0.0
  %4006 = vmatmul.mubr.f32.gmra.mrb[0].mxu0 %v3672
  %v4007 = vpop.f32.mrb[0].mxu0
  %v4008 = vadd.f32 %v3552, %v4007
  %v4009 = vpop.f32.mrb[0].mxu0
  %4010 = vmatprep.mubr.f32.mxu0 0.0
  %4011 = vmatmul.mubr.f32.gmra.mrb[0].mxu0 %v3675
  %v4012 = vpop.f32.mrb[0].mxu0
  %v4013 = vadd.f32 %v3552, %v4012
  %v4014 = vpop.f32.mrb[0].mxu0
  %4015 = vmatprep.mubr.f32.mxu0 0.0
  %4016 = vmatmul.mubr.f32.gmra.mrb[0].mxu0 %v3678
  %v4017 = vpop.f32.mrb[0].mxu0
  %v4018 = vadd.f32 %v3552, %v4017
  %v4019 = vpop.f32.mrb[0].mxu0
  %4020 = vmatprep.mubr.f32.mxu0 0.0
  %4021 = vmatmul.mubr.f32.gmra.mrb[0].mxu0 %v3681
  %v4022 = vpop.f32.mrb[0].mxu0
  %v4023 = vadd.f32 %v3552, %v4022
  %v4024 = vpop.f32.mrb[0].mxu0
  %4025 = vmatprep.mubr.f32.mxu0 0.0
  %4026 = vmatmul.mubr.f32.gmra.mrb[0].mxu0 %v3684
  %v4027 = vpop.f32.mrb[0].mxu0
  %v4028 = vadd.f32 %v3552, %v4027
  %v4029 = vpop.f32.mrb[0].mxu0
  %4030 = vmatprep.mubr.f32.mxu0 0.0
  %4031 = vmatmul.mubr.f32.gmra.mrb[0].mxu0 %v3687
  %v4032 = vpop.f32.mrb[0].mxu0
  %v4033 = vadd.f32 %v3552, %v4032
  %v4034 = vpop.f32.mrb[0].mxu0
  %4035 = vmatprep.mubr.f32.mxu0 0.0
  %4036 = vmatmul.mubr.f32.gmra.mrb[0].mxu0 %v3690
  %v4037 = vpop.f32.mrb[0].mxu0
  %v4038 = vadd.f32 %v3552, %v4037
  %v4039 = vpop.f32.mrb[0].mxu0
  %4040 = vmatprep.mubr.f32.mxu0 0.0
  %4041 = vmatmul.mubr.f32.gmra.mrb[0].mxu0 %v3693
  %v4042 = vpop.f32.mrb[0].mxu0
  %v4043 = vadd.f32 %v3552, %v4042
  %v4044 = vpop.f32.mrb[0].mxu0
  %4045 = vmatprep.mubr.f32.mxu0 0.0
  %4046 = vmatmul.mubr.f32.gmra.mrb[0].mxu0 %v3696
  %v4047 = vpop.f32.mrb[0].mxu0
  %v4048 = vadd.f32 %v3552, %v4047
  %v4049 = vpop.f32.mrb[0].mxu0
  %4050 = vmatprep.mubr.f32.mxu0 0.0
  %4051 = vmatmul.mubr.f32.gmra.mrb[0].mxu0 %v3699
  %v4052 = vpop.f32.mrb[0].mxu0
  %v4053 = vadd.f32 %v3552, %v4052
  %v4054 = vpop.f32.mrb[0].mxu0
  %4055 = vmatprep.mubr.f32.mxu0 0.0
  %4056 = vmatmul.mubr.f32.gmra.mrb[0].mxu0 %v3702
  %v4057 = vpop.f32.mrb[0].mxu0
  %v4058 = vadd.f32 %v3552, %v4057
  %v4059 = vpop.f32.mrb[0].mxu0
  %4060 = vmatprep.mubr.f32.mxu0 0.0
  %4061 = vmatmul.mubr.f32.gmra.mrb[0].mxu0 %v3705
  %v4062 = vpop.f32.mrb[0].mxu0
  %v4063 = vadd.f32 %v3552, %v4062
  %v4064 = vpop.f32.mrb[0].mxu0
  %4065 = vmatprep.mubr.f32.mxu0 0.0
  %4066 = vmatmul.mubr.f32.gmra.mrb[0].mxu0 %v3708
  %v4067 = vpop.f32.mrb[0].mxu0
  %v4068 = vadd.f32 %v3552, %v4067
  %v4069 = vpop.f32.mrb[0].mxu0
  %4070 = vmatprep.mubr.f32.mxu0 0.0
  %4071 = vmatmul.mubr.f32.gmra.mrb[0].mxu0 %v3711
  %v4072 = vpop.f32.mrb[0].mxu0
  %v4073 = vadd.f32 %v3552, %v4072
  %v4074 = vpop.f32.mrb[0].mxu0
  %4075 = vmatprep.mubr.f32.mxu0 0.0
  %4076 = vmatmul.mubr.f32.gmra.mrb[0].mxu0 %v3714
  %v4077 = vpop.f32.mrb[0].mxu0
  %v4078 = vadd.f32 %v3552, %v4077
  %v4079 = vpop.f32.mrb[0].mxu0
  %4080 = vmatprep.mubr.f32.mxu0 0.0
  %4081 = vmatmul.mubr.f32.gmra.mrb[0].mxu0 %v3717
  %v4082 = vpop.f32.mrb[0].mxu0
  %v4083 = vadd.f32 %v3552, %v4082
  %v4084 = vpop.f32.mrb[0].mxu0
  %4085 = vmatprep.mubr.f32.mxu0 0.0
  %4086 = vmatmul.mubr.f32.gmra.mrb[0].mxu0 %v3720
  %v4087 = vpop.f32.mrb[0].mxu0
  %v4088 = vadd.f32 %v3552, %v4087
  %v4089 = vpop.f32.mrb[0].mxu0
  %4090 = vmatprep.mubr.f32.mxu0 0.0
  %4091 = vmatmul.mubr.f32.gmra.mrb[0].mxu0 %v3723
  %v4092 = vpop.f32.mrb[0].mxu0
  %v4093 = vadd.f32 %v3552, %v4092
  %v4094 = vpop.f32.mrb[0].mxu0
  %4095 = vmatprep.mubr.f32.mxu0 0.0
  %4096 = vmatmul.mubr.f32.gmra.mrb[0].mxu0 %v3726
  %v4097 = vpop.f32.mrb[0].mxu0
  %v4098 = vadd.f32 %v3552, %v4097
  %v4099 = vpop.f32.mrb[0].mxu0
  %4100 = vmatprep.mubr.f32.mxu0 0.0
  %4101 = vmatmul.mubr.f32.gmra.mrb[0].mxu0 %v3729
  %v4102 = vpop.f32.mrb[0].mxu0
  %v4103 = vadd.f32 %v3552, %v4102
  %v4104 = vpop.f32.mrb[0].mxu0
  %4105 = vmatprep.mubr.f32.mxu0 0.0
  %4106 = vmatmul.mubr.f32.gmra.mrb[0].mxu0 %v3732
  %v4107 = vpop.f32.mrb[0].mxu0
  %v4108 = vadd.f32 %v3552, %v4107
  %v4109 = vpop.f32.mrb[0].mxu0
  %4110 = vmatprep.mubr.f32.mxu0 0.0
  %4111 = vmatmul.mubr.f32.gmra.mrb[0].mxu0 %v3735
  %v4112 = vpop.f32.mrb[0].mxu0
  %v4113 = vadd.f32 %v3552, %v4112
  %v4114 = vpop.f32.mrb[0].mxu0
  %4115 = vmatprep.mubr.f32.mxu0 0.0
  %4116 = vmatmul.mubr.f32.gmra.mrb[0].mxu0 %v3738
  %v4117 = vpop.f32.mrb[0].mxu0
  %v4118 = vadd.f32 %v3552, %v4117
  %v4119 = vpop.f32.mrb[0].mxu0
  %4120 = vmatprep.mubr.f32.mxu0 0.0
  %4121 = vmatmul.mubr.f32.gmra.mrb[0].mxu0 %v3741
  %v4122 = vpop.f32.mrb[0].mxu0
  %v4123 = vadd.f32 %v3552, %v4122
  %v4124 = vpop.f32.mrb[0].mxu0
  %4125 = vmatprep.mubr.f32.mxu0 0.0
  %4126 = vmatmul.mubr.f32.gmra.mrb[0].mxu0 %v3744
  %v4127 = vpop.f32.mrb[0].mxu0
  %v4128 = vadd.f32 %v3552, %v4127
  %v4129 = vpop.f32.mrb[0].mxu0
  %4130 = vdwg.mxu0
  %4195 = vrot.lane.b32.xlu0 %v3813, 48
  %v4196 = vpop.permute.xlu0 %4195
  %4197 = vrot.lane.b32.xlu0 %v3818, 48
  %v4198 = vpop.permute.xlu0 %4197
  %4199 = vrot.lane.b32.xlu0 %v3823, 48
  %v4200 = vpop.permute.xlu0 %4199
  %4201 = vrot.lane.b32.xlu0 %v3828, 48
  %v4202 = vpop.permute.xlu0 %4201
  %4203 = vrot.lane.b32.xlu0 %v3833, 48
  %v4204 = vpop.permute.xlu0 %4203
  %4205 = vrot.lane.b32.xlu0 %v3838, 48
  %v4206 = vpop.permute.xlu0 %4205
  %4207 = vrot.lane.b32.xlu0 %v3843, 48
  %v4208 = vpop.permute.xlu0 %4207
  %4209 = vrot.lane.b32.xlu0 %v3848, 48
  %v4210 = vpop.permute.xlu0 %4209
  %4211 = vrot.lane.b32.xlu0 %v3853, 48
  %v4212 = vpop.permute.xlu0 %4211
  %4213 = vrot.lane.b32.xlu0 %v3858, 48
  %v4214 = vpop.permute.xlu0 %4213
  %4215 = vrot.lane.b32.xlu0 %v3863, 48
  %v4216 = vpop.permute.xlu0 %4215
  %4217 = vrot.lane.b32.xlu0 %v3868, 48
  %v4218 = vpop.permute.xlu0 %4217
  %4219 = vrot.lane.b32.xlu0 %v3873, 48
  %v4220 = vpop.permute.xlu0 %4219
  %4221 = vrot.lane.b32.xlu0 %v3878, 48
  %v4222 = vpop.permute.xlu0 %4221
  %4223 = vrot.lane.b32.xlu0 %v3883, 48
  %v4224 = vpop.permute.xlu0 %4223
  %4225 = vrot.lane.b32.xlu0 %v3888, 48
  %v4226 = vpop.permute.xlu0 %4225
  %4227 = vrot.lane.b32.xlu0 %v3893, 48
  %v4228 = vpop.permute.xlu0 %4227
  %4229 = vrot.lane.b32.xlu0 %v3898, 48
  %v4230 = vpop.permute.xlu0 %4229
  %4231 = vrot.lane.b32.xlu0 %v3903, 48
  %v4232 = vpop.permute.xlu0 %4231
  %4233 = vrot.lane.b32.xlu0 %v3908, 48
  %v4234 = vpop.permute.xlu0 %4233
  %4235 = vrot.lane.b32.xlu0 %v3913, 48
  %v4236 = vpop.permute.xlu0 %4235
  %4237 = vrot.lane.b32.xlu0 %v3918, 48
  %v4238 = vpop.permute.xlu0 %4237
  %4239 = vrot.lane.b32.xlu0 %v3923, 48
  %v4240 = vpop.permute.xlu0 %4239
  %4241 = vrot.lane.b32.xlu0 %v3928, 48
  %v4242 = vpop.permute.xlu0 %4241
  %4243 = vrot.lane.b32.xlu0 %v3933, 48
  %v4244 = vpop.permute.xlu0 %4243
  %4245 = vrot.lane.b32.xlu0 %v3938, 48
  %v4246 = vpop.permute.xlu0 %4245
  %4247 = vrot.lane.b32.xlu0 %v3943, 48
  %v4248 = vpop.permute.xlu0 %4247
  %4249 = vrot.lane.b32.xlu0 %v3948, 48
  %v4250 = vpop.permute.xlu0 %4249
  %4251 = vrot.lane.b32.xlu0 %v3953, 48
  %v4252 = vpop.permute.xlu0 %4251
  %4253 = vrot.lane.b32.xlu0 %v3958, 48
  %v4254 = vpop.permute.xlu0 %4253
  %4255 = vrot.lane.b32.xlu0 %v3963, 48
  %v4256 = vpop.permute.xlu0 %4255
  %4257 = vrot.lane.b32.xlu0 %v3968, 48
  %v4258 = vpop.permute.xlu0 %4257
  %4259 = vrot.lane.b32.xlu0 %v3973, 48
  %v4260 = vpop.permute.xlu0 %4259
  %4261 = vrot.lane.b32.xlu0 %v3978, 48
  %v4262 = vpop.permute.xlu0 %4261
  %4263 = vrot.lane.b32.xlu0 %v3983, 48
  %v4264 = vpop.permute.xlu0 %4263
  %4265 = vrot.lane.b32.xlu0 %v3988, 48
  %v4266 = vpop.permute.xlu0 %4265
  %4267 = vrot.lane.b32.xlu0 %v3993, 48
  %v4268 = vpop.permute.xlu0 %4267
  %4269 = vrot.lane.b32.xlu0 %v3998, 48
  %v4270 = vpop.permute.xlu0 %4269
  %4271 = vrot.lane.b32.xlu0 %v4003, 48
  %v4272 = vpop.permute.xlu0 %4271
  %4273 = vrot.lane.b32.xlu0 %v4008, 48
  %v4274 = vpop.permute.xlu0 %4273
  %4275 = vrot.lane.b32.xlu0 %v4013, 48
  %v4276 = vpop.permute.xlu0 %4275
  %4277 = vrot.lane.b32.xlu0 %v4018, 48
  %v4278 = vpop.permute.xlu0 %4277
  %4279 = vrot.lane.b32.xlu0 %v4023, 48
  %v4280 = vpop.permute.xlu0 %4279
  %4281 = vrot.lane.b32.xlu0 %v4028, 48
  %v4282 = vpop.permute.xlu0 %4281
  %4283 = vrot.lane.b32.xlu0 %v4033, 48
  %v4284 = vpop.permute.xlu0 %4283
  %4285 = vrot.lane.b32.xlu0 %v4038, 48
  %v4286 = vpop.permute.xlu0 %4285
  %4287 = vrot.lane.b32.xlu0 %v4043, 48
  %v4288 = vpop.permute.xlu0 %4287
  %4289 = vrot.lane.b32.xlu0 %v4048, 48
  %v4290 = vpop.permute.xlu0 %4289
  %4291 = vrot.lane.b32.xlu0 %v4053, 48
  %v4292 = vpop.permute.xlu0 %4291
  %4293 = vrot.lane.b32.xlu0 %v4058, 48
  %v4294 = vpop.permute.xlu0 %4293
  %4295 = vrot.lane.b32.xlu0 %v4063, 48
  %v4296 = vpop.permute.xlu0 %4295
  %4297 = vrot.lane.b32.xlu0 %v4068, 48
  %v4298 = vpop.permute.xlu0 %4297
  %4299 = vrot.lane.b32.xlu0 %v4073, 48
  %v4300 = vpop.permute.xlu0 %4299
  %4301 = vrot.lane.b32.xlu0 %v4078, 48
  %v4302 = vpop.permute.xlu0 %4301
  %4303 = vrot.lane.b32.xlu0 %v4083, 48
  %v4304 = vpop.permute.xlu0 %4303
  %4305 = vrot.lane.b32.xlu0 %v4088, 48
  %v4306 = vpop.permute.xlu0 %4305
  %4307 = vrot.lane.b32.xlu0 %v4093, 48
  %v4308 = vpop.permute.xlu0 %4307
  %4309 = vrot.lane.b32.xlu0 %v4098, 48
  %v4310 = vpop.permute.xlu0 %4309
  %4311 = vrot.lane.b32.xlu0 %v4103, 48
  %v4312 = vpop.permute.xlu0 %4311
  %4313 = vrot.lane.b32.xlu0 %v4108, 48
  %v4314 = vpop.permute.xlu0 %4313
  %4315 = vrot.lane.b32.xlu0 %v4113, 48
  %v4316 = vpop.permute.xlu0 %4315
  %4317 = vrot.lane.b32.xlu0 %v4118, 48
  %v4318 = vpop.permute.xlu0 %4317
  %4319 = vrot.lane.b32.xlu0 %v4123, 48
  %v4320 = vpop.permute.xlu0 %4319
  %4321 = vrot.lane.b32.xlu0 %v4128, 48
  %v4322 = vpop.permute.xlu0 %4321
  %vm4387 = vcmask 523648
  %4388 = vst.msk [vmem:[%s3] sm:$0xff] %vm4387, %v4196
  %4389 = vst.msk [vmem:[%s3 + $0x8] sm:$0xff] %vm4387, %v4198
  %4390 = vst.msk [vmem:[%s3 + $0x10] sm:$0xff] %vm4387, %v4200
  %4391 = vst.msk [vmem:[%s3 + $0x18] sm:$0xff] %vm4387, %v4202
  %4392 = vst.msk [vmem:[%s3 + $0x20] sm:$0xff] %vm4387, %v4204
  %4393 = vst.msk [vmem:[%s3 + $0x28] sm:$0xff] %vm4387, %v4206
  %4394 = vst.msk [vmem:[%s3 + $0x30] sm:$0xff] %vm4387, %v4208
  %4395 = vst.msk [vmem:[%s3 + $0x38] sm:$0xff] %vm4387, %v4210
  %4396 = vst.msk [vmem:[%s3 + $0x40] sm:$0xff] %vm4387, %v4212
  %4397 = vst.msk [vmem:[%s3 + $0x48] sm:$0xff] %vm4387, %v4214
  %4398 = vst.msk [vmem:[%s3 + $0x50] sm:$0xff] %vm4387, %v4216
  %4399 = vst.msk [vmem:[%s3 + $0x58] sm:$0xff] %vm4387, %v4218
  %4400 = vst.msk [vmem:[%s3 + $0x60] sm:$0xff] %vm4387, %v4220
  %4401 = vst.msk [vmem:[%s3 + $0x68] sm:$0xff] %vm4387, %v4222
  %4402 = vst.msk [vmem:[%s3 + $0x70] sm:$0xff] %vm4387, %v4224
  %4403 = vst.msk [vmem:[%s3 + $0x78] sm:$0xff] %vm4387, %v4226
  %4404 = vst.msk [vmem:[%s3 + $0x80] sm:$0xff] %vm4387, %v4228
  %4405 = vst.msk [vmem:[%s3 + $0x88] sm:$0xff] %vm4387, %v4230
  %4406 = vst.msk [vmem:[%s3 + $0x90] sm:$0xff] %vm4387, %v4232
  %4407 = vst.msk [vmem:[%s3 + $0x98] sm:$0xff] %vm4387, %v4234
  %4408 = vst.msk [vmem:[%s3 + $0xa0] sm:$0xff] %vm4387, %v4236
  %4409 = vst.msk [vmem:[%s3 + $0xa8] sm:$0xff] %vm4387, %v4238
  %4410 = vst.msk [vmem:[%s3 + $0xb0] sm:$0xff] %vm4387, %v4240
  %4411 = vst.msk [vmem:[%s3 + $0xb8] sm:$0xff] %vm4387, %v4242
  %4412 = vst.msk [vmem:[%s3 + $0xc0] sm:$0xff] %vm4387, %v4244
  %4413 = vst.msk [vmem:[%s3 + $0xc8] sm:$0xff] %vm4387, %v4246
  %4414 = vst.msk [vmem:[%s3 + $0xd0] sm:$0xff] %vm4387, %v4248
  %4415 = vst.msk [vmem:[%s3 + $0xd8] sm:$0xff] %vm4387, %v4250
  %4416 = vst.msk [vmem:[%s3 + $0xe0] sm:$0xff] %vm4387, %v4252
  %4417 = vst.msk [vmem:[%s3 + $0xe8] sm:$0xff] %vm4387, %v4254
  %4418 = vst.msk [vmem:[%s3 + $0xf0] sm:$0xff] %vm4387, %v4256
  %4419 = vst.msk [vmem:[%s3 + $0xf8] sm:$0xff] %vm4387, %v4258
  %4420 = vst.msk [vmem:[%s3 + $0x100] sm:$0xff] %vm4387, %v4260
  %4421 = vst.msk [vmem:[%s3 + $0x108] sm:$0xff] %vm4387, %v4262
  %4422 = vst.msk [vmem:[%s3 + $0x110] sm:$0xff] %vm4387, %v4264
  %4423 = vst.msk [vmem:[%s3 + $0x118] sm:$0xff] %vm4387, %v4266
  %4424 = vst.msk [vmem:[%s3 + $0x120] sm:$0xff] %vm4387, %v4268
  %4425 = vst.msk [vmem:[%s3 + $0x128] sm:$0xff] %vm4387, %v4270
  %4426 = vst.msk [vmem:[%s3 + $0x130] sm:$0xff] %vm4387, %v4272
  %4427 = vst.msk [vmem:[%s3 + $0x138] sm:$0xff] %vm4387, %v4274
  %4428 = vst.msk [vmem:[%s3 + $0x140] sm:$0xff] %vm4387, %v4276
  %4429 = vst.msk [vmem:[%s3 + $0x148] sm:$0xff] %vm4387, %v4278
  %4430 = vst.msk [vmem:[%s3 + $0x150] sm:$0xff] %vm4387, %v4280
  %4431 = vst.msk [vmem:[%s3 + $0x158] sm:$0xff] %vm4387, %v4282
  %4432 = vst.msk [vmem:[%s3 + $0x160] sm:$0xff] %vm4387, %v4284
  %4433 = vst.msk [vmem:[%s3 + $0x168] sm:$0xff] %vm4387, %v4286
  %4434 = vst.msk [vmem:[%s3 + $0x170] sm:$0xff] %vm4387, %v4288
  %4435 = vst.msk [vmem:[%s3 + $0x178] sm:$0xff] %vm4387, %v4290
  %4436 = vst.msk [vmem:[%s3 + $0x180] sm:$0xff] %vm4387, %v4292
  %4437 = vst.msk [vmem:[%s3 + $0x188] sm:$0xff] %vm4387, %v4294
  %4438 = vst.msk [vmem:[%s3 + $0x190] sm:$0xff] %vm4387, %v4296
  %4439 = vst.msk [vmem:[%s3 + $0x198] sm:$0xff] %vm4387, %v4298
  %4440 = vst.msk [vmem:[%s3 + $0x1a0] sm:$0xff] %vm4387, %v4300
  %4441 = vst.msk [vmem:[%s3 + $0x1a8] sm:$0xff] %vm4387, %v4302
  %4442 = vst.msk [vmem:[%s3 + $0x1b0] sm:$0xff] %vm4387, %v4304
  %4443 = vst.msk [vmem:[%s3 + $0x1b8] sm:$0xff] %vm4387, %v4306
  %4444 = vst.msk [vmem:[%s3 + $0x1c0] sm:$0xff] %vm4387, %v4308
  %4445 = vst.msk [vmem:[%s3 + $0x1c8] sm:$0xff] %vm4387, %v4310
  %4446 = vst.msk [vmem:[%s3 + $0x1d0] sm:$0xff] %vm4387, %v4312
  %4447 = vst.msk [vmem:[%s3 + $0x1d8] sm:$0xff] %vm4387, %v4314
  %4448 = vst.msk [vmem:[%s3 + $0x1e0] sm:$0xff] %vm4387, %v4316
  %4449 = vst.msk [vmem:[%s3 + $0x1e8] sm:$0xff] %vm4387, %v4318
  %4450 = vst.msk [vmem:[%s3 + $0x1f0] sm:$0xff] %vm4387, %v4320
  %4451 = vst.msk [vmem:[%s3 + $0x1f8] sm:$0xff] %vm4387, %v4322
  // Predicated region
  $region14: #{physics_vae_forward.1} parent=0 // pred_check
    _
  $region15: #{physics_vae_forward.1} parent=0 // pred_check_branch
    %4453 = sbr.rel (0) target = $region17
  $region16: #{physics_vae_forward.1} parent=0 // pred_region
    _
  $region17: #{physics_vae_forward.1} parent=0 // pred_fallthru
    _
  // Predicated region
  $region18: #{physics_vae_forward.1} parent=0 // pred_check
    _
  $region19: #{physics_vae_forward.1} parent=0 // pred_check_branch
    %4455 = sbr.rel (0) target = $region21
  $region20: #{physics_vae_forward.1} parent=0 // pred_region
    _
  $region21: #{physics_vae_forward.1} parent=0 // pred_fallthru
    _

</llo_original>
